<compile_context>
chip_gen: v7x
topology: tpu7x:2x2x1
jax: 0.10.0
libtpu: 0.0.40
codegen_flags: <defaults>
</compile_context>

<pallas_src>
import functools

import jax
import jax.numpy as jnp
from jax.experimental import pallas as pl
from jax.experimental.pallas import tpu as pltpu

_HI = jax.lax.Precision.HIGHEST

_L0_REFS = 6   # wih_x_f, wih_x_b, sid_f_tab, sid_b_tab, w_rec, b_hn
_LN_REFS = 5   # wih_f, wih_b, bias, w_rec, b_hn


# ----------------------------------------------------------------------------
# Fused Pallas kernel: all GRU layers, both directions, FC head, output layout
# ----------------------------------------------------------------------------
def fused_gru_kernel(*refs, T, B, H, L):
    """Ref order:
      x_sid (B,) int32 [SMEM], x_seq (B,T) f32,
      layer 0:   wih_x_f(1,6H), wih_x_b(1,6H), sid_f_tab(S,6H), sid_b_tab(S,6H),
                 w_rec(2H,6H), b_hn(1,2H)
      layer l>0: wih_f(2H,6H), wih_b(2H,6H), bias(1,6H), w_rec(2H,6H), b_hn(1,2H)
      fc_w_f(1,H), fc_w_b(1,H), fc_b(1,1),
      out (B,T), y scratch (T*B, 2H).

    Lane layout of all 6H-wide gate slabs: [r_f | r_b | z_f | z_b | n_f | n_b].
    The fwd lanes of a step use time t=s, the bwd lanes use time t=T-1-s, so
    both directions advance in the SAME unrolled step loop with one MXU push.
    """
    H2, H4, H6 = 2 * H, 4 * H, 6 * H

    idx = 0
    x_sid_ref = refs[idx]; idx += 1
    x_ref = refs[idx]; idx += 1
    layer_refs = []
    for l in range(L):
        n = _L0_REFS if l == 0 else _LN_REFS
        layer_refs.append(refs[idx:idx + n]); idx += n
    fc_w_f_ref = refs[idx]; idx += 1
    fc_w_b_ref = refs[idx]; idx += 1
    fc_b_ref = refs[idx]; idx += 1
    out_ref = refs[idx]; idx += 1
    y_ref = refs[idx]

    xv = x_ref[...]                                              # (B, T)
    fc_w_f = jnp.broadcast_to(fc_w_f_ref[...], (B, H))           # hoisted broadcasts
    fc_w_b = jnp.broadcast_to(fc_w_b_ref[...], (B, H))

    out_f_cols = [None] * T
    out_b_cols = [None] * T

    for l in range(L):
        last = (l == L - 1)
        if l == 0:
            (wih_x_f_ref, wih_x_b_ref, sid_f_ref, sid_b_ref,
             w_rec_ref, b_hn_ref) = layer_refs[0]
            # Embedding lookup + layer-0 biases were folded into per-singer gi
            # tables at prep time; gather the B rows with dynamic sublane slices.
            rows_f, rows_b = [], []
            for b in range(B):
                sid = x_sid_ref[b]
                rows_f.append(sid_f_ref[pl.ds(sid, 1), :])       # (1, 6H)
                rows_b.append(sid_b_ref[pl.ds(sid, 1), :])
            sid_gi = (jnp.concatenate(rows_f, axis=0)
                      + jnp.concatenate(rows_b, axis=0))          # (B, 6H), biases incl.
            wih_x_f = jnp.broadcast_to(wih_x_f_ref[...], (B, H6))
            wih_x_b = jnp.broadcast_to(wih_x_b_ref[...], (B, H6))
        else:
            (wih_f_ref, wih_b_ref, bias_ref, w_rec_ref, b_hn_ref) = layer_refs[l]
            layer_in = y_ref[...]                                 # (T*B, 2H)
            # Hoisted input projections (one MXU matmul per direction, off the
            # serial path); bias folded into the fwd slab only (disjoint lanes).
            gi_f = jnp.dot(layer_in, wih_f_ref[...],
                           preferred_element_type=jnp.float32) + bias_ref[...]
            gi_b = jnp.dot(layer_in, wih_b_ref[...],
                           preferred_element_type=jnp.float32)

        w_rec = w_rec_ref[...]                                    # (2H, 6H) block-diag
        b_hn = jnp.broadcast_to(b_hn_ref[...], (B, H2))           # (B, 2H)

        h = jnp.zeros((B, H2), jnp.float32)                       # [h_fwd | h_bwd]
        for s in range(T):                                        # fully unrolled
            rev = T - 1 - s
            if l == 0:
                # rank-1 x term (per-step, off the h dependency chain) + sid term
                gi = (xv[:, s:s + 1] * wih_x_f
                      + xv[:, rev:rev + 1] * wih_x_b + sid_gi)    # (B, 6H)
            else:
                gi = (gi_f[s * B:(s + 1) * B, :]
                      + gi_b[rev * B:(rev + 1) * B, :])           # (B, 6H)

            # ONE MXU push per step for both directions and all three gates.
            gh = jnp.dot(h, w_rec, preferred_element_type=jnp.float32)   # (B, 6H)
            grz = gi[:, 0:H4] + gh[:, 0:H4]
            r = jax.nn.sigmoid(grz[:, 0:H2])
            z = jax.nn.sigmoid(grz[:, H2:H4])
            n = jnp.tanh(gi[:, H4:H6] + r * (gh[:, H4:H6] + b_hn))
            h = n + z * (h - n)                                   # == (1-z)*n + z*h

            if not last:
                # Matching source/dest lane offsets -> no lane rotate on stores.
                y_ref[s * B:(s + 1) * B, 0:H] = h[:, 0:H]
                y_ref[rev * B:(rev + 1) * B, H:H2] = h[:, H:H2]
            else:
                # FC head as VPU multiply + lane reduce (XLU), per time column.
                out_f_cols[s] = jnp.sum(h[:, 0:H] * fc_w_f, axis=1, keepdims=True)
                out_b_cols[rev] = jnp.sum(h[:, H:H2] * fc_w_b, axis=1, keepdims=True)

    cols = [out_f_cols[t] + out_b_cols[t] for t in range(T)]
    out_ref[...] = jnp.concatenate(cols, axis=1) + fc_b_ref[...]  # (B, T) directly


# ----------------------------------------------------------------------------
# One-time parameter preparation (transpose / gate-spread / bias & emb fold)
# ----------------------------------------------------------------------------
def prepare_params(params, hidden_size):
    H = hidden_size
    H6 = 6 * H
    emb = jnp.asarray(params["emb"], jnp.float32)                 # (S, E)
    E = emb.shape[1]

    def spread_w(w_t, d):                                         # (Din,3H) -> (Din,6H)
        out = jnp.zeros((w_t.shape[0], H6), jnp.float32)
        for g in range(3):                                        # r, z, n
            c = (2 * g + d) * H
            out = out.at[:, c:c + H].set(w_t[:, g * H:(g + 1) * H])
        return out

    def spread_b(b3h, d):                                         # (3H,) -> (1,6H)
        out = jnp.zeros((H6,), jnp.float32)
        for g in range(3):
            c = (2 * g + d) * H
            out = out.at[c:c + H].set(b3h[g * H:(g + 1) * H])
        return out.reshape(1, H6)

    flat = []
    for l, layer in enumerate(params["gru"]):
        wih_s, whh_s, bias_s, bhn = [], [], [], []
        for d, name in enumerate(("fwd", "bwd")):
            w_ih, w_hh, b_ih, b_hh = (jnp.asarray(a, jnp.float32) for a in layer[name])
            wih_s.append(spread_w(w_ih.T, d))                     # (Din, 6H)
            whh_s.append(spread_w(w_hh.T, d))                     # (H, 6H)
            # b_ih for all gates + b_hh for r,z folded into the input projection;
            # b_hn stays inside r*(gh_n + b_hn).
            b_gi = b_ih + jnp.concatenate([b_hh[:2 * H], jnp.zeros((H,), jnp.float32)])
            bias_s.append(spread_b(b_gi, d))
            bhn.append(b_hh[2 * H:3 * H])
        w_rec = jnp.concatenate(whh_s, axis=0)                    # (2H, 6H) block-diag
        b_hn = jnp.concatenate(bhn).reshape(1, 2 * H)
        bias_all = bias_s[0] + bias_s[1]                          # disjoint lanes
        if l == 0:
            # Fold embedding table + layer-0 biases into per-singer gi tables.
            sid_f = jnp.dot(emb, wih_s[0][1:1 + E, :], precision=_HI) + bias_all
            sid_b = jnp.dot(emb, wih_s[1][1:1 + E, :], precision=_HI)
            flat.extend([wih_s[0][0:1, :], wih_s[1][0:1, :], sid_f, sid_b, w_rec, b_hn])
        else:
            flat.extend([wih_s[0], wih_s[1], bias_all, w_rec, b_hn])
    fc_w = jnp.asarray(params["fc_w"], jnp.float32)               # (1, 2H)
    flat.extend([fc_w[:, :H], fc_w[:, H:],
                 jnp.asarray(params["fc_b"], jnp.float32).reshape(1, 1)])
    return tuple(flat)


# ----------------------------------------------------------------------------
# Forward wrapper: a single pallas_call, no XLA glue ops
# ----------------------------------------------------------------------------
def toy_duration_predictor(prepped, x_seq, x_sid, *, hidden_size, num_layers):
    """Matches ToyDurationPredictor.forward.  x_seq: (B, T) float, x_sid: (B,) int."""
    B, T = x_seq.shape
    H = hidden_size
    kernel = functools.partial(fused_gru_kernel, T=T, B=B, H=H, L=num_layers)
    n_in = 2 + len(prepped)
    in_specs = ([pl.BlockSpec(memory_space=pltpu.MemorySpace.SMEM)]          # x_sid
                + [pl.BlockSpec(memory_space=pltpu.MemorySpace.VMEM)] * (n_in - 1))
    # TODO(synk): nn.GRU inter-layer dropout is train-only; inference is a no-op here.
    return pl.pallas_call(
        kernel,
        out_shape=jax.ShapeDtypeStruct((B, T), jnp.float32),
        in_specs=in_specs,
        out_specs=pl.BlockSpec(memory_space=pltpu.MemorySpace.VMEM),
        scratch_shapes=[pltpu.VMEM((T * B, 2 * H), jnp.float32)],
        compiler_params=pltpu.CompilerParams(vmem_limit_bytes=4 * 1024 * 1024),
    )(x_sid.astype(jnp.int32), x_seq.astype(jnp.float32), *prepped)


# ----------------------------------------------------------------------------
# Pure-JAX reference (correctness check only; HIGHEST-precision matmuls)
# ----------------------------------------------------------------------------
def _gru_dir_ref(x_tbd, w_ih, w_hh, b_ih, b_hh):
    H = w_hh.shape[1]
    B = x_tbd.shape[1]

    def step(h, x_t):
        gi = jnp.dot(x_t, w_ih.T, precision=_HI) + b_ih
        gh = jnp.dot(h, w_hh.T, precision=_HI) + b_hh
        r = jax.nn.sigmoid(gi[:, :H] + gh[:, :H])
        z = jax.nn.sigmoid(gi[:, H:2 * H] + gh[:, H:2 * H])
        n = jnp.tanh(gi[:, 2 * H:] + r * gh[:, 2 * H:])
        h_new = (1.0 - z) * n + z * h
        return h_new, h_new

    _, ys = jax.lax.scan(step, jnp.zeros((B, H), jnp.float32), x_tbd)
    return ys


def _forward_ref(params, x_seq, x_sid):
    B, T = x_seq.shape
    x = x_seq[:, :, None].astype(jnp.float32)
    sid_emb = jnp.take(params["emb"], x_sid, axis=0)
    sid_exp = jnp.broadcast_to(sid_emb[:, None, :], (B, T, sid_emb.shape[-1]))
    h = jnp.transpose(jnp.concatenate([x, sid_exp], axis=-1), (1, 0, 2))
    for layer in params["gru"]:
        fwd = _gru_dir_ref(h, *layer["fwd"])
        bwd = jnp.flip(_gru_dir_ref(jnp.flip(h, axis=0), *layer["bwd"]), axis=0)
        h = jnp.concatenate([fwd, bwd], axis=-1)
    pred = jnp.einsum("tbh,h->tb", h, params["fc_w"][0], precision=_HI) + params["fc_b"][0]
    return jnp.transpose(pred)


# ----------------------------------------------------------------------------
# Deterministic parameter init (PyTorch-like uniform(-1/sqrt(H), 1/sqrt(H)))
# ----------------------------------------------------------------------------
def init_params(key, hidden_size, num_layers, num_singers, emb_dim):
    k = 1.0 / float(hidden_size) ** 0.5

    def nxt():
        nonlocal key
        key, sub = jax.random.split(key)
        return sub

    params = {"emb": jax.random.normal(nxt(), (num_singers, emb_dim), jnp.float32)}
    gru = []
    d_in = 1 + emb_dim
    for _ in range(num_layers):
        layer = {}
        for d in ("fwd", "bwd"):
            layer[d] = (
                jax.random.uniform(nxt(), (3 * hidden_size, d_in), jnp.float32, -k, k),
                jax.random.uniform(nxt(), (3 * hidden_size, hidden_size), jnp.float32, -k, k),
                jax.random.uniform(nxt(), (3 * hidden_size,), jnp.float32, -k, k),
                jax.random.uniform(nxt(), (3 * hidden_size,), jnp.float32, -k, k),
            )
        gru.append(layer)
        d_in = 2 * hidden_size
    params["gru"] = gru
    params["fc_w"] = jax.random.uniform(nxt(), (1, 2 * hidden_size), jnp.float32, -k, k)
    params["fc_b"] = jax.random.uniform(nxt(), (1,), jnp.float32, -k, k)
    return params


# ----------------------------------------------------------------------------
# Main
# ----------------------------------------------------------------------------
if __name__ == "__main__":
    HIDDEN = 32
    NUM_LAYERS = 2
    NUM_SINGERS = 4
    EMB_DIM = 8
    B, T = 2, 8

    params = init_params(jax.random.PRNGKey(42), HIDDEN, NUM_LAYERS, NUM_SINGERS, EMB_DIM)
    prepped = prepare_params(params, HIDDEN)   # one-time weight spread/fold

    key = jax.random.PRNGKey(0)
    k_seq, k_sid = jax.random.split(key)
    x_seq = jax.random.uniform(k_seq, (B, T), jnp.float32, 0.0, 1.0)
    x_sid = jax.random.randint(k_sid, (B,), 0, NUM_SINGERS, jnp.int32)

    fwd = jax.jit(functools.partial(toy_duration_predictor, prepped,
                                    hidden_size=HIDDEN, num_layers=NUM_LAYERS))
    out = fwd(x_seq, x_sid)
    jax.block_until_ready(out)

    ref = _forward_ref(params, x_seq, x_sid)
    assert out.shape == (B, T), out.shape
    max_err = float(jnp.max(jnp.abs(out - ref)))
    assert jnp.allclose(out, ref, atol=1e-4, rtol=1e-4), max_err

    print("KERNEL_OK")
</pallas_src>

<mosaic_0001>
module attributes {stable_mosaic.version = 11 : i64} {
  func.func @fused_gru_kernel(%arg0: memref<2xi32, #tpu.memory_space<smem>>, %arg1: memref<2x8xf32, #tpu.memory_space<vmem>>, %arg2: memref<1x192xf32, #tpu.memory_space<vmem>>, %arg3: memref<1x192xf32, #tpu.memory_space<vmem>>, %arg4: memref<4x192xf32, #tpu.memory_space<vmem>>, %arg5: memref<4x192xf32, #tpu.memory_space<vmem>>, %arg6: memref<64x192xf32, #tpu.memory_space<vmem>>, %arg7: memref<1x64xf32, #tpu.memory_space<vmem>>, %arg8: memref<64x192xf32, #tpu.memory_space<vmem>>, %arg9: memref<64x192xf32, #tpu.memory_space<vmem>>, %arg10: memref<1x192xf32, #tpu.memory_space<vmem>>, %arg11: memref<64x192xf32, #tpu.memory_space<vmem>>, %arg12: memref<1x64xf32, #tpu.memory_space<vmem>>, %arg13: memref<1x32xf32, #tpu.memory_space<vmem>>, %arg14: memref<1x32xf32, #tpu.memory_space<vmem>>, %arg15: memref<1x1xf32, #tpu.memory_space<vmem>>, %arg16: memref<2x8xf32, #tpu.memory_space<vmem>>, %arg17: memref<16x64xf32, #tpu.memory_space<vmem>>) attributes {dimension_semantics = [], scalar_prefetch = 0 : i64, scratch_operands = 1 : i64, tpu.core_type = #tpu.core_type<tc>} {
    %c0 = arith.constant 0 : index
    %c0_0 = arith.constant 0 : index
    %0 = vector.load %arg1[%c0, %c0_0] : memref<2x8xf32, #tpu.memory_space<vmem>>, vector<2x8xf32>
    %c0_1 = arith.constant 0 : index
    %c0_2 = arith.constant 0 : index
    %1 = vector.load %arg13[%c0_1, %c0_2] : memref<1x32xf32, #tpu.memory_space<vmem>>, vector<1x32xf32>
    %2 = vector.shape_cast %1 : vector<1x32xf32> to vector<1x32xf32>
    %3 = vector.broadcast %2 : vector<1x32xf32> to vector<2x32xf32>
    %c0_3 = arith.constant 0 : index
    %c0_4 = arith.constant 0 : index
    %4 = vector.load %arg14[%c0_3, %c0_4] : memref<1x32xf32, #tpu.memory_space<vmem>>, vector<1x32xf32>
    %5 = vector.shape_cast %4 : vector<1x32xf32> to vector<1x32xf32>
    %6 = vector.broadcast %5 : vector<1x32xf32> to vector<2x32xf32>
    %c0_5 = arith.constant 0 : index
    %7 = memref.load %arg0[%c0_5] : memref<2xi32, #tpu.memory_space<smem>>
    %8 = arith.index_cast %7 : i32 to index
    %c0_6 = arith.constant 0 : index
    %9 = vector.load %arg4[%8, %c0_6] : memref<4x192xf32, #tpu.memory_space<vmem>>, vector<1x192xf32>
    %10 = arith.index_cast %7 : i32 to index
    %c0_7 = arith.constant 0 : index
    %11 = vector.load %arg5[%10, %c0_7] : memref<4x192xf32, #tpu.memory_space<vmem>>, vector<1x192xf32>
    %c1 = arith.constant 1 : index
    %12 = memref.load %arg0[%c1] : memref<2xi32, #tpu.memory_space<smem>>
    %13 = arith.index_cast %12 : i32 to index
    %c0_8 = arith.constant 0 : index
    %14 = vector.load %arg4[%13, %c0_8] : memref<4x192xf32, #tpu.memory_space<vmem>>, vector<1x192xf32>
    %15 = arith.index_cast %12 : i32 to index
    %c0_9 = arith.constant 0 : index
    %16 = vector.load %arg5[%15, %c0_9] : memref<4x192xf32, #tpu.memory_space<vmem>>, vector<1x192xf32>
    %17 = tpu.concatenate %9, %14 in 0 : vector<1x192xf32>, vector<1x192xf32> -> vector<2x192xf32>
    %18 = tpu.concatenate %11, %16 in 0 : vector<1x192xf32>, vector<1x192xf32> -> vector<2x192xf32>
    %19 = arith.addf %17, %18 : vector<2x192xf32>
    %c0_10 = arith.constant 0 : index
    %c0_11 = arith.constant 0 : index
    %20 = vector.load %arg2[%c0_10, %c0_11] : memref<1x192xf32, #tpu.memory_space<vmem>>, vector<1x192xf32>
    %21 = vector.shape_cast %20 : vector<1x192xf32> to vector<1x192xf32>
    %22 = vector.broadcast %21 : vector<1x192xf32> to vector<2x192xf32>
    %c0_12 = arith.constant 0 : index
    %c0_13 = arith.constant 0 : index
    %23 = vector.load %arg3[%c0_12, %c0_13] : memref<1x192xf32, #tpu.memory_space<vmem>>, vector<1x192xf32>
    %24 = vector.shape_cast %23 : vector<1x192xf32> to vector<1x192xf32>
    %25 = vector.broadcast %24 : vector<1x192xf32> to vector<2x192xf32>
    %c0_14 = arith.constant 0 : index
    %c0_15 = arith.constant 0 : index
    %26 = vector.load %arg6[%c0_14, %c0_15] : memref<64x192xf32, #tpu.memory_space<vmem>>, vector<64x192xf32>
    %c0_16 = arith.constant 0 : index
    %c0_17 = arith.constant 0 : index
    %27 = vector.load %arg7[%c0_16, %c0_17] : memref<1x64xf32, #tpu.memory_space<vmem>>, vector<1x64xf32>
    %28 = vector.shape_cast %27 : vector<1x64xf32> to vector<1x64xf32>
    %29 = vector.broadcast %28 : vector<1x64xf32> to vector<2x64xf32>
    %cst = arith.constant 0.000000e+00 : f32
    %30 = vector.broadcast %cst : f32 to vector<2x64xf32>
    %31 = vector.extract_strided_slice %0 {offsets = [0, 0], sizes = [2, 1], strides = [1, 1]} : vector<2x8xf32> to vector<2x1xf32>
    %32 = vector.broadcast %31 : vector<2x1xf32> to vector<2x192xf32>
    %33 = arith.mulf %32, %22 : vector<2x192xf32>
    %34 = vector.extract_strided_slice %0 {offsets = [0, 7], sizes = [2, 1], strides = [1, 1]} : vector<2x8xf32> to vector<2x1xf32>
    %35 = vector.broadcast %34 : vector<2x1xf32> to vector<2x192xf32>
    %36 = arith.mulf %35, %25 : vector<2x192xf32>
    %37 = arith.addf %33, %36 : vector<2x192xf32>
    %38 = arith.addf %37, %19 : vector<2x192xf32>
    %cst_18 = arith.constant dense<0.000000e+00> : vector<2x192xf32>
    %39 = tpu.matmul %30, %26, %cst_18 {dimension_numbers = #tpu.dot_dimension_numbers<[1], [0], [0], [1], [0, 0, 1, 1], [], []>} : vector<2x64xf32>, vector<64x192xf32>, vector<2x192xf32> -> vector<2x192xf32>
    %40 = vector.extract_strided_slice %38 {offsets = [0, 0], sizes = [2, 128], strides = [1, 1]} : vector<2x192xf32> to vector<2x128xf32>
    %41 = vector.extract_strided_slice %39 {offsets = [0, 0], sizes = [2, 128], strides = [1, 1]} : vector<2x192xf32> to vector<2x128xf32>
    %42 = arith.addf %40, %41 : vector<2x128xf32>
    %43 = vector.extract_strided_slice %42 {offsets = [0, 0], sizes = [2, 64], strides = [1, 1]} : vector<2x128xf32> to vector<2x64xf32>
    %44 = arith.negf %43 : vector<2x64xf32>
    %45 = math.exp %44 : vector<2x64xf32>
    %cst_19 = arith.constant 1.000000e+00 : f32
    %46 = vector.broadcast %cst_19 : f32 to vector<2x64xf32>
    %47 = arith.addf %46, %45 : vector<2x64xf32>
    %48 = arith.divf %46, %47 : vector<2x64xf32>
    %49 = vector.extract_strided_slice %42 {offsets = [0, 64], sizes = [2, 64], strides = [1, 1]} : vector<2x128xf32> to vector<2x64xf32>
    %50 = arith.negf %49 : vector<2x64xf32>
    %51 = math.exp %50 : vector<2x64xf32>
    %cst_20 = arith.constant 1.000000e+00 : f32
    %52 = vector.broadcast %cst_20 : f32 to vector<2x64xf32>
    %53 = arith.addf %52, %51 : vector<2x64xf32>
    %54 = arith.divf %52, %53 : vector<2x64xf32>
    %55 = vector.extract_strided_slice %38 {offsets = [0, 128], sizes = [2, 64], strides = [1, 1]} : vector<2x192xf32> to vector<2x64xf32>
    %56 = vector.extract_strided_slice %39 {offsets = [0, 128], sizes = [2, 64], strides = [1, 1]} : vector<2x192xf32> to vector<2x64xf32>
    %57 = arith.addf %56, %29 : vector<2x64xf32>
    %58 = arith.mulf %48, %57 : vector<2x64xf32>
    %59 = arith.addf %55, %58 : vector<2x64xf32>
    %60 = math.tanh %59 : vector<2x64xf32>
    %61 = arith.subf %30, %60 : vector<2x64xf32>
    %62 = arith.mulf %54, %61 : vector<2x64xf32>
    %63 = arith.addf %60, %62 : vector<2x64xf32>
    %64 = vector.extract_strided_slice %63 {offsets = [0, 0], sizes = [2, 32], strides = [1, 1]} : vector<2x64xf32> to vector<2x32xf32>
    %c0_21 = arith.constant 0 : index
    %c0_22 = arith.constant 0 : index
    %65 = vector.load %arg17[%c0_21, %c0_22] : memref<16x64xf32, #tpu.memory_space<vmem>>, vector<2x32xf32>
    tpu.vector_store %arg17[%c0_21, %c0_22], %64 {strides = array<i32>} : memref<16x64xf32, #tpu.memory_space<vmem>>, vector<2x32xf32>,
    %66 = vector.extract_strided_slice %63 {offsets = [0, 32], sizes = [2, 32], strides = [1, 1]} : vector<2x64xf32> to vector<2x32xf32>
    %c14 = arith.constant 14 : index
    %c32 = arith.constant 32 : index
    %67 = vector.load %arg17[%c14, %c32] : memref<16x64xf32, #tpu.memory_space<vmem>>, vector<2x32xf32>
    tpu.vector_store %arg17[%c14, %c32], %66 {strides = array<i32>} : memref<16x64xf32, #tpu.memory_space<vmem>>, vector<2x32xf32>,
    %68 = vector.extract_strided_slice %0 {offsets = [0, 1], sizes = [2, 1], strides = [1, 1]} : vector<2x8xf32> to vector<2x1xf32>
    %69 = vector.broadcast %68 : vector<2x1xf32> to vector<2x192xf32>
    %70 = arith.mulf %69, %22 : vector<2x192xf32>
    %71 = vector.extract_strided_slice %0 {offsets = [0, 6], sizes = [2, 1], strides = [1, 1]} : vector<2x8xf32> to vector<2x1xf32>
    %72 = vector.broadcast %71 : vector<2x1xf32> to vector<2x192xf32>
    %73 = arith.mulf %72, %25 : vector<2x192xf32>
    %74 = arith.addf %70, %73 : vector<2x192xf32>
    %75 = arith.addf %74, %19 : vector<2x192xf32>
    %cst_23 = arith.constant dense<0.000000e+00> : vector<2x192xf32>
    %76 = tpu.matmul %63, %26, %cst_23 {dimension_numbers = #tpu.dot_dimension_numbers<[1], [0], [0], [1], [0, 0, 1, 1], [], []>} : vector<2x64xf32>, vector<64x192xf32>, vector<2x192xf32> -> vector<2x192xf32>
    %77 = vector.extract_strided_slice %75 {offsets = [0, 0], sizes = [2, 128], strides = [1, 1]} : vector<2x192xf32> to vector<2x128xf32>
    %78 = vector.extract_strided_slice %76 {offsets = [0, 0], sizes = [2, 128], strides = [1, 1]} : vector<2x192xf32> to vector<2x128xf32>
    %79 = arith.addf %77, %78 : vector<2x128xf32>
    %80 = vector.extract_strided_slice %79 {offsets = [0, 0], sizes = [2, 64], strides = [1, 1]} : vector<2x128xf32> to vector<2x64xf32>
    %81 = arith.negf %80 : vector<2x64xf32>
    %82 = math.exp %81 : vector<2x64xf32>
    %cst_24 = arith.constant 1.000000e+00 : f32
    %83 = vector.broadcast %cst_24 : f32 to vector<2x64xf32>
    %84 = arith.addf %83, %82 : vector<2x64xf32>
    %85 = arith.divf %83, %84 : vector<2x64xf32>
    %86 = vector.extract_strided_slice %79 {offsets = [0, 64], sizes = [2, 64], strides = [1, 1]} : vector<2x128xf32> to vector<2x64xf32>
    %87 = arith.negf %86 : vector<2x64xf32>
    %88 = math.exp %87 : vector<2x64xf32>
    %cst_25 = arith.constant 1.000000e+00 : f32
    %89 = vector.broadcast %cst_25 : f32 to vector<2x64xf32>
    %90 = arith.addf %89, %88 : vector<2x64xf32>
    %91 = arith.divf %89, %90 : vector<2x64xf32>
    %92 = vector.extract_strided_slice %75 {offsets = [0, 128], sizes = [2, 64], strides = [1, 1]} : vector<2x192xf32> to vector<2x64xf32>
    %93 = vector.extract_strided_slice %76 {offsets = [0, 128], sizes = [2, 64], strides = [1, 1]} : vector<2x192xf32> to vector<2x64xf32>
    %94 = arith.addf %93, %29 : vector<2x64xf32>
    %95 = arith.mulf %85, %94 : vector<2x64xf32>
    %96 = arith.addf %92, %95 : vector<2x64xf32>
    %97 = math.tanh %96 : vector<2x64xf32>
    %98 = arith.subf %63, %97 : vector<2x64xf32>
    %99 = arith.mulf %91, %98 : vector<2x64xf32>
    %100 = arith.addf %97, %99 : vector<2x64xf32>
    %101 = vector.extract_strided_slice %100 {offsets = [0, 0], sizes = [2, 32], strides = [1, 1]} : vector<2x64xf32> to vector<2x32xf32>
    %c2 = arith.constant 2 : index
    %c0_26 = arith.constant 0 : index
    %102 = vector.load %arg17[%c2, %c0_26] : memref<16x64xf32, #tpu.memory_space<vmem>>, vector<2x32xf32>
    tpu.vector_store %arg17[%c2, %c0_26], %101 {strides = array<i32>} : memref<16x64xf32, #tpu.memory_space<vmem>>, vector<2x32xf32>,
    %103 = vector.extract_strided_slice %100 {offsets = [0, 32], sizes = [2, 32], strides = [1, 1]} : vector<2x64xf32> to vector<2x32xf32>
    %c12 = arith.constant 12 : index
    %c32_27 = arith.constant 32 : index
    %104 = vector.load %arg17[%c12, %c32_27] : memref<16x64xf32, #tpu.memory_space<vmem>>, vector<2x32xf32>
    tpu.vector_store %arg17[%c12, %c32_27], %103 {strides = array<i32>} : memref<16x64xf32, #tpu.memory_space<vmem>>, vector<2x32xf32>,
    %105 = vector.extract_strided_slice %0 {offsets = [0, 2], sizes = [2, 1], strides = [1, 1]} : vector<2x8xf32> to vector<2x1xf32>
    %106 = vector.broadcast %105 : vector<2x1xf32> to vector<2x192xf32>
    %107 = arith.mulf %106, %22 : vector<2x192xf32>
    %108 = vector.extract_strided_slice %0 {offsets = [0, 5], sizes = [2, 1], strides = [1, 1]} : vector<2x8xf32> to vector<2x1xf32>
    %109 = vector.broadcast %108 : vector<2x1xf32> to vector<2x192xf32>
    %110 = arith.mulf %109, %25 : vector<2x192xf32>
    %111 = arith.addf %107, %110 : vector<2x192xf32>
    %112 = arith.addf %111, %19 : vector<2x192xf32>
    %cst_28 = arith.constant dense<0.000000e+00> : vector<2x192xf32>
    %113 = tpu.matmul %100, %26, %cst_28 {dimension_numbers = #tpu.dot_dimension_numbers<[1], [0], [0], [1], [0, 0, 1, 1], [], []>} : vector<2x64xf32>, vector<64x192xf32>, vector<2x192xf32> -> vector<2x192xf32>
    %114 = vector.extract_strided_slice %112 {offsets = [0, 0], sizes = [2, 128], strides = [1, 1]} : vector<2x192xf32> to vector<2x128xf32>
    %115 = vector.extract_strided_slice %113 {offsets = [0, 0], sizes = [2, 128], strides = [1, 1]} : vector<2x192xf32> to vector<2x128xf32>
    %116 = arith.addf %114, %115 : vector<2x128xf32>
    %117 = vector.extract_strided_slice %116 {offsets = [0, 0], sizes = [2, 64], strides = [1, 1]} : vector<2x128xf32> to vector<2x64xf32>
    %118 = arith.negf %117 : vector<2x64xf32>
    %119 = math.exp %118 : vector<2x64xf32>
    %cst_29 = arith.constant 1.000000e+00 : f32
    %120 = vector.broadcast %cst_29 : f32 to vector<2x64xf32>
    %121 = arith.addf %120, %119 : vector<2x64xf32>
    %122 = arith.divf %120, %121 : vector<2x64xf32>
    %123 = vector.extract_strided_slice %116 {offsets = [0, 64], sizes = [2, 64], strides = [1, 1]} : vector<2x128xf32> to vector<2x64xf32>
    %124 = arith.negf %123 : vector<2x64xf32>
    %125 = math.exp %124 : vector<2x64xf32>
    %cst_30 = arith.constant 1.000000e+00 : f32
    %126 = vector.broadcast %cst_30 : f32 to vector<2x64xf32>
    %127 = arith.addf %126, %125 : vector<2x64xf32>
    %128 = arith.divf %126, %127 : vector<2x64xf32>
    %129 = vector.extract_strided_slice %112 {offsets = [0, 128], sizes = [2, 64], strides = [1, 1]} : vector<2x192xf32> to vector<2x64xf32>
    %130 = vector.extract_strided_slice %113 {offsets = [0, 128], sizes = [2, 64], strides = [1, 1]} : vector<2x192xf32> to vector<2x64xf32>
    %131 = arith.addf %130, %29 : vector<2x64xf32>
    %132 = arith.mulf %122, %131 : vector<2x64xf32>
    %133 = arith.addf %129, %132 : vector<2x64xf32>
    %134 = math.tanh %133 : vector<2x64xf32>
    %135 = arith.subf %100, %134 : vector<2x64xf32>
    %136 = arith.mulf %128, %135 : vector<2x64xf32>
    %137 = arith.addf %134, %136 : vector<2x64xf32>
    %138 = vector.extract_strided_slice %137 {offsets = [0, 0], sizes = [2, 32], strides = [1, 1]} : vector<2x64xf32> to vector<2x32xf32>
    %c4 = arith.constant 4 : index
    %c0_31 = arith.constant 0 : index
    %139 = vector.load %arg17[%c4, %c0_31] : memref<16x64xf32, #tpu.memory_space<vmem>>, vector<2x32xf32>
    tpu.vector_store %arg17[%c4, %c0_31], %138 {strides = array<i32>} : memref<16x64xf32, #tpu.memory_space<vmem>>, vector<2x32xf32>,
    %140 = vector.extract_strided_slice %137 {offsets = [0, 32], sizes = [2, 32], strides = [1, 1]} : vector<2x64xf32> to vector<2x32xf32>
    %c10 = arith.constant 10 : index
    %c32_32 = arith.constant 32 : index
    %141 = vector.load %arg17[%c10, %c32_32] : memref<16x64xf32, #tpu.memory_space<vmem>>, vector<2x32xf32>
    tpu.vector_store %arg17[%c10, %c32_32], %140 {strides = array<i32>} : memref<16x64xf32, #tpu.memory_space<vmem>>, vector<2x32xf32>,
    %142 = vector.extract_strided_slice %0 {offsets = [0, 3], sizes = [2, 1], strides = [1, 1]} : vector<2x8xf32> to vector<2x1xf32>
    %143 = vector.broadcast %142 : vector<2x1xf32> to vector<2x192xf32>
    %144 = arith.mulf %143, %22 : vector<2x192xf32>
    %145 = vector.extract_strided_slice %0 {offsets = [0, 4], sizes = [2, 1], strides = [1, 1]} : vector<2x8xf32> to vector<2x1xf32>
    %146 = vector.broadcast %145 : vector<2x1xf32> to vector<2x192xf32>
    %147 = arith.mulf %146, %25 : vector<2x192xf32>
    %148 = arith.addf %144, %147 : vector<2x192xf32>
    %149 = arith.addf %148, %19 : vector<2x192xf32>
    %cst_33 = arith.constant dense<0.000000e+00> : vector<2x192xf32>
    %150 = tpu.matmul %137, %26, %cst_33 {dimension_numbers = #tpu.dot_dimension_numbers<[1], [0], [0], [1], [0, 0, 1, 1], [], []>} : vector<2x64xf32>, vector<64x192xf32>, vector<2x192xf32> -> vector<2x192xf32>
    %151 = vector.extract_strided_slice %149 {offsets = [0, 0], sizes = [2, 128], strides = [1, 1]} : vector<2x192xf32> to vector<2x128xf32>
    %152 = vector.extract_strided_slice %150 {offsets = [0, 0], sizes = [2, 128], strides = [1, 1]} : vector<2x192xf32> to vector<2x128xf32>
    %153 = arith.addf %151, %152 : vector<2x128xf32>
    %154 = vector.extract_strided_slice %153 {offsets = [0, 0], sizes = [2, 64], strides = [1, 1]} : vector<2x128xf32> to vector<2x64xf32>
    %155 = arith.negf %154 : vector<2x64xf32>
    %156 = math.exp %155 : vector<2x64xf32>
    %cst_34 = arith.constant 1.000000e+00 : f32
    %157 = vector.broadcast %cst_34 : f32 to vector<2x64xf32>
    %158 = arith.addf %157, %156 : vector<2x64xf32>
    %159 = arith.divf %157, %158 : vector<2x64xf32>
    %160 = vector.extract_strided_slice %153 {offsets = [0, 64], sizes = [2, 64], strides = [1, 1]} : vector<2x128xf32> to vector<2x64xf32>
    %161 = arith.negf %160 : vector<2x64xf32>
    %162 = math.exp %161 : vector<2x64xf32>
    %cst_35 = arith.constant 1.000000e+00 : f32
    %163 = vector.broadcast %cst_35 : f32 to vector<2x64xf32>
    %164 = arith.addf %163, %162 : vector<2x64xf32>
    %165 = arith.divf %163, %164 : vector<2x64xf32>
    %166 = vector.extract_strided_slice %149 {offsets = [0, 128], sizes = [2, 64], strides = [1, 1]} : vector<2x192xf32> to vector<2x64xf32>
    %167 = vector.extract_strided_slice %150 {offsets = [0, 128], sizes = [2, 64], strides = [1, 1]} : vector<2x192xf32> to vector<2x64xf32>
    %168 = arith.addf %167, %29 : vector<2x64xf32>
    %169 = arith.mulf %159, %168 : vector<2x64xf32>
    %170 = arith.addf %166, %169 : vector<2x64xf32>
    %171 = math.tanh %170 : vector<2x64xf32>
    %172 = arith.subf %137, %171 : vector<2x64xf32>
    %173 = arith.mulf %165, %172 : vector<2x64xf32>
    %174 = arith.addf %171, %173 : vector<2x64xf32>
    %175 = vector.extract_strided_slice %174 {offsets = [0, 0], sizes = [2, 32], strides = [1, 1]} : vector<2x64xf32> to vector<2x32xf32>
    %c6 = arith.constant 6 : index
    %c0_36 = arith.constant 0 : index
    %176 = vector.load %arg17[%c6, %c0_36] : memref<16x64xf32, #tpu.memory_space<vmem>>, vector<2x32xf32>
    tpu.vector_store %arg17[%c6, %c0_36], %175 {strides = array<i32>} : memref<16x64xf32, #tpu.memory_space<vmem>>, vector<2x32xf32>,
    %177 = vector.extract_strided_slice %174 {offsets = [0, 32], sizes = [2, 32], strides = [1, 1]} : vector<2x64xf32> to vector<2x32xf32>
    %c8 = arith.constant 8 : index
    %c32_37 = arith.constant 32 : index
    %178 = vector.load %arg17[%c8, %c32_37] : memref<16x64xf32, #tpu.memory_space<vmem>>, vector<2x32xf32>
    tpu.vector_store %arg17[%c8, %c32_37], %177 {strides = array<i32>} : memref<16x64xf32, #tpu.memory_space<vmem>>, vector<2x32xf32>,
    %179 = vector.extract_strided_slice %0 {offsets = [0, 4], sizes = [2, 1], strides = [1, 1]} : vector<2x8xf32> to vector<2x1xf32>
    %180 = vector.broadcast %179 : vector<2x1xf32> to vector<2x192xf32>
    %181 = arith.mulf %180, %22 : vector<2x192xf32>
    %182 = vector.extract_strided_slice %0 {offsets = [0, 3], sizes = [2, 1], strides = [1, 1]} : vector<2x8xf32> to vector<2x1xf32>
    %183 = vector.broadcast %182 : vector<2x1xf32> to vector<2x192xf32>
    %184 = arith.mulf %183, %25 : vector<2x192xf32>
    %185 = arith.addf %181, %184 : vector<2x192xf32>
    %186 = arith.addf %185, %19 : vector<2x192xf32>
    %cst_38 = arith.constant dense<0.000000e+00> : vector<2x192xf32>
    %187 = tpu.matmul %174, %26, %cst_38 {dimension_numbers = #tpu.dot_dimension_numbers<[1], [0], [0], [1], [0, 0, 1, 1], [], []>} : vector<2x64xf32>, vector<64x192xf32>, vector<2x192xf32> -> vector<2x192xf32>
    %188 = vector.extract_strided_slice %186 {offsets = [0, 0], sizes = [2, 128], strides = [1, 1]} : vector<2x192xf32> to vector<2x128xf32>
    %189 = vector.extract_strided_slice %187 {offsets = [0, 0], sizes = [2, 128], strides = [1, 1]} : vector<2x192xf32> to vector<2x128xf32>
    %190 = arith.addf %188, %189 : vector<2x128xf32>
    %191 = vector.extract_strided_slice %190 {offsets = [0, 0], sizes = [2, 64], strides = [1, 1]} : vector<2x128xf32> to vector<2x64xf32>
    %192 = arith.negf %191 : vector<2x64xf32>
    %193 = math.exp %192 : vector<2x64xf32>
    %cst_39 = arith.constant 1.000000e+00 : f32
    %194 = vector.broadcast %cst_39 : f32 to vector<2x64xf32>
    %195 = arith.addf %194, %193 : vector<2x64xf32>
    %196 = arith.divf %194, %195 : vector<2x64xf32>
    %197 = vector.extract_strided_slice %190 {offsets = [0, 64], sizes = [2, 64], strides = [1, 1]} : vector<2x128xf32> to vector<2x64xf32>
    %198 = arith.negf %197 : vector<2x64xf32>
    %199 = math.exp %198 : vector<2x64xf32>
    %cst_40 = arith.constant 1.000000e+00 : f32
    %200 = vector.broadcast %cst_40 : f32 to vector<2x64xf32>
    %201 = arith.addf %200, %199 : vector<2x64xf32>
    %202 = arith.divf %200, %201 : vector<2x64xf32>
    %203 = vector.extract_strided_slice %186 {offsets = [0, 128], sizes = [2, 64], strides = [1, 1]} : vector<2x192xf32> to vector<2x64xf32>
    %204 = vector.extract_strided_slice %187 {offsets = [0, 128], sizes = [2, 64], strides = [1, 1]} : vector<2x192xf32> to vector<2x64xf32>
    %205 = arith.addf %204, %29 : vector<2x64xf32>
    %206 = arith.mulf %196, %205 : vector<2x64xf32>
    %207 = arith.addf %203, %206 : vector<2x64xf32>
    %208 = math.tanh %207 : vector<2x64xf32>
    %209 = arith.subf %174, %208 : vector<2x64xf32>
    %210 = arith.mulf %202, %209 : vector<2x64xf32>
    %211 = arith.addf %208, %210 : vector<2x64xf32>
    %212 = vector.extract_strided_slice %211 {offsets = [0, 0], sizes = [2, 32], strides = [1, 1]} : vector<2x64xf32> to vector<2x32xf32>
    %c8_41 = arith.constant 8 : index
    %c0_42 = arith.constant 0 : index
    %213 = vector.load %arg17[%c8_41, %c0_42] : memref<16x64xf32, #tpu.memory_space<vmem>>, vector<2x32xf32>
    tpu.vector_store %arg17[%c8_41, %c0_42], %212 {strides = array<i32>} : memref<16x64xf32, #tpu.memory_space<vmem>>, vector<2x32xf32>,
    %214 = vector.extract_strided_slice %211 {offsets = [0, 32], sizes = [2, 32], strides = [1, 1]} : vector<2x64xf32> to vector<2x32xf32>
    %c6_43 = arith.constant 6 : index
    %c32_44 = arith.constant 32 : index
    %215 = vector.load %arg17[%c6_43, %c32_44] : memref<16x64xf32, #tpu.memory_space<vmem>>, vector<2x32xf32>
    tpu.vector_store %arg17[%c6_43, %c32_44], %214 {strides = array<i32>} : memref<16x64xf32, #tpu.memory_space<vmem>>, vector<2x32xf32>,
    %216 = vector.extract_strided_slice %0 {offsets = [0, 5], sizes = [2, 1], strides = [1, 1]} : vector<2x8xf32> to vector<2x1xf32>
    %217 = vector.broadcast %216 : vector<2x1xf32> to vector<2x192xf32>
    %218 = arith.mulf %217, %22 : vector<2x192xf32>
    %219 = vector.extract_strided_slice %0 {offsets = [0, 2], sizes = [2, 1], strides = [1, 1]} : vector<2x8xf32> to vector<2x1xf32>
    %220 = vector.broadcast %219 : vector<2x1xf32> to vector<2x192xf32>
    %221 = arith.mulf %220, %25 : vector<2x192xf32>
    %222 = arith.addf %218, %221 : vector<2x192xf32>
    %223 = arith.addf %222, %19 : vector<2x192xf32>
    %cst_45 = arith.constant dense<0.000000e+00> : vector<2x192xf32>
    %224 = tpu.matmul %211, %26, %cst_45 {dimension_numbers = #tpu.dot_dimension_numbers<[1], [0], [0], [1], [0, 0, 1, 1], [], []>} : vector<2x64xf32>, vector<64x192xf32>, vector<2x192xf32> -> vector<2x192xf32>
    %225 = vector.extract_strided_slice %223 {offsets = [0, 0], sizes = [2, 128], strides = [1, 1]} : vector<2x192xf32> to vector<2x128xf32>
    %226 = vector.extract_strided_slice %224 {offsets = [0, 0], sizes = [2, 128], strides = [1, 1]} : vector<2x192xf32> to vector<2x128xf32>
    %227 = arith.addf %225, %226 : vector<2x128xf32>
    %228 = vector.extract_strided_slice %227 {offsets = [0, 0], sizes = [2, 64], strides = [1, 1]} : vector<2x128xf32> to vector<2x64xf32>
    %229 = arith.negf %228 : vector<2x64xf32>
    %230 = math.exp %229 : vector<2x64xf32>
    %cst_46 = arith.constant 1.000000e+00 : f32
    %231 = vector.broadcast %cst_46 : f32 to vector<2x64xf32>
    %232 = arith.addf %231, %230 : vector<2x64xf32>
    %233 = arith.divf %231, %232 : vector<2x64xf32>
    %234 = vector.extract_strided_slice %227 {offsets = [0, 64], sizes = [2, 64], strides = [1, 1]} : vector<2x128xf32> to vector<2x64xf32>
    %235 = arith.negf %234 : vector<2x64xf32>
    %236 = math.exp %235 : vector<2x64xf32>
    %cst_47 = arith.constant 1.000000e+00 : f32
    %237 = vector.broadcast %cst_47 : f32 to vector<2x64xf32>
    %238 = arith.addf %237, %236 : vector<2x64xf32>
    %239 = arith.divf %237, %238 : vector<2x64xf32>
    %240 = vector.extract_strided_slice %223 {offsets = [0, 128], sizes = [2, 64], strides = [1, 1]} : vector<2x192xf32> to vector<2x64xf32>
    %241 = vector.extract_strided_slice %224 {offsets = [0, 128], sizes = [2, 64], strides = [1, 1]} : vector<2x192xf32> to vector<2x64xf32>
    %242 = arith.addf %241, %29 : vector<2x64xf32>
    %243 = arith.mulf %233, %242 : vector<2x64xf32>
    %244 = arith.addf %240, %243 : vector<2x64xf32>
    %245 = math.tanh %244 : vector<2x64xf32>
    %246 = arith.subf %211, %245 : vector<2x64xf32>
    %247 = arith.mulf %239, %246 : vector<2x64xf32>
    %248 = arith.addf %245, %247 : vector<2x64xf32>
    %249 = vector.extract_strided_slice %248 {offsets = [0, 0], sizes = [2, 32], strides = [1, 1]} : vector<2x64xf32> to vector<2x32xf32>
    %c10_48 = arith.constant 10 : index
    %c0_49 = arith.constant 0 : index
    %250 = vector.load %arg17[%c10_48, %c0_49] : memref<16x64xf32, #tpu.memory_space<vmem>>, vector<2x32xf32>
    tpu.vector_store %arg17[%c10_48, %c0_49], %249 {strides = array<i32>} : memref<16x64xf32, #tpu.memory_space<vmem>>, vector<2x32xf32>,
    %251 = vector.extract_strided_slice %248 {offsets = [0, 32], sizes = [2, 32], strides = [1, 1]} : vector<2x64xf32> to vector<2x32xf32>
    %c4_50 = arith.constant 4 : index
    %c32_51 = arith.constant 32 : index
    %252 = vector.load %arg17[%c4_50, %c32_51] : memref<16x64xf32, #tpu.memory_space<vmem>>, vector<2x32xf32>
    tpu.vector_store %arg17[%c4_50, %c32_51], %251 {strides = array<i32>} : memref<16x64xf32, #tpu.memory_space<vmem>>, vector<2x32xf32>,
    %253 = vector.extract_strided_slice %0 {offsets = [0, 6], sizes = [2, 1], strides = [1, 1]} : vector<2x8xf32> to vector<2x1xf32>
    %254 = vector.broadcast %253 : vector<2x1xf32> to vector<2x192xf32>
    %255 = arith.mulf %254, %22 : vector<2x192xf32>
    %256 = vector.extract_strided_slice %0 {offsets = [0, 1], sizes = [2, 1], strides = [1, 1]} : vector<2x8xf32> to vector<2x1xf32>
    %257 = vector.broadcast %256 : vector<2x1xf32> to vector<2x192xf32>
    %258 = arith.mulf %257, %25 : vector<2x192xf32>
    %259 = arith.addf %255, %258 : vector<2x192xf32>
    %260 = arith.addf %259, %19 : vector<2x192xf32>
    %cst_52 = arith.constant dense<0.000000e+00> : vector<2x192xf32>
    %261 = tpu.matmul %248, %26, %cst_52 {dimension_numbers = #tpu.dot_dimension_numbers<[1], [0], [0], [1], [0, 0, 1, 1], [], []>} : vector<2x64xf32>, vector<64x192xf32>, vector<2x192xf32> -> vector<2x192xf32>
    %262 = vector.extract_strided_slice %260 {offsets = [0, 0], sizes = [2, 128], strides = [1, 1]} : vector<2x192xf32> to vector<2x128xf32>
    %263 = vector.extract_strided_slice %261 {offsets = [0, 0], sizes = [2, 128], strides = [1, 1]} : vector<2x192xf32> to vector<2x128xf32>
    %264 = arith.addf %262, %263 : vector<2x128xf32>
    %265 = vector.extract_strided_slice %264 {offsets = [0, 0], sizes = [2, 64], strides = [1, 1]} : vector<2x128xf32> to vector<2x64xf32>
    %266 = arith.negf %265 : vector<2x64xf32>
    %267 = math.exp %266 : vector<2x64xf32>
    %cst_53 = arith.constant 1.000000e+00 : f32
    %268 = vector.broadcast %cst_53 : f32 to vector<2x64xf32>
    %269 = arith.addf %268, %267 : vector<2x64xf32>
    %270 = arith.divf %268, %269 : vector<2x64xf32>
    %271 = vector.extract_strided_slice %264 {offsets = [0, 64], sizes = [2, 64], strides = [1, 1]} : vector<2x128xf32> to vector<2x64xf32>
    %272 = arith.negf %271 : vector<2x64xf32>
    %273 = math.exp %272 : vector<2x64xf32>
    %cst_54 = arith.constant 1.000000e+00 : f32
    %274 = vector.broadcast %cst_54 : f32 to vector<2x64xf32>
    %275 = arith.addf %274, %273 : vector<2x64xf32>
    %276 = arith.divf %274, %275 : vector<2x64xf32>
    %277 = vector.extract_strided_slice %260 {offsets = [0, 128], sizes = [2, 64], strides = [1, 1]} : vector<2x192xf32> to vector<2x64xf32>
    %278 = vector.extract_strided_slice %261 {offsets = [0, 128], sizes = [2, 64], strides = [1, 1]} : vector<2x192xf32> to vector<2x64xf32>
    %279 = arith.addf %278, %29 : vector<2x64xf32>
    %280 = arith.mulf %270, %279 : vector<2x64xf32>
    %281 = arith.addf %277, %280 : vector<2x64xf32>
    %282 = math.tanh %281 : vector<2x64xf32>
    %283 = arith.subf %248, %282 : vector<2x64xf32>
    %284 = arith.mulf %276, %283 : vector<2x64xf32>
    %285 = arith.addf %282, %284 : vector<2x64xf32>
    %286 = vector.extract_strided_slice %285 {offsets = [0, 0], sizes = [2, 32], strides = [1, 1]} : vector<2x64xf32> to vector<2x32xf32>
    %c12_55 = arith.constant 12 : index
    %c0_56 = arith.constant 0 : index
    %287 = vector.load %arg17[%c12_55, %c0_56] : memref<16x64xf32, #tpu.memory_space<vmem>>, vector<2x32xf32>
    tpu.vector_store %arg17[%c12_55, %c0_56], %286 {strides = array<i32>} : memref<16x64xf32, #tpu.memory_space<vmem>>, vector<2x32xf32>,
    %288 = vector.extract_strided_slice %285 {offsets = [0, 32], sizes = [2, 32], strides = [1, 1]} : vector<2x64xf32> to vector<2x32xf32>
    %c2_57 = arith.constant 2 : index
    %c32_58 = arith.constant 32 : index
    %289 = vector.load %arg17[%c2_57, %c32_58] : memref<16x64xf32, #tpu.memory_space<vmem>>, vector<2x32xf32>
    tpu.vector_store %arg17[%c2_57, %c32_58], %288 {strides = array<i32>} : memref<16x64xf32, #tpu.memory_space<vmem>>, vector<2x32xf32>,
    %290 = vector.extract_strided_slice %0 {offsets = [0, 7], sizes = [2, 1], strides = [1, 1]} : vector<2x8xf32> to vector<2x1xf32>
    %291 = vector.broadcast %290 : vector<2x1xf32> to vector<2x192xf32>
    %292 = arith.mulf %291, %22 : vector<2x192xf32>
    %293 = vector.extract_strided_slice %0 {offsets = [0, 0], sizes = [2, 1], strides = [1, 1]} : vector<2x8xf32> to vector<2x1xf32>
    %294 = vector.broadcast %293 : vector<2x1xf32> to vector<2x192xf32>
    %295 = arith.mulf %294, %25 : vector<2x192xf32>
    %296 = arith.addf %292, %295 : vector<2x192xf32>
    %297 = arith.addf %296, %19 : vector<2x192xf32>
    %cst_59 = arith.constant dense<0.000000e+00> : vector<2x192xf32>
    %298 = tpu.matmul %285, %26, %cst_59 {dimension_numbers = #tpu.dot_dimension_numbers<[1], [0], [0], [1], [0, 0, 1, 1], [], []>} : vector<2x64xf32>, vector<64x192xf32>, vector<2x192xf32> -> vector<2x192xf32>
    %299 = vector.extract_strided_slice %297 {offsets = [0, 0], sizes = [2, 128], strides = [1, 1]} : vector<2x192xf32> to vector<2x128xf32>
    %300 = vector.extract_strided_slice %298 {offsets = [0, 0], sizes = [2, 128], strides = [1, 1]} : vector<2x192xf32> to vector<2x128xf32>
    %301 = arith.addf %299, %300 : vector<2x128xf32>
    %302 = vector.extract_strided_slice %301 {offsets = [0, 0], sizes = [2, 64], strides = [1, 1]} : vector<2x128xf32> to vector<2x64xf32>
    %303 = arith.negf %302 : vector<2x64xf32>
    %304 = math.exp %303 : vector<2x64xf32>
    %cst_60 = arith.constant 1.000000e+00 : f32
    %305 = vector.broadcast %cst_60 : f32 to vector<2x64xf32>
    %306 = arith.addf %305, %304 : vector<2x64xf32>
    %307 = arith.divf %305, %306 : vector<2x64xf32>
    %308 = vector.extract_strided_slice %301 {offsets = [0, 64], sizes = [2, 64], strides = [1, 1]} : vector<2x128xf32> to vector<2x64xf32>
    %309 = arith.negf %308 : vector<2x64xf32>
    %310 = math.exp %309 : vector<2x64xf32>
    %cst_61 = arith.constant 1.000000e+00 : f32
    %311 = vector.broadcast %cst_61 : f32 to vector<2x64xf32>
    %312 = arith.addf %311, %310 : vector<2x64xf32>
    %313 = arith.divf %311, %312 : vector<2x64xf32>
    %314 = vector.extract_strided_slice %297 {offsets = [0, 128], sizes = [2, 64], strides = [1, 1]} : vector<2x192xf32> to vector<2x64xf32>
    %315 = vector.extract_strided_slice %298 {offsets = [0, 128], sizes = [2, 64], strides = [1, 1]} : vector<2x192xf32> to vector<2x64xf32>
    %316 = arith.addf %315, %29 : vector<2x64xf32>
    %317 = arith.mulf %307, %316 : vector<2x64xf32>
    %318 = arith.addf %314, %317 : vector<2x64xf32>
    %319 = math.tanh %318 : vector<2x64xf32>
    %320 = arith.subf %285, %319 : vector<2x64xf32>
    %321 = arith.mulf %313, %320 : vector<2x64xf32>
    %322 = arith.addf %319, %321 : vector<2x64xf32>
    %323 = vector.extract_strided_slice %322 {offsets = [0, 0], sizes = [2, 32], strides = [1, 1]} : vector<2x64xf32> to vector<2x32xf32>
    %c14_62 = arith.constant 14 : index
    %c0_63 = arith.constant 0 : index
    %324 = vector.load %arg17[%c14_62, %c0_63] : memref<16x64xf32, #tpu.memory_space<vmem>>, vector<2x32xf32>
    tpu.vector_store %arg17[%c14_62, %c0_63], %323 {strides = array<i32>} : memref<16x64xf32, #tpu.memory_space<vmem>>, vector<2x32xf32>,
    %325 = vector.extract_strided_slice %322 {offsets = [0, 32], sizes = [2, 32], strides = [1, 1]} : vector<2x64xf32> to vector<2x32xf32>
    %c0_64 = arith.constant 0 : index
    %c32_65 = arith.constant 32 : index
    %326 = vector.load %arg17[%c0_64, %c32_65] : memref<16x64xf32, #tpu.memory_space<vmem>>, vector<2x32xf32>
    tpu.vector_store %arg17[%c0_64, %c32_65], %325 {strides = array<i32>} : memref<16x64xf32, #tpu.memory_space<vmem>>, vector<2x32xf32>,
    %c0_66 = arith.constant 0 : index
    %c0_67 = arith.constant 0 : index
    %327 = vector.load %arg17[%c0_66, %c0_67] : memref<16x64xf32, #tpu.memory_space<vmem>>, vector<16x64xf32>
    %c0_68 = arith.constant 0 : index
    %c0_69 = arith.constant 0 : index
    %328 = vector.load %arg8[%c0_68, %c0_69] : memref<64x192xf32, #tpu.memory_space<vmem>>, vector<64x192xf32>
    %cst_70 = arith.constant dense<0.000000e+00> : vector<16x192xf32>
    %329 = tpu.matmul %327, %328, %cst_70 {dimension_numbers = #tpu.dot_dimension_numbers<[1], [0], [0], [1], [0, 0, 1, 1], [], []>} : vector<16x64xf32>, vector<64x192xf32>, vector<16x192xf32> -> vector<16x192xf32>
    %c0_71 = arith.constant 0 : index
    %c0_72 = arith.constant 0 : index
    %330 = vector.load %arg10[%c0_71, %c0_72] : memref<1x192xf32, #tpu.memory_space<vmem>>, vector<1x192xf32>
    %331 = vector.broadcast %330 : vector<1x192xf32> to vector<16x192xf32>
    %332 = arith.addf %329, %331 : vector<16x192xf32>
    %c0_73 = arith.constant 0 : index
    %c0_74 = arith.constant 0 : index
    %333 = vector.load %arg9[%c0_73, %c0_74] : memref<64x192xf32, #tpu.memory_space<vmem>>, vector<64x192xf32>
    %cst_75 = arith.constant dense<0.000000e+00> : vector<16x192xf32>
    %334 = tpu.matmul %327, %333, %cst_75 {dimension_numbers = #tpu.dot_dimension_numbers<[1], [0], [0], [1], [0, 0, 1, 1], [], []>} : vector<16x64xf32>, vector<64x192xf32>, vector<16x192xf32> -> vector<16x192xf32>
    %c0_76 = arith.constant 0 : index
    %c0_77 = arith.constant 0 : index
    %335 = vector.load %arg11[%c0_76, %c0_77] : memref<64x192xf32, #tpu.memory_space<vmem>>, vector<64x192xf32>
    %c0_78 = arith.constant 0 : index
    %c0_79 = arith.constant 0 : index
    %336 = vector.load %arg12[%c0_78, %c0_79] : memref<1x64xf32, #tpu.memory_space<vmem>>, vector<1x64xf32>
    %337 = vector.shape_cast %336 : vector<1x64xf32> to vector<1x64xf32>
    %338 = vector.broadcast %337 : vector<1x64xf32> to vector<2x64xf32>
    %cst_80 = arith.constant 0.000000e+00 : f32
    %339 = vector.broadcast %cst_80 : f32 to vector<2x64xf32>
    %340 = vector.extract_strided_slice %332 {offsets = [0, 0], sizes = [2, 192], strides = [1, 1]} : vector<16x192xf32> to vector<2x192xf32>
    %341 = vector.extract_strided_slice %334 {offsets = [14, 0], sizes = [2, 192], strides = [1, 1]} : vector<16x192xf32> to vector<2x192xf32>
    %342 = arith.addf %340, %341 : vector<2x192xf32>
    %cst_81 = arith.constant dense<0.000000e+00> : vector<2x192xf32>
    %343 = tpu.matmul %339, %335, %cst_81 {dimension_numbers = #tpu.dot_dimension_numbers<[1], [0], [0], [1], [0, 0, 1, 1], [], []>} : vector<2x64xf32>, vector<64x192xf32>, vector<2x192xf32> -> vector<2x192xf32>
    %344 = vector.extract_strided_slice %342 {offsets = [0, 0], sizes = [2, 128], strides = [1, 1]} : vector<2x192xf32> to vector<2x128xf32>
    %345 = vector.extract_strided_slice %343 {offsets = [0, 0], sizes = [2, 128], strides = [1, 1]} : vector<2x192xf32> to vector<2x128xf32>
    %346 = arith.addf %344, %345 : vector<2x128xf32>
    %347 = vector.extract_strided_slice %346 {offsets = [0, 0], sizes = [2, 64], strides = [1, 1]} : vector<2x128xf32> to vector<2x64xf32>
    %348 = arith.negf %347 : vector<2x64xf32>
    %349 = math.exp %348 : vector<2x64xf32>
    %cst_82 = arith.constant 1.000000e+00 : f32
    %350 = vector.broadcast %cst_82 : f32 to vector<2x64xf32>
    %351 = arith.addf %350, %349 : vector<2x64xf32>
    %352 = arith.divf %350, %351 : vector<2x64xf32>
    %353 = vector.extract_strided_slice %346 {offsets = [0, 64], sizes = [2, 64], strides = [1, 1]} : vector<2x128xf32> to vector<2x64xf32>
    %354 = arith.negf %353 : vector<2x64xf32>
    %355 = math.exp %354 : vector<2x64xf32>
    %cst_83 = arith.constant 1.000000e+00 : f32
    %356 = vector.broadcast %cst_83 : f32 to vector<2x64xf32>
    %357 = arith.addf %356, %355 : vector<2x64xf32>
    %358 = arith.divf %356, %357 : vector<2x64xf32>
    %359 = vector.extract_strided_slice %342 {offsets = [0, 128], sizes = [2, 64], strides = [1, 1]} : vector<2x192xf32> to vector<2x64xf32>
    %360 = vector.extract_strided_slice %343 {offsets = [0, 128], sizes = [2, 64], strides = [1, 1]} : vector<2x192xf32> to vector<2x64xf32>
    %361 = arith.addf %360, %338 : vector<2x64xf32>
    %362 = arith.mulf %352, %361 : vector<2x64xf32>
    %363 = arith.addf %359, %362 : vector<2x64xf32>
    %364 = math.tanh %363 : vector<2x64xf32>
    %365 = arith.subf %339, %364 : vector<2x64xf32>
    %366 = arith.mulf %358, %365 : vector<2x64xf32>
    %367 = arith.addf %364, %366 : vector<2x64xf32>
    %368 = vector.extract_strided_slice %367 {offsets = [0, 0], sizes = [2, 32], strides = [1, 1]} : vector<2x64xf32> to vector<2x32xf32>
    %369 = arith.mulf %368, %3 : vector<2x32xf32>
    %cst_84 = arith.constant dense<0.000000e+00> : vector<2xf32>
    %370 = vector.multi_reduction <add>, %369, %cst_84 [1] : vector<2x32xf32> to vector<2xf32>
    %371 = vector.shape_cast %370 : vector<2xf32> to vector<2x1xf32>
    %372 = vector.extract_strided_slice %367 {offsets = [0, 32], sizes = [2, 32], strides = [1, 1]} : vector<2x64xf32> to vector<2x32xf32>
    %373 = arith.mulf %372, %6 : vector<2x32xf32>
    %cst_85 = arith.constant dense<0.000000e+00> : vector<2xf32>
    %374 = vector.multi_reduction <add>, %373, %cst_85 [1] : vector<2x32xf32> to vector<2xf32>
    %375 = vector.shape_cast %374 : vector<2xf32> to vector<2x1xf32>
    %376 = vector.extract_strided_slice %332 {offsets = [2, 0], sizes = [2, 192], strides = [1, 1]} : vector<16x192xf32> to vector<2x192xf32>
    %377 = vector.extract_strided_slice %334 {offsets = [12, 0], sizes = [2, 192], strides = [1, 1]} : vector<16x192xf32> to vector<2x192xf32>
    %378 = arith.addf %376, %377 : vector<2x192xf32>
    %cst_86 = arith.constant dense<0.000000e+00> : vector<2x192xf32>
    %379 = tpu.matmul %367, %335, %cst_86 {dimension_numbers = #tpu.dot_dimension_numbers<[1], [0], [0], [1], [0, 0, 1, 1], [], []>} : vector<2x64xf32>, vector<64x192xf32>, vector<2x192xf32> -> vector<2x192xf32>
    %380 = vector.extract_strided_slice %378 {offsets = [0, 0], sizes = [2, 128], strides = [1, 1]} : vector<2x192xf32> to vector<2x128xf32>
    %381 = vector.extract_strided_slice %379 {offsets = [0, 0], sizes = [2, 128], strides = [1, 1]} : vector<2x192xf32> to vector<2x128xf32>
    %382 = arith.addf %380, %381 : vector<2x128xf32>
    %383 = vector.extract_strided_slice %382 {offsets = [0, 0], sizes = [2, 64], strides = [1, 1]} : vector<2x128xf32> to vector<2x64xf32>
    %384 = arith.negf %383 : vector<2x64xf32>
    %385 = math.exp %384 : vector<2x64xf32>
    %cst_87 = arith.constant 1.000000e+00 : f32
    %386 = vector.broadcast %cst_87 : f32 to vector<2x64xf32>
    %387 = arith.addf %386, %385 : vector<2x64xf32>
    %388 = arith.divf %386, %387 : vector<2x64xf32>
    %389 = vector.extract_strided_slice %382 {offsets = [0, 64], sizes = [2, 64], strides = [1, 1]} : vector<2x128xf32> to vector<2x64xf32>
    %390 = arith.negf %389 : vector<2x64xf32>
    %391 = math.exp %390 : vector<2x64xf32>
    %cst_88 = arith.constant 1.000000e+00 : f32
    %392 = vector.broadcast %cst_88 : f32 to vector<2x64xf32>
    %393 = arith.addf %392, %391 : vector<2x64xf32>
    %394 = arith.divf %392, %393 : vector<2x64xf32>
    %395 = vector.extract_strided_slice %378 {offsets = [0, 128], sizes = [2, 64], strides = [1, 1]} : vector<2x192xf32> to vector<2x64xf32>
    %396 = vector.extract_strided_slice %379 {offsets = [0, 128], sizes = [2, 64], strides = [1, 1]} : vector<2x192xf32> to vector<2x64xf32>
    %397 = arith.addf %396, %338 : vector<2x64xf32>
    %398 = arith.mulf %388, %397 : vector<2x64xf32>
    %399 = arith.addf %395, %398 : vector<2x64xf32>
    %400 = math.tanh %399 : vector<2x64xf32>
    %401 = arith.subf %367, %400 : vector<2x64xf32>
    %402 = arith.mulf %394, %401 : vector<2x64xf32>
    %403 = arith.addf %400, %402 : vector<2x64xf32>
    %404 = vector.extract_strided_slice %403 {offsets = [0, 0], sizes = [2, 32], strides = [1, 1]} : vector<2x64xf32> to vector<2x32xf32>
    %405 = arith.mulf %404, %3 : vector<2x32xf32>
    %cst_89 = arith.constant dense<0.000000e+00> : vector<2xf32>
    %406 = vector.multi_reduction <add>, %405, %cst_89 [1] : vector<2x32xf32> to vector<2xf32>
    %407 = vector.shape_cast %406 : vector<2xf32> to vector<2x1xf32>
    %408 = vector.extract_strided_slice %403 {offsets = [0, 32], sizes = [2, 32], strides = [1, 1]} : vector<2x64xf32> to vector<2x32xf32>
    %409 = arith.mulf %408, %6 : vector<2x32xf32>
    %cst_90 = arith.constant dense<0.000000e+00> : vector<2xf32>
    %410 = vector.multi_reduction <add>, %409, %cst_90 [1] : vector<2x32xf32> to vector<2xf32>
    %411 = vector.shape_cast %410 : vector<2xf32> to vector<2x1xf32>
    %412 = vector.extract_strided_slice %332 {offsets = [4, 0], sizes = [2, 192], strides = [1, 1]} : vector<16x192xf32> to vector<2x192xf32>
    %413 = vector.extract_strided_slice %334 {offsets = [10, 0], sizes = [2, 192], strides = [1, 1]} : vector<16x192xf32> to vector<2x192xf32>
    %414 = arith.addf %412, %413 : vector<2x192xf32>
    %cst_91 = arith.constant dense<0.000000e+00> : vector<2x192xf32>
    %415 = tpu.matmul %403, %335, %cst_91 {dimension_numbers = #tpu.dot_dimension_numbers<[1], [0], [0], [1], [0, 0, 1, 1], [], []>} : vector<2x64xf32>, vector<64x192xf32>, vector<2x192xf32> -> vector<2x192xf32>
    %416 = vector.extract_strided_slice %414 {offsets = [0, 0], sizes = [2, 128], strides = [1, 1]} : vector<2x192xf32> to vector<2x128xf32>
    %417 = vector.extract_strided_slice %415 {offsets = [0, 0], sizes = [2, 128], strides = [1, 1]} : vector<2x192xf32> to vector<2x128xf32>
    %418 = arith.addf %416, %417 : vector<2x128xf32>
    %419 = vector.extract_strided_slice %418 {offsets = [0, 0], sizes = [2, 64], strides = [1, 1]} : vector<2x128xf32> to vector<2x64xf32>
    %420 = arith.negf %419 : vector<2x64xf32>
    %421 = math.exp %420 : vector<2x64xf32>
    %cst_92 = arith.constant 1.000000e+00 : f32
    %422 = vector.broadcast %cst_92 : f32 to vector<2x64xf32>
    %423 = arith.addf %422, %421 : vector<2x64xf32>
    %424 = arith.divf %422, %423 : vector<2x64xf32>
    %425 = vector.extract_strided_slice %418 {offsets = [0, 64], sizes = [2, 64], strides = [1, 1]} : vector<2x128xf32> to vector<2x64xf32>
    %426 = arith.negf %425 : vector<2x64xf32>
    %427 = math.exp %426 : vector<2x64xf32>
    %cst_93 = arith.constant 1.000000e+00 : f32
    %428 = vector.broadcast %cst_93 : f32 to vector<2x64xf32>
    %429 = arith.addf %428, %427 : vector<2x64xf32>
    %430 = arith.divf %428, %429 : vector<2x64xf32>
    %431 = vector.extract_strided_slice %414 {offsets = [0, 128], sizes = [2, 64], strides = [1, 1]} : vector<2x192xf32> to vector<2x64xf32>
    %432 = vector.extract_strided_slice %415 {offsets = [0, 128], sizes = [2, 64], strides = [1, 1]} : vector<2x192xf32> to vector<2x64xf32>
    %433 = arith.addf %432, %338 : vector<2x64xf32>
    %434 = arith.mulf %424, %433 : vector<2x64xf32>
    %435 = arith.addf %431, %434 : vector<2x64xf32>
    %436 = math.tanh %435 : vector<2x64xf32>
    %437 = arith.subf %403, %436 : vector<2x64xf32>
    %438 = arith.mulf %430, %437 : vector<2x64xf32>
    %439 = arith.addf %436, %438 : vector<2x64xf32>
    %440 = vector.extract_strided_slice %439 {offsets = [0, 0], sizes = [2, 32], strides = [1, 1]} : vector<2x64xf32> to vector<2x32xf32>
    %441 = arith.mulf %440, %3 : vector<2x32xf32>
    %cst_94 = arith.constant dense<0.000000e+00> : vector<2xf32>
    %442 = vector.multi_reduction <add>, %441, %cst_94 [1] : vector<2x32xf32> to vector<2xf32>
    %443 = vector.shape_cast %442 : vector<2xf32> to vector<2x1xf32>
    %444 = vector.extract_strided_slice %439 {offsets = [0, 32], sizes = [2, 32], strides = [1, 1]} : vector<2x64xf32> to vector<2x32xf32>
    %445 = arith.mulf %444, %6 : vector<2x32xf32>
    %cst_95 = arith.constant dense<0.000000e+00> : vector<2xf32>
    %446 = vector.multi_reduction <add>, %445, %cst_95 [1] : vector<2x32xf32> to vector<2xf32>
    %447 = vector.shape_cast %446 : vector<2xf32> to vector<2x1xf32>
    %448 = vector.extract_strided_slice %332 {offsets = [6, 0], sizes = [2, 192], strides = [1, 1]} : vector<16x192xf32> to vector<2x192xf32>
    %449 = vector.extract_strided_slice %334 {offsets = [8, 0], sizes = [2, 192], strides = [1, 1]} : vector<16x192xf32> to vector<2x192xf32>
    %450 = arith.addf %448, %449 : vector<2x192xf32>
    %cst_96 = arith.constant dense<0.000000e+00> : vector<2x192xf32>
    %451 = tpu.matmul %439, %335, %cst_96 {dimension_numbers = #tpu.dot_dimension_numbers<[1], [0], [0], [1], [0, 0, 1, 1], [], []>} : vector<2x64xf32>, vector<64x192xf32>, vector<2x192xf32> -> vector<2x192xf32>
    %452 = vector.extract_strided_slice %450 {offsets = [0, 0], sizes = [2, 128], strides = [1, 1]} : vector<2x192xf32> to vector<2x128xf32>
    %453 = vector.extract_strided_slice %451 {offsets = [0, 0], sizes = [2, 128], strides = [1, 1]} : vector<2x192xf32> to vector<2x128xf32>
    %454 = arith.addf %452, %453 : vector<2x128xf32>
    %455 = vector.extract_strided_slice %454 {offsets = [0, 0], sizes = [2, 64], strides = [1, 1]} : vector<2x128xf32> to vector<2x64xf32>
    %456 = arith.negf %455 : vector<2x64xf32>
    %457 = math.exp %456 : vector<2x64xf32>
    %cst_97 = arith.constant 1.000000e+00 : f32
    %458 = vector.broadcast %cst_97 : f32 to vector<2x64xf32>
    %459 = arith.addf %458, %457 : vector<2x64xf32>
    %460 = arith.divf %458, %459 : vector<2x64xf32>
    %461 = vector.extract_strided_slice %454 {offsets = [0, 64], sizes = [2, 64], strides = [1, 1]} : vector<2x128xf32> to vector<2x64xf32>
    %462 = arith.negf %461 : vector<2x64xf32>
    %463 = math.exp %462 : vector<2x64xf32>
    %cst_98 = arith.constant 1.000000e+00 : f32
    %464 = vector.broadcast %cst_98 : f32 to vector<2x64xf32>
    %465 = arith.addf %464, %463 : vector<2x64xf32>
    %466 = arith.divf %464, %465 : vector<2x64xf32>
    %467 = vector.extract_strided_slice %450 {offsets = [0, 128], sizes = [2, 64], strides = [1, 1]} : vector<2x192xf32> to vector<2x64xf32>
    %468 = vector.extract_strided_slice %451 {offsets = [0, 128], sizes = [2, 64], strides = [1, 1]} : vector<2x192xf32> to vector<2x64xf32>
    %469 = arith.addf %468, %338 : vector<2x64xf32>
    %470 = arith.mulf %460, %469 : vector<2x64xf32>
    %471 = arith.addf %467, %470 : vector<2x64xf32>
    %472 = math.tanh %471 : vector<2x64xf32>
    %473 = arith.subf %439, %472 : vector<2x64xf32>
    %474 = arith.mulf %466, %473 : vector<2x64xf32>
    %475 = arith.addf %472, %474 : vector<2x64xf32>
    %476 = vector.extract_strided_slice %475 {offsets = [0, 0], sizes = [2, 32], strides = [1, 1]} : vector<2x64xf32> to vector<2x32xf32>
    %477 = arith.mulf %476, %3 : vector<2x32xf32>
    %cst_99 = arith.constant dense<0.000000e+00> : vector<2xf32>
    %478 = vector.multi_reduction <add>, %477, %cst_99 [1] : vector<2x32xf32> to vector<2xf32>
    %479 = vector.shape_cast %478 : vector<2xf32> to vector<2x1xf32>
    %480 = vector.extract_strided_slice %475 {offsets = [0, 32], sizes = [2, 32], strides = [1, 1]} : vector<2x64xf32> to vector<2x32xf32>
    %481 = arith.mulf %480, %6 : vector<2x32xf32>
    %cst_100 = arith.constant dense<0.000000e+00> : vector<2xf32>
    %482 = vector.multi_reduction <add>, %481, %cst_100 [1] : vector<2x32xf32> to vector<2xf32>
    %483 = vector.shape_cast %482 : vector<2xf32> to vector<2x1xf32>
    %484 = vector.extract_strided_slice %332 {offsets = [8, 0], sizes = [2, 192], strides = [1, 1]} : vector<16x192xf32> to vector<2x192xf32>
    %485 = vector.extract_strided_slice %334 {offsets = [6, 0], sizes = [2, 192], strides = [1, 1]} : vector<16x192xf32> to vector<2x192xf32>
    %486 = arith.addf %484, %485 : vector<2x192xf32>
    %cst_101 = arith.constant dense<0.000000e+00> : vector<2x192xf32>
    %487 = tpu.matmul %475, %335, %cst_101 {dimension_numbers = #tpu.dot_dimension_numbers<[1], [0], [0], [1], [0, 0, 1, 1], [], []>} : vector<2x64xf32>, vector<64x192xf32>, vector<2x192xf32> -> vector<2x192xf32>
    %488 = vector.extract_strided_slice %486 {offsets = [0, 0], sizes = [2, 128], strides = [1, 1]} : vector<2x192xf32> to vector<2x128xf32>
    %489 = vector.extract_strided_slice %487 {offsets = [0, 0], sizes = [2, 128], strides = [1, 1]} : vector<2x192xf32> to vector<2x128xf32>
    %490 = arith.addf %488, %489 : vector<2x128xf32>
    %491 = vector.extract_strided_slice %490 {offsets = [0, 0], sizes = [2, 64], strides = [1, 1]} : vector<2x128xf32> to vector<2x64xf32>
    %492 = arith.negf %491 : vector<2x64xf32>
    %493 = math.exp %492 : vector<2x64xf32>
    %cst_102 = arith.constant 1.000000e+00 : f32
    %494 = vector.broadcast %cst_102 : f32 to vector<2x64xf32>
    %495 = arith.addf %494, %493 : vector<2x64xf32>
    %496 = arith.divf %494, %495 : vector<2x64xf32>
    %497 = vector.extract_strided_slice %490 {offsets = [0, 64], sizes = [2, 64], strides = [1, 1]} : vector<2x128xf32> to vector<2x64xf32>
    %498 = arith.negf %497 : vector<2x64xf32>
    %499 = math.exp %498 : vector<2x64xf32>
    %cst_103 = arith.constant 1.000000e+00 : f32
    %500 = vector.broadcast %cst_103 : f32 to vector<2x64xf32>
    %501 = arith.addf %500, %499 : vector<2x64xf32>
    %502 = arith.divf %500, %501 : vector<2x64xf32>
    %503 = vector.extract_strided_slice %486 {offsets = [0, 128], sizes = [2, 64], strides = [1, 1]} : vector<2x192xf32> to vector<2x64xf32>
    %504 = vector.extract_strided_slice %487 {offsets = [0, 128], sizes = [2, 64], strides = [1, 1]} : vector<2x192xf32> to vector<2x64xf32>
    %505 = arith.addf %504, %338 : vector<2x64xf32>
    %506 = arith.mulf %496, %505 : vector<2x64xf32>
    %507 = arith.addf %503, %506 : vector<2x64xf32>
    %508 = math.tanh %507 : vector<2x64xf32>
    %509 = arith.subf %475, %508 : vector<2x64xf32>
    %510 = arith.mulf %502, %509 : vector<2x64xf32>
    %511 = arith.addf %508, %510 : vector<2x64xf32>
    %512 = vector.extract_strided_slice %511 {offsets = [0, 0], sizes = [2, 32], strides = [1, 1]} : vector<2x64xf32> to vector<2x32xf32>
    %513 = arith.mulf %512, %3 : vector<2x32xf32>
    %cst_104 = arith.constant dense<0.000000e+00> : vector<2xf32>
    %514 = vector.multi_reduction <add>, %513, %cst_104 [1] : vector<2x32xf32> to vector<2xf32>
    %515 = vector.shape_cast %514 : vector<2xf32> to vector<2x1xf32>
    %516 = vector.extract_strided_slice %511 {offsets = [0, 32], sizes = [2, 32], strides = [1, 1]} : vector<2x64xf32> to vector<2x32xf32>
    %517 = arith.mulf %516, %6 : vector<2x32xf32>
    %cst_105 = arith.constant dense<0.000000e+00> : vector<2xf32>
    %518 = vector.multi_reduction <add>, %517, %cst_105 [1] : vector<2x32xf32> to vector<2xf32>
    %519 = vector.shape_cast %518 : vector<2xf32> to vector<2x1xf32>
    %520 = vector.extract_strided_slice %332 {offsets = [10, 0], sizes = [2, 192], strides = [1, 1]} : vector<16x192xf32> to vector<2x192xf32>
    %521 = vector.extract_strided_slice %334 {offsets = [4, 0], sizes = [2, 192], strides = [1, 1]} : vector<16x192xf32> to vector<2x192xf32>
    %522 = arith.addf %520, %521 : vector<2x192xf32>
    %cst_106 = arith.constant dense<0.000000e+00> : vector<2x192xf32>
    %523 = tpu.matmul %511, %335, %cst_106 {dimension_numbers = #tpu.dot_dimension_numbers<[1], [0], [0], [1], [0, 0, 1, 1], [], []>} : vector<2x64xf32>, vector<64x192xf32>, vector<2x192xf32> -> vector<2x192xf32>
    %524 = vector.extract_strided_slice %522 {offsets = [0, 0], sizes = [2, 128], strides = [1, 1]} : vector<2x192xf32> to vector<2x128xf32>
    %525 = vector.extract_strided_slice %523 {offsets = [0, 0], sizes = [2, 128], strides = [1, 1]} : vector<2x192xf32> to vector<2x128xf32>
    %526 = arith.addf %524, %525 : vector<2x128xf32>
    %527 = vector.extract_strided_slice %526 {offsets = [0, 0], sizes = [2, 64], strides = [1, 1]} : vector<2x128xf32> to vector<2x64xf32>
    %528 = arith.negf %527 : vector<2x64xf32>
    %529 = math.exp %528 : vector<2x64xf32>
    %cst_107 = arith.constant 1.000000e+00 : f32
    %530 = vector.broadcast %cst_107 : f32 to vector<2x64xf32>
    %531 = arith.addf %530, %529 : vector<2x64xf32>
    %532 = arith.divf %530, %531 : vector<2x64xf32>
    %533 = vector.extract_strided_slice %526 {offsets = [0, 64], sizes = [2, 64], strides = [1, 1]} : vector<2x128xf32> to vector<2x64xf32>
    %534 = arith.negf %533 : vector<2x64xf32>
    %535 = math.exp %534 : vector<2x64xf32>
    %cst_108 = arith.constant 1.000000e+00 : f32
    %536 = vector.broadcast %cst_108 : f32 to vector<2x64xf32>
    %537 = arith.addf %536, %535 : vector<2x64xf32>
    %538 = arith.divf %536, %537 : vector<2x64xf32>
    %539 = vector.extract_strided_slice %522 {offsets = [0, 128], sizes = [2, 64], strides = [1, 1]} : vector<2x192xf32> to vector<2x64xf32>
    %540 = vector.extract_strided_slice %523 {offsets = [0, 128], sizes = [2, 64], strides = [1, 1]} : vector<2x192xf32> to vector<2x64xf32>
    %541 = arith.addf %540, %338 : vector<2x64xf32>
    %542 = arith.mulf %532, %541 : vector<2x64xf32>
    %543 = arith.addf %539, %542 : vector<2x64xf32>
    %544 = math.tanh %543 : vector<2x64xf32>
    %545 = arith.subf %511, %544 : vector<2x64xf32>
    %546 = arith.mulf %538, %545 : vector<2x64xf32>
    %547 = arith.addf %544, %546 : vector<2x64xf32>
    %548 = vector.extract_strided_slice %547 {offsets = [0, 0], sizes = [2, 32], strides = [1, 1]} : vector<2x64xf32> to vector<2x32xf32>
    %549 = arith.mulf %548, %3 : vector<2x32xf32>
    %cst_109 = arith.constant dense<0.000000e+00> : vector<2xf32>
    %550 = vector.multi_reduction <add>, %549, %cst_109 [1] : vector<2x32xf32> to vector<2xf32>
    %551 = vector.shape_cast %550 : vector<2xf32> to vector<2x1xf32>
    %552 = vector.extract_strided_slice %547 {offsets = [0, 32], sizes = [2, 32], strides = [1, 1]} : vector<2x64xf32> to vector<2x32xf32>
    %553 = arith.mulf %552, %6 : vector<2x32xf32>
    %cst_110 = arith.constant dense<0.000000e+00> : vector<2xf32>
    %554 = vector.multi_reduction <add>, %553, %cst_110 [1] : vector<2x32xf32> to vector<2xf32>
    %555 = vector.shape_cast %554 : vector<2xf32> to vector<2x1xf32>
    %556 = vector.extract_strided_slice %332 {offsets = [12, 0], sizes = [2, 192], strides = [1, 1]} : vector<16x192xf32> to vector<2x192xf32>
    %557 = vector.extract_strided_slice %334 {offsets = [2, 0], sizes = [2, 192], strides = [1, 1]} : vector<16x192xf32> to vector<2x192xf32>
    %558 = arith.addf %556, %557 : vector<2x192xf32>
    %cst_111 = arith.constant dense<0.000000e+00> : vector<2x192xf32>
    %559 = tpu.matmul %547, %335, %cst_111 {dimension_numbers = #tpu.dot_dimension_numbers<[1], [0], [0], [1], [0, 0, 1, 1], [], []>} : vector<2x64xf32>, vector<64x192xf32>, vector<2x192xf32> -> vector<2x192xf32>
    %560 = vector.extract_strided_slice %558 {offsets = [0, 0], sizes = [2, 128], strides = [1, 1]} : vector<2x192xf32> to vector<2x128xf32>
    %561 = vector.extract_strided_slice %559 {offsets = [0, 0], sizes = [2, 128], strides = [1, 1]} : vector<2x192xf32> to vector<2x128xf32>
    %562 = arith.addf %560, %561 : vector<2x128xf32>
    %563 = vector.extract_strided_slice %562 {offsets = [0, 0], sizes = [2, 64], strides = [1, 1]} : vector<2x128xf32> to vector<2x64xf32>
    %564 = arith.negf %563 : vector<2x64xf32>
    %565 = math.exp %564 : vector<2x64xf32>
    %cst_112 = arith.constant 1.000000e+00 : f32
    %566 = vector.broadcast %cst_112 : f32 to vector<2x64xf32>
    %567 = arith.addf %566, %565 : vector<2x64xf32>
    %568 = arith.divf %566, %567 : vector<2x64xf32>
    %569 = vector.extract_strided_slice %562 {offsets = [0, 64], sizes = [2, 64], strides = [1, 1]} : vector<2x128xf32> to vector<2x64xf32>
    %570 = arith.negf %569 : vector<2x64xf32>
    %571 = math.exp %570 : vector<2x64xf32>
    %cst_113 = arith.constant 1.000000e+00 : f32
    %572 = vector.broadcast %cst_113 : f32 to vector<2x64xf32>
    %573 = arith.addf %572, %571 : vector<2x64xf32>
    %574 = arith.divf %572, %573 : vector<2x64xf32>
    %575 = vector.extract_strided_slice %558 {offsets = [0, 128], sizes = [2, 64], strides = [1, 1]} : vector<2x192xf32> to vector<2x64xf32>
    %576 = vector.extract_strided_slice %559 {offsets = [0, 128], sizes = [2, 64], strides = [1, 1]} : vector<2x192xf32> to vector<2x64xf32>
    %577 = arith.addf %576, %338 : vector<2x64xf32>
    %578 = arith.mulf %568, %577 : vector<2x64xf32>
    %579 = arith.addf %575, %578 : vector<2x64xf32>
    %580 = math.tanh %579 : vector<2x64xf32>
    %581 = arith.subf %547, %580 : vector<2x64xf32>
    %582 = arith.mulf %574, %581 : vector<2x64xf32>
    %583 = arith.addf %580, %582 : vector<2x64xf32>
    %584 = vector.extract_strided_slice %583 {offsets = [0, 0], sizes = [2, 32], strides = [1, 1]} : vector<2x64xf32> to vector<2x32xf32>
    %585 = arith.mulf %584, %3 : vector<2x32xf32>
    %cst_114 = arith.constant dense<0.000000e+00> : vector<2xf32>
    %586 = vector.multi_reduction <add>, %585, %cst_114 [1] : vector<2x32xf32> to vector<2xf32>
    %587 = vector.shape_cast %586 : vector<2xf32> to vector<2x1xf32>
    %588 = vector.extract_strided_slice %583 {offsets = [0, 32], sizes = [2, 32], strides = [1, 1]} : vector<2x64xf32> to vector<2x32xf32>
    %589 = arith.mulf %588, %6 : vector<2x32xf32>
    %cst_115 = arith.constant dense<0.000000e+00> : vector<2xf32>
    %590 = vector.multi_reduction <add>, %589, %cst_115 [1] : vector<2x32xf32> to vector<2xf32>
    %591 = vector.shape_cast %590 : vector<2xf32> to vector<2x1xf32>
    %592 = vector.extract_strided_slice %332 {offsets = [14, 0], sizes = [2, 192], strides = [1, 1]} : vector<16x192xf32> to vector<2x192xf32>
    %593 = vector.extract_strided_slice %334 {offsets = [0, 0], sizes = [2, 192], strides = [1, 1]} : vector<16x192xf32> to vector<2x192xf32>
    %594 = arith.addf %592, %593 : vector<2x192xf32>
    %cst_116 = arith.constant dense<0.000000e+00> : vector<2x192xf32>
    %595 = tpu.matmul %583, %335, %cst_116 {dimension_numbers = #tpu.dot_dimension_numbers<[1], [0], [0], [1], [0, 0, 1, 1], [], []>} : vector<2x64xf32>, vector<64x192xf32>, vector<2x192xf32> -> vector<2x192xf32>
    %596 = vector.extract_strided_slice %594 {offsets = [0, 0], sizes = [2, 128], strides = [1, 1]} : vector<2x192xf32> to vector<2x128xf32>
    %597 = vector.extract_strided_slice %595 {offsets = [0, 0], sizes = [2, 128], strides = [1, 1]} : vector<2x192xf32> to vector<2x128xf32>
    %598 = arith.addf %596, %597 : vector<2x128xf32>
    %599 = vector.extract_strided_slice %598 {offsets = [0, 0], sizes = [2, 64], strides = [1, 1]} : vector<2x128xf32> to vector<2x64xf32>
    %600 = arith.negf %599 : vector<2x64xf32>
    %601 = math.exp %600 : vector<2x64xf32>
    %cst_117 = arith.constant 1.000000e+00 : f32
    %602 = vector.broadcast %cst_117 : f32 to vector<2x64xf32>
    %603 = arith.addf %602, %601 : vector<2x64xf32>
    %604 = arith.divf %602, %603 : vector<2x64xf32>
    %605 = vector.extract_strided_slice %598 {offsets = [0, 64], sizes = [2, 64], strides = [1, 1]} : vector<2x128xf32> to vector<2x64xf32>
    %606 = arith.negf %605 : vector<2x64xf32>
    %607 = math.exp %606 : vector<2x64xf32>
    %cst_118 = arith.constant 1.000000e+00 : f32
    %608 = vector.broadcast %cst_118 : f32 to vector<2x64xf32>
    %609 = arith.addf %608, %607 : vector<2x64xf32>
    %610 = arith.divf %608, %609 : vector<2x64xf32>
    %611 = vector.extract_strided_slice %594 {offsets = [0, 128], sizes = [2, 64], strides = [1, 1]} : vector<2x192xf32> to vector<2x64xf32>
    %612 = vector.extract_strided_slice %595 {offsets = [0, 128], sizes = [2, 64], strides = [1, 1]} : vector<2x192xf32> to vector<2x64xf32>
    %613 = arith.addf %612, %338 : vector<2x64xf32>
    %614 = arith.mulf %604, %613 : vector<2x64xf32>
    %615 = arith.addf %611, %614 : vector<2x64xf32>
    %616 = math.tanh %615 : vector<2x64xf32>
    %617 = arith.subf %583, %616 : vector<2x64xf32>
    %618 = arith.mulf %610, %617 : vector<2x64xf32>
    %619 = arith.addf %616, %618 : vector<2x64xf32>
    %620 = vector.extract_strided_slice %619 {offsets = [0, 0], sizes = [2, 32], strides = [1, 1]} : vector<2x64xf32> to vector<2x32xf32>
    %621 = arith.mulf %620, %3 : vector<2x32xf32>
    %cst_119 = arith.constant dense<0.000000e+00> : vector<2xf32>
    %622 = vector.multi_reduction <add>, %621, %cst_119 [1] : vector<2x32xf32> to vector<2xf32>
    %623 = vector.shape_cast %622 : vector<2xf32> to vector<2x1xf32>
    %624 = vector.extract_strided_slice %619 {offsets = [0, 32], sizes = [2, 32], strides = [1, 1]} : vector<2x64xf32> to vector<2x32xf32>
    %625 = arith.mulf %624, %6 : vector<2x32xf32>
    %cst_120 = arith.constant dense<0.000000e+00> : vector<2xf32>
    %626 = vector.multi_reduction <add>, %625, %cst_120 [1] : vector<2x32xf32> to vector<2xf32>
    %627 = vector.shape_cast %626 : vector<2xf32> to vector<2x1xf32>
    %628 = arith.addf %371, %627 : vector<2x1xf32>
    %629 = arith.addf %407, %591 : vector<2x1xf32>
    %630 = arith.addf %443, %555 : vector<2x1xf32>
    %631 = arith.addf %479, %519 : vector<2x1xf32>
    %632 = arith.addf %515, %483 : vector<2x1xf32>
    %633 = arith.addf %551, %447 : vector<2x1xf32>
    %634 = arith.addf %587, %411 : vector<2x1xf32>
    %635 = arith.addf %623, %375 : vector<2x1xf32>
    %636 = tpu.concatenate %628, %629, %630, %631, %632, %633, %634, %635 in 1 : vector<2x1xf32>, vector<2x1xf32>, vector<2x1xf32>, vector<2x1xf32>, vector<2x1xf32>, vector<2x1xf32>, vector<2x1xf32>, vector<2x1xf32> -> vector<2x8xf32>
    %c0_121 = arith.constant 0 : index
    %c0_122 = arith.constant 0 : index
    %637 = vector.load %arg15[%c0_121, %c0_122] : memref<1x1xf32, #tpu.memory_space<vmem>>, vector<1x1xf32>
    %638 = vector.broadcast %637 : vector<1x1xf32> to vector<2x8xf32>
    %639 = arith.addf %636, %638 : vector<2x8xf32>
    %c0_123 = arith.constant 0 : index
    %c0_124 = arith.constant 0 : index
    %640 = vector.load %arg16[%c0_123, %c0_124] : memref<2x8xf32, #tpu.memory_space<vmem>>, vector<2x8xf32>
    tpu.vector_store %arg16[%c0_123, %c0_124], %639 {strides = array<i32>} : memref<2x8xf32, #tpu.memory_space<vmem>>, vector<2x8xf32>,
    return
  }
}

</mosaic_0001>

<llo_original>
// kernel: toy_duration_predictor.1
$region0: #{toy_duration_predictor.1}
  #allocation0 [shape = 'u32[]', space=smem, size = 0x4, offset = 0x4, fixed_abs, tag = 'smem constant byte address 0x4 - core index']
  #allocation1 [shape = 'u32[144,128]{1,0:T(1,128)}', space=vmem, size = 0x12000, scoped, tag = 'internal scratch']
  #allocation2 [shape = 'f32[16,64]{1,0:T(8,128)}', space=vmem, size = 0x2000, scoped, tag = 'scratch operand']
  #allocation3 [shape = 'f32[1,1]{1,0:T(1,128)S(1)}', space=vmem, size = 0x200, scoped, tag = 'scoped memory for toy_duration_predictor.1']
  %s0 = inlined_call_operand.vmem [shape: s32[2], index: 0, kind: input, shape index: {}]
  %s1 = inlined_call_operand.hbm [shape: f32[2,8], index: 1, kind: input, shape index: {}]
  %s2 = inlined_call_operand.vmem [shape: f32[1,192], index: 2, kind: input, shape index: {}]
  %s3 = inlined_call_operand.vmem [shape: f32[1,192], index: 3, kind: input, shape index: {}]
  %s4 = inlined_call_operand.hbm [shape: f32[4,192], index: 4, kind: input, shape index: {}]
  %s5 = inlined_call_operand.vmem [shape: f32[4,192], index: 5, kind: input, shape index: {}]
  %s6 = inlined_call_operand.hbm [shape: f32[64,192], index: 6, kind: input, shape index: {}]
  %s7 = inlined_call_operand.vmem [shape: f32[1,64], index: 7, kind: input, shape index: {}]
  %s8 = inlined_call_operand.hbm [shape: f32[64,192], index: 8, kind: input, shape index: {}]
  %s9 = inlined_call_operand.hbm [shape: f32[64,192], index: 9, kind: input, shape index: {}]
  %s10 = inlined_call_operand.vmem [shape: f32[1,192], index: 10, kind: input, shape index: {}]
  %s11 = inlined_call_operand.hbm [shape: f32[64,192], index: 11, kind: input, shape index: {}]
  %s12 = inlined_call_operand.vmem [shape: f32[1,64], index: 12, kind: input, shape index: {}]
  %s13 = inlined_call_operand.vmem [shape: f32[1,32], index: 13, kind: input, shape index: {}]
  %s14 = inlined_call_operand.vmem [shape: f32[1,32], index: 14, kind: input, shape index: {}]
  %s15 = inlined_call_operand.<no memory space> [shape: f32[1,1], index: 15, kind: input, shape index: {}]
  %s16 = inlined_call_operand.hbm [shape: f32[2,8], index: 16, kind: output, shape index: {}]
  %s17 = sld [smem:[#allocation0]]
  $region102: #{toy_duration_predictor.1} parent=0
    _
  %s19 = ssub.s32 1, %s17
  %s20 = scalar_select 0, %s19, %s17
  %v21 = vstv %s15
  %22 = vst [vmem:[#allocation3] sm:$0x1] %v21
  $region1: #{toy_duration_predictor.1} parent=0
    #allocation4 [shape = 'u8[512]{0}', space=smem, size = 0x200, scoped, tag = 'input window, operand 0, single buffered']
    #allocation5 [shape = 's32[1]{0}', space=sflag, size = 0x4, scoped, tag = 'scoped memory for toy_duration_predictor.1']
    #allocation6 [shape = 's32[1]{0}', space=sflag, size = 0x4, scoped, tag = 'scoped memory for toy_duration_predictor.1']
    #allocation7 [shape = 's32[1]{0}', space=sflag, size = 0x4, scoped, tag = 'scoped memory for toy_duration_predictor.1']
    #allocation8 [shape = 'u8[1024]{0}', space=vmem, size = 0x400, scoped, tag = 'input window, operand 1, single buffered']
    #allocation9 [shape = 'u8[4096]{0}', space=vmem, size = 0x1000, scoped, tag = 'input window, operand 4, single buffered']
    #allocation10 [shape = 's32[1]{0}', space=sflag, size = 0x4, scoped, tag = 'scoped memory for toy_duration_predictor.1']
    #allocation11 [shape = 'u8[65536]{0}', space=vmem, size = 0x10000, scoped, tag = 'input window, operand 6, single buffered']
    #allocation12 [shape = 'u8[65536]{0}', space=vmem, size = 0x10000, scoped, tag = 'input window, operand 8, single buffered']
    #allocation13 [shape = 's32[1]{0}', space=sflag, size = 0x4, scoped, tag = 'scoped memory for toy_duration_predictor.1']
    #allocation14 [shape = 'u8[65536]{0}', space=vmem, size = 0x10000, scoped, tag = 'input window, operand 9, single buffered']
    #allocation15 [shape = 'u8[65536]{0}', space=vmem, size = 0x10000, scoped, tag = 'input window, operand 11, single buffered']
    #allocation16 [shape = 's32[1]{0}', space=sflag, size = 0x4, scoped, tag = 'scoped memory for toy_duration_predictor.1']
    #allocation17 [shape = 'u8[1024]{0}', space=vmem, size = 0x400, scoped, tag = 'output window, operand 0, single buffered']
    %23 = vsyncpa [#allocation7], 0
    %24 = vsyncpa [#allocation5], 0
    %25 = vsyncpa [#allocation10], 0
    %26 = vsyncpa [#allocation13], 0
    %27 = vsyncpa [#allocation16], 0
    %28 = vsyncpa [#allocation6], 0
    // Predicated region
    $region2: #{toy_duration_predictor.1} parent=1 // pred_check
      _
    $region3: #{toy_duration_predictor.1} parent=1 // pred_check_branch
      %30 = sbr.rel (0) target = $region5
    $region4: #{toy_duration_predictor.1} parent=1 // pred_region
      %s32 = ssub.s32 16, 16
      %33 = vsyncadd [#allocation7], %s32
      %s35 = sshll.u32 %s0, 4
      %s36 = int_to_ptr.vmem [resolvable:$true] %s35
      %38 = dma.vmem_to_smem %s36, 16, [#allocation4], [#allocation7]
    $region5: #{toy_duration_predictor.1} parent=1 // pred_fallthru
      _
    // Predicated region
    $region6: #{toy_duration_predictor.1} parent=1 // pred_check
      _
    $region7: #{toy_duration_predictor.1} parent=1 // pred_check_branch
      %40 = sbr.rel (0) target = $region9
    $region8: #{toy_duration_predictor.1} parent=1 // pred_region
      %s42 = ssub.s32 32, 32
      %43 = vsyncadd [#allocation5], %s42
      %s45 = sshll.u32 [#allocation8], 4
      %s46 = int_to_ptr.vmem [resolvable:$true] %s45
      %48 = dma.hbm_to_vmem [thread:$0]  %s1, 32, %s46, [#allocation5]
    $region9: #{toy_duration_predictor.1} parent=1 // pred_fallthru
      _
    // Predicated region
    $region10: #{toy_duration_predictor.1} parent=1 // pred_check
      _
    $region11: #{toy_duration_predictor.1} parent=1 // pred_check_branch
      %50 = sbr.rel (0) target = $region13
    $region12: #{toy_duration_predictor.1} parent=1 // pred_region
      _
    $region13: #{toy_duration_predictor.1} parent=1 // pred_fallthru
      _
    // Predicated region
    $region14: #{toy_duration_predictor.1} parent=1 // pred_check
      _
    $region15: #{toy_duration_predictor.1} parent=1 // pred_check_branch
      %52 = sbr.rel (0) target = $region17
    $region16: #{toy_duration_predictor.1} parent=1 // pred_region
      _
    $region17: #{toy_duration_predictor.1} parent=1 // pred_fallthru
      _
    // Predicated region
    $region18: #{toy_duration_predictor.1} parent=1 // pred_check
      _
    $region19: #{toy_duration_predictor.1} parent=1 // pred_check_branch
      %54 = sbr.rel (0) target = $region21
    $region20: #{toy_duration_predictor.1} parent=1 // pred_region
      %s56 = ssub.s32 128, 128
      %57 = vsyncadd [#allocation10], %s56
      %s59 = sshll.u32 [#allocation9], 4
      %s60 = int_to_ptr.vmem [resolvable:$true] %s59
      %62 = dma.hbm_to_vmem [thread:$0]  %s4, 128, %s60, [#allocation10]
    $region21: #{toy_duration_predictor.1} parent=1 // pred_fallthru
      _
    // Predicated region
    $region22: #{toy_duration_predictor.1} parent=1 // pred_check
      _
    $region23: #{toy_duration_predictor.1} parent=1 // pred_check_branch
      %64 = sbr.rel (0) target = $region25
    $region24: #{toy_duration_predictor.1} parent=1 // pred_region
      _
    $region25: #{toy_duration_predictor.1} parent=1 // pred_fallthru
      _
    // Predicated region
    $region26: #{toy_duration_predictor.1} parent=1 // pred_check
      _
    $region27: #{toy_duration_predictor.1} parent=1 // pred_check_branch
      %66 = sbr.rel (0) target = $region29
    $region28: #{toy_duration_predictor.1} parent=1 // pred_region
      %s68 = ssub.s32 2048, 2048
      %69 = vsyncadd [#allocation10], %s68
      %s70 = sshll.u32 [#allocation11], 4
      %s71 = int_to_ptr.vmem [resolvable:$true] %s70
      %76 = dma.hbm_to_vmem [thread:$0]  %s6, 2048, %s71, [#allocation10], 256, 256, 16
    $region29: #{toy_duration_predictor.1} parent=1 // pred_fallthru
      _
    // Predicated region
    $region30: #{toy_duration_predictor.1} parent=1 // pred_check
      _
    $region31: #{toy_duration_predictor.1} parent=1 // pred_check_branch
      %78 = sbr.rel (0) target = $region33
    $region32: #{toy_duration_predictor.1} parent=1 // pred_region
      _
    $region33: #{toy_duration_predictor.1} parent=1 // pred_fallthru
      _
    // Predicated region
    $region34: #{toy_duration_predictor.1} parent=1 // pred_check
      _
    $region35: #{toy_duration_predictor.1} parent=1 // pred_check_branch
      %80 = sbr.rel (0) target = $region37
    $region36: #{toy_duration_predictor.1} parent=1 // pred_region
      %s82 = ssub.s32 2048, 2048
      %83 = vsyncadd [#allocation13], %s82
      %s84 = sshll.u32 [#allocation12], 4
      %s85 = int_to_ptr.vmem [resolvable:$true] %s84
      %90 = dma.hbm_to_vmem [thread:$0]  %s8, 2048, %s85, [#allocation13], 256, 256, 16
    $region37: #{toy_duration_predictor.1} parent=1 // pred_fallthru
      _
    // Predicated region
    $region38: #{toy_duration_predictor.1} parent=1 // pred_check
      _
    $region39: #{toy_duration_predictor.1} parent=1 // pred_check_branch
      %92 = sbr.rel (0) target = $region41
    $region40: #{toy_duration_predictor.1} parent=1 // pred_region
      %s94 = ssub.s32 2048, 2048
      %95 = vsyncadd [#allocation13], %s94
      %s96 = sshll.u32 [#allocation14], 4
      %s97 = int_to_ptr.vmem [resolvable:$true] %s96
      %102 = dma.hbm_to_vmem [thread:$0]  %s9, 2048, %s97, [#allocation13], 256, 256, 16
    $region41: #{toy_duration_predictor.1} parent=1 // pred_fallthru
      _
    // Predicated region
    $region42: #{toy_duration_predictor.1} parent=1 // pred_check
      _
    $region43: #{toy_duration_predictor.1} parent=1 // pred_check_branch
      %104 = sbr.rel (0) target = $region45
    $region44: #{toy_duration_predictor.1} parent=1 // pred_region
      _
    $region45: #{toy_duration_predictor.1} parent=1 // pred_fallthru
      _
    // Predicated region
    $region46: #{toy_duration_predictor.1} parent=1 // pred_check
      _
    $region47: #{toy_duration_predictor.1} parent=1 // pred_check_branch
      %106 = sbr.rel (0) target = $region49
    $region48: #{toy_duration_predictor.1} parent=1 // pred_region
      %s108 = ssub.s32 2048, 2048
      %109 = vsyncadd [#allocation16], %s108
      %s110 = sshll.u32 [#allocation15], 4
      %s111 = int_to_ptr.vmem [resolvable:$true] %s110
      %116 = dma.hbm_to_vmem [thread:$0]  %s11, 2048, %s111, [#allocation16], 256, 256, 16
    $region49: #{toy_duration_predictor.1} parent=1 // pred_fallthru
      _
    // Predicated region
    $region50: #{toy_duration_predictor.1} parent=1 // pred_check
      _
    $region51: #{toy_duration_predictor.1} parent=1 // pred_check_branch
      %118 = sbr.rel (0) target = $region53
    $region52: #{toy_duration_predictor.1} parent=1 // pred_region
      _
    $region53: #{toy_duration_predictor.1} parent=1 // pred_fallthru
      _
    // Predicated region
    $region54: #{toy_duration_predictor.1} parent=1 // pred_check
      _
    $region55: #{toy_duration_predictor.1} parent=1 // pred_check_branch
      %120 = sbr.rel (0) target = $region57
    $region56: #{toy_duration_predictor.1} parent=1 // pred_region
      _
    $region57: #{toy_duration_predictor.1} parent=1 // pred_fallthru
      _
    // Predicated region
    $region58: #{toy_duration_predictor.1} parent=1 // pred_check
      _
    $region59: #{toy_duration_predictor.1} parent=1 // pred_check_branch
      %122 = sbr.rel (0) target = $region61
    $region60: #{toy_duration_predictor.1} parent=1 // pred_region
      _
    $region61: #{toy_duration_predictor.1} parent=1 // pred_fallthru
      _
    // Predicated region
    $region62: #{toy_duration_predictor.1} parent=1 // pred_check
      _
    $region63: #{toy_duration_predictor.1} parent=1 // pred_check_branch
      %124 = sbr.rel (0) target = $region65
    $region64: #{toy_duration_predictor.1} parent=1 // pred_region
      _
    $region65: #{toy_duration_predictor.1} parent=1 // pred_fallthru
      _
    // Predicated region
    $region66: #{toy_duration_predictor.1} parent=1 // pred_check
      _
    $region67: #{toy_duration_predictor.1} parent=1 // pred_check_branch
      %126 = sbr.rel (0) target = $region69
    $region68: #{toy_duration_predictor.1} parent=1 // pred_region
      %127 = dma.done [#allocation7], 16
    $region69: #{toy_duration_predictor.1} parent=1 // pred_fallthru
      _
    // Predicated region
    $region70: #{toy_duration_predictor.1} parent=1 // pred_check
      _
    $region71: #{toy_duration_predictor.1} parent=1 // pred_check_branch
      %129 = sbr.rel (0) target = $region73
    $region72: #{toy_duration_predictor.1} parent=1 // pred_region
      %130 = dma.done [#allocation5], 32
    $region73: #{toy_duration_predictor.1} parent=1 // pred_fallthru
      _
    // Predicated region
    $region74: #{toy_duration_predictor.1} parent=1 // pred_check
      _
    $region75: #{toy_duration_predictor.1} parent=1 // pred_check_branch
      %132 = sbr.rel (0) target = $region77
    $region76: #{toy_duration_predictor.1} parent=1 // pred_region
      %133 = dma.done [#allocation10], 128
    $region77: #{toy_duration_predictor.1} parent=1 // pred_fallthru
      _
    // Predicated region
    $region78: #{toy_duration_predictor.1} parent=1 // pred_check
      _
    $region79: #{toy_duration_predictor.1} parent=1 // pred_check_branch
      %135 = sbr.rel (0) target = $region81
    $region80: #{toy_duration_predictor.1} parent=1 // pred_region
      %136 = dma.done [#allocation10], 2048
    $region81: #{toy_duration_predictor.1} parent=1 // pred_fallthru
      _
    // Predicated region
    $region82: #{toy_duration_predictor.1} parent=1 // pred_check
      _
    $region83: #{toy_duration_predictor.1} parent=1 // pred_check_branch
      %138 = sbr.rel (0) target = $region85
    $region84: #{toy_duration_predictor.1} parent=1 // pred_region
      %139 = dma.done [#allocation13], 2048
    $region85: #{toy_duration_predictor.1} parent=1 // pred_fallthru
      _
    // Predicated region
    $region86: #{toy_duration_predictor.1} parent=1 // pred_check
      _
    $region87: #{toy_duration_predictor.1} parent=1 // pred_check_branch
      %141 = sbr.rel (0) target = $region89
    $region88: #{toy_duration_predictor.1} parent=1 // pred_region
      %142 = dma.done [#allocation13], 2048
    $region89: #{toy_duration_predictor.1} parent=1 // pred_fallthru
      _
    // Predicated region
    $region90: #{toy_duration_predictor.1} parent=1 // pred_check
      _
    $region91: #{toy_duration_predictor.1} parent=1 // pred_check_branch
      %144 = sbr.rel (0) target = $region93
    $region92: #{toy_duration_predictor.1} parent=1 // pred_region
      %145 = dma.done [#allocation16], 2048
    $region93: #{toy_duration_predictor.1} parent=1 // pred_fallthru
      _
    %146 = sfence
    %v147 = vld [vmem:[#allocation8] sm:$0x3]
    %v148 = vld [vmem:[%s13] sm:$0x1]
    %v150 = vlaneseq
    %v151 = vshrl.u32 %v150, 7
    %v152 = vsub.s32 0, %v151
    %v153 = vrot.slane %v148, %v152
    %v155 = vld [vmem:[%s14] sm:$0x1]
    %v157 = vlaneseq
    %v158 = vshrl.u32 %v157, 7
    %v159 = vsub.s32 0, %v158
    %v160 = vrot.slane %v155, %v159
    %s161 = sld [smem:[#allocation4]]
    %s162 = sshra.s32 %s161, 2
    %s163 = sand.u32 %s161, 3
    %s164 = sshra.s32 %s161, 2
    %s165 = sand.u32 %s161, 3
    %s166 = smul.u32 %s162, 2
    %s167 = smul.u32 %s166, 4
    %s168 = sadd.s32 %s167, %s165
    %s169 = scalar_lea.vmem [#allocation9], %s168
    %v170 = vld [vmem:[%s169] ss:$4 sm:$0x3]
    %s171 = scalar_lea.vmem %s5, %s168
    %v172 = vld [vmem:[%s171] ss:$4 sm:$0x3]
    %s173 = sld [smem:[#allocation4 + $0x1]]
    %s174 = sshra.s32 %s173, 2
    %s175 = sand.u32 %s173, 3
    %s176 = sshra.s32 %s173, 2
    %s177 = sand.u32 %s173, 3
    %s178 = smul.u32 %s174, 2
    %s179 = smul.u32 %s178, 4
    %s180 = sadd.s32 %s179, %s177
    %s181 = scalar_lea.vmem [#allocation9], %s180
    %v182 = vld [vmem:[%s181] ss:$4 sm:$0x3]
    %s183 = scalar_lea.vmem %s5, %s180
    %v184 = vld [vmem:[%s183] ss:$4 sm:$0x3]
    %v186 = vlaneseq
    %v187 = vshrl.u32 %v186, 7
    %v188 = vsub.s32 0, %v187
    %v189 = vrot.slane %v170, %v188
    %v190 = vlaneseq
    %v191 = vshrl.u32 %v190, 7
    %v192 = vsub.s32 1, %v191
    %v193 = vrot.slane %v170, %v192
    %v197 = vlaneseq
    %v198 = vshrl.u32 %v197, 7
    %v199 = vsub.s32 0, %v198
    %v200 = vrot.slane %v182, %v199
    %v201 = vlaneseq
    %v202 = vshrl.u32 %v201, 7
    %v203 = vsub.s32 1, %v202
    %v204 = vrot.slane %v182, %v203
    %vm207 = vcmask 1040384
    %v208 = vsel %vm207, %v189, %v200
    %v209 = vsel %vm207, %v193, %v204
    %v211 = vlaneseq
    %v212 = vshrl.u32 %v211, 7
    %v213 = vsub.s32 0, %v212
    %v214 = vrot.slane %v172, %v213
    %v215 = vlaneseq
    %v216 = vshrl.u32 %v215, 7
    %v217 = vsub.s32 1, %v216
    %v218 = vrot.slane %v172, %v217
    %v222 = vlaneseq
    %v223 = vshrl.u32 %v222, 7
    %v224 = vsub.s32 0, %v223
    %v225 = vrot.slane %v184, %v224
    %v226 = vlaneseq
    %v227 = vshrl.u32 %v226, 7
    %v228 = vsub.s32 1, %v227
    %v229 = vrot.slane %v184, %v228
    %v232 = vsel %vm207, %v214, %v225
    %v233 = vsel %vm207, %v218, %v229
    %v234 = vadd.f32 %v208, %v232
    %v235 = vadd.f32 %v209, %v233
    %v236 = vld [vmem:[%s2] sm:$0x3]
    %v238 = vlaneseq
    %v239 = vshrl.u32 %v238, 7
    %v240 = vsub.s32 0, %v239
    %v241 = vrot.slane %v236, %v240
    %v242 = vlaneseq
    %v243 = vshrl.u32 %v242, 7
    %v244 = vsub.s32 1, %v243
    %v245 = vrot.slane %v236, %v244
    %v248 = vld [vmem:[%s3] sm:$0x3]
    %v250 = vlaneseq
    %v251 = vshrl.u32 %v250, 7
    %v252 = vsub.s32 0, %v251
    %v253 = vrot.slane %v248, %v252
    %v254 = vlaneseq
    %v255 = vshrl.u32 %v254, 7
    %v256 = vsub.s32 1, %v255
    %v257 = vrot.slane %v248, %v256
    %v260 = vld [vmem:[#allocation11] sm:$0xff]
    %v261 = vld [vmem:[#allocation11 + $0x8] sm:$0xff]
    %v262 = vld [vmem:[#allocation11 + $0x10] sm:$0xff]
    %v263 = vld [vmem:[#allocation11 + $0x18] sm:$0xff]
    %v264 = vld [vmem:[#allocation11 + $0x20] sm:$0xff]
    %v265 = vld [vmem:[#allocation11 + $0x28] sm:$0xff]
    %v266 = vld [vmem:[#allocation11 + $0x30] sm:$0xff]
    %v267 = vld [vmem:[#allocation11 + $0x38] sm:$0xff]
    %v268 = vld [vmem:[#allocation11 + $0x40] sm:$0xff]
    %v269 = vld [vmem:[#allocation11 + $0x48] sm:$0xff]
    %v270 = vld [vmem:[#allocation11 + $0x50] sm:$0xff]
    %v271 = vld [vmem:[#allocation11 + $0x58] sm:$0xff]
    %v272 = vld [vmem:[#allocation11 + $0x60] sm:$0xff]
    %v273 = vld [vmem:[#allocation11 + $0x68] sm:$0xff]
    %v274 = vld [vmem:[#allocation11 + $0x70] sm:$0xff]
    %v275 = vld [vmem:[#allocation11 + $0x78] sm:$0xff]
    %v276 = vld [vmem:[%s7] sm:$0x1]
    %v278 = vlaneseq
    %v279 = vshrl.u32 %v278, 7
    %v280 = vsub.s32 0, %v279
    %v281 = vrot.slane %v276, %v280
    %284 = vset.pattern.permute.xlu0 0
    %285 = vperm.xlu0 %284, %v147
    %v286 = vpop.permute.xlu0 %285
    %v288 = vmul.f32 %v286, %v241
    %v289 = vmul.f32 %v286, %v245
    %290 = vset.pattern.permute.xlu0 7
    %291 = vperm.xlu0 %290, %v147
    %v292 = vpop.permute.xlu0 %291
    %v294 = vmul.f32 %v292, %v253
    %v295 = vmul.f32 %v292, %v257
    %v296 = vadd.f32 %v288, %v294
    %v297 = vadd.f32 %v289, %v295
    %v298 = vadd.f32 %v296, %v234
    %v299 = vadd.f32 %v297, %v235
    %vm300 = vcmask 523264
    %v302 = vsel %vm300, 0.0, 0
    %304 = vmatprep.subr.mxu0 %v261
    %305 = vmatpush1.msra.mxu0 %v260
    %306 = vmatprep.subr.mxu0 %v263
    %307 = vmatpush1.msra.mxu0 %v262
    %308 = vmatprep.subr.mxu0 %v265
    %309 = vmatpush1.msra.mxu0 %v264
    %310 = vmatprep.subr.mxu0 %v267
    %311 = vmatpush1.msra.mxu0 %v266
    %312 = vmatprep.subr.mxu0 %v269
    %313 = vmatpush1.msra.mxu0 %v268
    %314 = vmatprep.subr.mxu0 %v271
    %315 = vmatpush1.msra.mxu0 %v270
    %316 = vmatprep.subr.mxu0 %v273
    %317 = vmatpush1.msra.mxu0 %v272
    %318 = vmatprep.subr.mxu0 %v275
    %319 = vmatpush1.msra.mxu0 %v274
    %320 = vmatprep.subr.mxu0 0.0
    %321 = vmatpush1.msra.mxu0 0.0
    %322 = vmatprep.subr.mxu0 0.0
    %323 = vmatpush1.msra.mxu0 0.0
    %324 = vmatprep.subr.mxu0 0.0
    %325 = vmatpush1.msra.mxu0 0.0
    %326 = vmatprep.subr.mxu0 0.0
    %327 = vmatpush1.msra.mxu0 0.0
    %328 = vmatprep.subr.mxu0 0.0
    %329 = vmatpush1.msra.mxu0 0.0
    %330 = vmatprep.subr.mxu0 0.0
    %331 = vmatpush1.msra.mxu0 0.0
    %332 = vmatprep.subr.mxu0 0.0
    %333 = vmatpush1.msra.mxu0 0.0
    %334 = vmatprep.subr.mxu0 0.0
    %335 = vmatpush1.msra.mxu0 0.0
    %336 = vmatprep.subr.mxu0 0.0
    %337 = vmatpush1.msra.mxu0 0.0
    %338 = vmatprep.subr.mxu0 0.0
    %339 = vmatpush1.msra.mxu0 0.0
    %340 = vmatprep.subr.mxu0 0.0
    %341 = vmatpush1.msra.mxu0 0.0
    %342 = vmatprep.subr.mxu0 0.0
    %343 = vmatpush1.msra.mxu0 0.0
    %344 = vmatprep.subr.mxu0 0.0
    %345 = vmatpush1.msra.mxu0 0.0
    %346 = vmatprep.subr.mxu0 0.0
    %347 = vmatpush1.msra.mxu0 0.0
    %348 = vmatprep.subr.mxu0 0.0
    %349 = vmatpush1.msra.mxu0 0.0
    %350 = vmatprep.subr.mxu0 0.0
    %351 = vmatpush1.msra.mxu0 0.0
    %352 = vmatprep.subr.mxu0 0.0
    %353 = vmatpush1.msra.mxu0 0.0
    %354 = vmatprep.subr.mxu0 0.0
    %355 = vmatpush1.msra.mxu0 0.0
    %356 = vmatprep.subr.mxu0 0.0
    %357 = vmatpush1.msra.mxu0 0.0
    %358 = vmatprep.subr.mxu0 0.0
    %359 = vmatpush1.msra.mxu0 0.0
    %360 = vmatprep.subr.mxu0 0.0
    %361 = vmatpush1.msra.mxu0 0.0
    %362 = vmatprep.subr.mxu0 0.0
    %363 = vmatpush1.msra.mxu0 0.0
    %364 = vmatprep.subr.mxu0 0.0
    %365 = vmatpush1.msra.mxu0 0.0
    %366 = vmatprep.subr.mxu0 0.0
    %367 = vmatpush1.msra.mxu0 0.0
    %368 = vmatprep.mubr.f32.mxu0 0.0
    %369 = vmatmul.mubr.f32.gmra.mrb[0].mxu0 %v302
    %v370 = vpop.f32.mrb[0].mxu0
    %v371 = vadd.f32 0.0, %v370
    %v372 = vpop.f32.mrb[0].mxu0
    %v373 = vadd.f32 0.0, %v372
    %374 = vdwg.mxu0
    %v375 = vadd.f32 %v298, %v371
    %v376 = vxor.u32 %v375, 2147483648
    %v377 = vmul.f32 %v376, 1.442695
    %v378 = vpow.pop %v377
    %v379 = vadd.f32 %v378, 1.0
    %v380 = vrcp.pop %v379
    %v381 = vmul.f32 1.0, %v380
    %v382 = vadd.f32 %v373, %v281
    %v383 = vmul.f32 %v381, %v382
    %v384 = vadd.f32 %v299, %v383
    %v385 = vtanh.pop %v384
    %v386 = vsub.f32 0.0, %v385
    %388 = vrot.lane.b32.xlu0 %v386, 64
    %v389 = vpop.permute.xlu0 %388
    %v391 = vmul.f32 %v381, %v389
    %393 = vrot.lane.b32.xlu0 %v391, 64
    %v394 = vpop.permute.xlu0 %393
    %v396 = vadd.f32 %v385, %v394
    %vm397 = vcmask 254976
    %398 = vst.msk [vmem:[#allocation2] sm:$0x3] %vm397, %v396
    %vm399 = vcmask 517376
    %400 = vst.msk [vmem:[#allocation2 + $0xe] sm:$0x3] %vm399, %v396
    %401 = vset.pattern.permute.xlu0 1
    %402 = vperm.xlu0 %401, %v147
    %v403 = vpop.permute.xlu0 %402
    %v405 = vmul.f32 %v403, %v241
    %v406 = vmul.f32 %v403, %v245
    %407 = vset.pattern.permute.xlu0 6
    %408 = vperm.xlu0 %407, %v147
    %v409 = vpop.permute.xlu0 %408
    %v411 = vmul.f32 %v409, %v253
    %v412 = vmul.f32 %v409, %v257
    %v413 = vadd.f32 %v405, %v411
    %v414 = vadd.f32 %v406, %v412
    %v415 = vadd.f32 %v413, %v234
    %v416 = vadd.f32 %v414, %v235
    %v418 = vsel %vm300, %v396, 0
    %420 = vmatprep.subr.mxu0 %v261
    %421 = vmatpush1.msra.mxu0 %v260
    %422 = vmatprep.subr.mxu0 %v263
    %423 = vmatpush1.msra.mxu0 %v262
    %424 = vmatprep.subr.mxu0 %v265
    %425 = vmatpush1.msra.mxu0 %v264
    %426 = vmatprep.subr.mxu0 %v267
    %427 = vmatpush1.msra.mxu0 %v266
    %428 = vmatprep.subr.mxu0 %v269
    %429 = vmatpush1.msra.mxu0 %v268
    %430 = vmatprep.subr.mxu0 %v271
    %431 = vmatpush1.msra.mxu0 %v270
    %432 = vmatprep.subr.mxu0 %v273
    %433 = vmatpush1.msra.mxu0 %v272
    %434 = vmatprep.subr.mxu0 %v275
    %435 = vmatpush1.msra.mxu0 %v274
    %436 = vmatprep.subr.mxu0 0.0
    %437 = vmatpush1.msra.mxu0 0.0
    %438 = vmatprep.subr.mxu0 0.0
    %439 = vmatpush1.msra.mxu0 0.0
    %440 = vmatprep.subr.mxu0 0.0
    %441 = vmatpush1.msra.mxu0 0.0
    %442 = vmatprep.subr.mxu0 0.0
    %443 = vmatpush1.msra.mxu0 0.0
    %444 = vmatprep.subr.mxu0 0.0
    %445 = vmatpush1.msra.mxu0 0.0
    %446 = vmatprep.subr.mxu0 0.0
    %447 = vmatpush1.msra.mxu0 0.0
    %448 = vmatprep.subr.mxu0 0.0
    %449 = vmatpush1.msra.mxu0 0.0
    %450 = vmatprep.subr.mxu0 0.0
    %451 = vmatpush1.msra.mxu0 0.0
    %452 = vmatprep.subr.mxu0 0.0
    %453 = vmatpush1.msra.mxu0 0.0
    %454 = vmatprep.subr.mxu0 0.0
    %455 = vmatpush1.msra.mxu0 0.0
    %456 = vmatprep.subr.mxu0 0.0
    %457 = vmatpush1.msra.mxu0 0.0
    %458 = vmatprep.subr.mxu0 0.0
    %459 = vmatpush1.msra.mxu0 0.0
    %460 = vmatprep.subr.mxu0 0.0
    %461 = vmatpush1.msra.mxu0 0.0
    %462 = vmatprep.subr.mxu0 0.0
    %463 = vmatpush1.msra.mxu0 0.0
    %464 = vmatprep.subr.mxu0 0.0
    %465 = vmatpush1.msra.mxu0 0.0
    %466 = vmatprep.subr.mxu0 0.0
    %467 = vmatpush1.msra.mxu0 0.0
    %468 = vmatprep.subr.mxu0 0.0
    %469 = vmatpush1.msra.mxu0 0.0
    %470 = vmatprep.subr.mxu0 0.0
    %471 = vmatpush1.msra.mxu0 0.0
    %472 = vmatprep.subr.mxu0 0.0
    %473 = vmatpush1.msra.mxu0 0.0
    %474 = vmatprep.subr.mxu0 0.0
    %475 = vmatpush1.msra.mxu0 0.0
    %476 = vmatprep.subr.mxu0 0.0
    %477 = vmatpush1.msra.mxu0 0.0
    %478 = vmatprep.subr.mxu0 0.0
    %479 = vmatpush1.msra.mxu0 0.0
    %480 = vmatprep.subr.mxu0 0.0
    %481 = vmatpush1.msra.mxu0 0.0
    %482 = vmatprep.subr.mxu0 0.0
    %483 = vmatpush1.msra.mxu0 0.0
    %484 = vmatprep.mubr.f32.mxu0 0.0
    %485 = vmatmul.mubr.f32.gmra.mrb[0].mxu0 %v418
    %v486 = vpop.f32.mrb[0].mxu0
    %v487 = vadd.f32 0.0, %v486
    %v488 = vpop.f32.mrb[0].mxu0
    %v489 = vadd.f32 0.0, %v488
    %490 = vdwg.mxu0
    %v491 = vadd.f32 %v415, %v487
    %v492 = vxor.u32 %v491, 2147483648
    %v493 = vmul.f32 %v492, 1.442695
    %v494 = vpow.pop %v493
    %v495 = vadd.f32 %v494, 1.0
    %v496 = vrcp.pop %v495
    %v497 = vmul.f32 1.0, %v496
    %v498 = vadd.f32 %v489, %v281
    %v499 = vmul.f32 %v497, %v498
    %v500 = vadd.f32 %v416, %v499
    %v501 = vtanh.pop %v500
    %v502 = vsub.f32 %v396, %v501
    %504 = vrot.lane.b32.xlu0 %v502, 64
    %v505 = vpop.permute.xlu0 %504
    %v507 = vmul.f32 %v497, %v505
    %509 = vrot.lane.b32.xlu0 %v507, 64
    %v510 = vpop.permute.xlu0 %509
    %v512 = vadd.f32 %v501, %v510
    %513 = vst.msk [vmem:[#allocation2 + $0x2] sm:$0x3] %vm397, %v512
    %514 = vst.msk [vmem:[#allocation2 + $0xc] sm:$0x3] %vm399, %v512
    %515 = vset.pattern.permute.xlu0 2
    %516 = vperm.xlu0 %515, %v147
    %v517 = vpop.permute.xlu0 %516
    %v519 = vmul.f32 %v517, %v241
    %v520 = vmul.f32 %v517, %v245
    %521 = vset.pattern.permute.xlu0 5
    %522 = vperm.xlu0 %521, %v147
    %v523 = vpop.permute.xlu0 %522
    %v525 = vmul.f32 %v523, %v253
    %v526 = vmul.f32 %v523, %v257
    %v527 = vadd.f32 %v519, %v525
    %v528 = vadd.f32 %v520, %v526
    %v529 = vadd.f32 %v527, %v234
    %v530 = vadd.f32 %v528, %v235
    %v532 = vsel %vm300, %v512, 0
    %534 = vmatprep.subr.mxu0 %v261
    %535 = vmatpush1.msra.mxu0 %v260
    %536 = vmatprep.subr.mxu0 %v263
    %537 = vmatpush1.msra.mxu0 %v262
    %538 = vmatprep.subr.mxu0 %v265
    %539 = vmatpush1.msra.mxu0 %v264
    %540 = vmatprep.subr.mxu0 %v267
    %541 = vmatpush1.msra.mxu0 %v266
    %542 = vmatprep.subr.mxu0 %v269
    %543 = vmatpush1.msra.mxu0 %v268
    %544 = vmatprep.subr.mxu0 %v271
    %545 = vmatpush1.msra.mxu0 %v270
    %546 = vmatprep.subr.mxu0 %v273
    %547 = vmatpush1.msra.mxu0 %v272
    %548 = vmatprep.subr.mxu0 %v275
    %549 = vmatpush1.msra.mxu0 %v274
    %550 = vmatprep.subr.mxu0 0.0
    %551 = vmatpush1.msra.mxu0 0.0
    %552 = vmatprep.subr.mxu0 0.0
    %553 = vmatpush1.msra.mxu0 0.0
    %554 = vmatprep.subr.mxu0 0.0
    %555 = vmatpush1.msra.mxu0 0.0
    %556 = vmatprep.subr.mxu0 0.0
    %557 = vmatpush1.msra.mxu0 0.0
    %558 = vmatprep.subr.mxu0 0.0
    %559 = vmatpush1.msra.mxu0 0.0
    %560 = vmatprep.subr.mxu0 0.0
    %561 = vmatpush1.msra.mxu0 0.0
    %562 = vmatprep.subr.mxu0 0.0
    %563 = vmatpush1.msra.mxu0 0.0
    %564 = vmatprep.subr.mxu0 0.0
    %565 = vmatpush1.msra.mxu0 0.0
    %566 = vmatprep.subr.mxu0 0.0
    %567 = vmatpush1.msra.mxu0 0.0
    %568 = vmatprep.subr.mxu0 0.0
    %569 = vmatpush1.msra.mxu0 0.0
    %570 = vmatprep.subr.mxu0 0.0
    %571 = vmatpush1.msra.mxu0 0.0
    %572 = vmatprep.subr.mxu0 0.0
    %573 = vmatpush1.msra.mxu0 0.0
    %574 = vmatprep.subr.mxu0 0.0
    %575 = vmatpush1.msra.mxu0 0.0
    %576 = vmatprep.subr.mxu0 0.0
    %577 = vmatpush1.msra.mxu0 0.0
    %578 = vmatprep.subr.mxu0 0.0
    %579 = vmatpush1.msra.mxu0 0.0
    %580 = vmatprep.subr.mxu0 0.0
    %581 = vmatpush1.msra.mxu0 0.0
    %582 = vmatprep.subr.mxu0 0.0
    %583 = vmatpush1.msra.mxu0 0.0
    %584 = vmatprep.subr.mxu0 0.0
    %585 = vmatpush1.msra.mxu0 0.0
    %586 = vmatprep.subr.mxu0 0.0
    %587 = vmatpush1.msra.mxu0 0.0
    %588 = vmatprep.subr.mxu0 0.0
    %589 = vmatpush1.msra.mxu0 0.0
    %590 = vmatprep.subr.mxu0 0.0
    %591 = vmatpush1.msra.mxu0 0.0
    %592 = vmatprep.subr.mxu0 0.0
    %593 = vmatpush1.msra.mxu0 0.0
    %594 = vmatprep.subr.mxu0 0.0
    %595 = vmatpush1.msra.mxu0 0.0
    %596 = vmatprep.subr.mxu0 0.0
    %597 = vmatpush1.msra.mxu0 0.0
    %598 = vmatprep.mubr.f32.mxu0 0.0
    %599 = vmatmul.mubr.f32.gmra.mrb[0].mxu0 %v532
    %v600 = vpop.f32.mrb[0].mxu0
    %v601 = vadd.f32 0.0, %v600
    %v602 = vpop.f32.mrb[0].mxu0
    %v603 = vadd.f32 0.0, %v602
    %604 = vdwg.mxu0
    %v605 = vadd.f32 %v529, %v601
    %v606 = vxor.u32 %v605, 2147483648
    %v607 = vmul.f32 %v606, 1.442695
    %v608 = vpow.pop %v607
    %v609 = vadd.f32 %v608, 1.0
    %v610 = vrcp.pop %v609
    %v611 = vmul.f32 1.0, %v610
    %v612 = vadd.f32 %v603, %v281
    %v613 = vmul.f32 %v611, %v612
    %v614 = vadd.f32 %v530, %v613
    %v615 = vtanh.pop %v614
    %v616 = vsub.f32 %v512, %v615
    %618 = vrot.lane.b32.xlu0 %v616, 64
    %v619 = vpop.permute.xlu0 %618
    %v621 = vmul.f32 %v611, %v619
    %623 = vrot.lane.b32.xlu0 %v621, 64
    %v624 = vpop.permute.xlu0 %623
    %v626 = vadd.f32 %v615, %v624
    %627 = vst.msk [vmem:[#allocation2 + $0x4] sm:$0x3] %vm397, %v626
    %628 = vst.msk [vmem:[#allocation2 + $0xa] sm:$0x3] %vm399, %v626
    %629 = vset.pattern.permute.xlu0 3
    %630 = vperm.xlu0 %629, %v147
    %v631 = vpop.permute.xlu0 %630
    %v633 = vmul.f32 %v631, %v241
    %v634 = vmul.f32 %v631, %v245
    %635 = vset.pattern.permute.xlu0 4
    %636 = vperm.xlu0 %635, %v147
    %v637 = vpop.permute.xlu0 %636
    %v639 = vmul.f32 %v637, %v253
    %v640 = vmul.f32 %v637, %v257
    %v641 = vadd.f32 %v633, %v639
    %v642 = vadd.f32 %v634, %v640
    %v643 = vadd.f32 %v641, %v234
    %v644 = vadd.f32 %v642, %v235
    %v646 = vsel %vm300, %v626, 0
    %648 = vmatprep.subr.mxu0 %v261
    %649 = vmatpush1.msra.mxu0 %v260
    %650 = vmatprep.subr.mxu0 %v263
    %651 = vmatpush1.msra.mxu0 %v262
    %652 = vmatprep.subr.mxu0 %v265
    %653 = vmatpush1.msra.mxu0 %v264
    %654 = vmatprep.subr.mxu0 %v267
    %655 = vmatpush1.msra.mxu0 %v266
    %656 = vmatprep.subr.mxu0 %v269
    %657 = vmatpush1.msra.mxu0 %v268
    %658 = vmatprep.subr.mxu0 %v271
    %659 = vmatpush1.msra.mxu0 %v270
    %660 = vmatprep.subr.mxu0 %v273
    %661 = vmatpush1.msra.mxu0 %v272
    %662 = vmatprep.subr.mxu0 %v275
    %663 = vmatpush1.msra.mxu0 %v274
    %664 = vmatprep.subr.mxu0 0.0
    %665 = vmatpush1.msra.mxu0 0.0
    %666 = vmatprep.subr.mxu0 0.0
    %667 = vmatpush1.msra.mxu0 0.0
    %668 = vmatprep.subr.mxu0 0.0
    %669 = vmatpush1.msra.mxu0 0.0
    %670 = vmatprep.subr.mxu0 0.0
    %671 = vmatpush1.msra.mxu0 0.0
    %672 = vmatprep.subr.mxu0 0.0
    %673 = vmatpush1.msra.mxu0 0.0
    %674 = vmatprep.subr.mxu0 0.0
    %675 = vmatpush1.msra.mxu0 0.0
    %676 = vmatprep.subr.mxu0 0.0
    %677 = vmatpush1.msra.mxu0 0.0
    %678 = vmatprep.subr.mxu0 0.0
    %679 = vmatpush1.msra.mxu0 0.0
    %680 = vmatprep.subr.mxu0 0.0
    %681 = vmatpush1.msra.mxu0 0.0
    %682 = vmatprep.subr.mxu0 0.0
    %683 = vmatpush1.msra.mxu0 0.0
    %684 = vmatprep.subr.mxu0 0.0
    %685 = vmatpush1.msra.mxu0 0.0
    %686 = vmatprep.subr.mxu0 0.0
    %687 = vmatpush1.msra.mxu0 0.0
    %688 = vmatprep.subr.mxu0 0.0
    %689 = vmatpush1.msra.mxu0 0.0
    %690 = vmatprep.subr.mxu0 0.0
    %691 = vmatpush1.msra.mxu0 0.0
    %692 = vmatprep.subr.mxu0 0.0
    %693 = vmatpush1.msra.mxu0 0.0
    %694 = vmatprep.subr.mxu0 0.0
    %695 = vmatpush1.msra.mxu0 0.0
    %696 = vmatprep.subr.mxu0 0.0
    %697 = vmatpush1.msra.mxu0 0.0
    %698 = vmatprep.subr.mxu0 0.0
    %699 = vmatpush1.msra.mxu0 0.0
    %700 = vmatprep.subr.mxu0 0.0
    %701 = vmatpush1.msra.mxu0 0.0
    %702 = vmatprep.subr.mxu0 0.0
    %703 = vmatpush1.msra.mxu0 0.0
    %704 = vmatprep.subr.mxu0 0.0
    %705 = vmatpush1.msra.mxu0 0.0
    %706 = vmatprep.subr.mxu0 0.0
    %707 = vmatpush1.msra.mxu0 0.0
    %708 = vmatprep.subr.mxu0 0.0
    %709 = vmatpush1.msra.mxu0 0.0
    %710 = vmatprep.subr.mxu0 0.0
    %711 = vmatpush1.msra.mxu0 0.0
    %712 = vmatprep.mubr.f32.mxu0 0.0
    %713 = vmatmul.mubr.f32.gmra.mrb[0].mxu0 %v646
    %v714 = vpop.f32.mrb[0].mxu0
    %v715 = vadd.f32 0.0, %v714
    %v716 = vpop.f32.mrb[0].mxu0
    %v717 = vadd.f32 0.0, %v716
    %718 = vdwg.mxu0
    %v719 = vadd.f32 %v643, %v715
    %v720 = vxor.u32 %v719, 2147483648
    %v721 = vmul.f32 %v720, 1.442695
    %v722 = vpow.pop %v721
    %v723 = vadd.f32 %v722, 1.0
    %v724 = vrcp.pop %v723
    %v725 = vmul.f32 1.0, %v724
    %v726 = vadd.f32 %v717, %v281
    %v727 = vmul.f32 %v725, %v726
    %v728 = vadd.f32 %v644, %v727
    %v729 = vtanh.pop %v728
    %v730 = vsub.f32 %v626, %v729
    %732 = vrot.lane.b32.xlu0 %v730, 64
    %v733 = vpop.permute.xlu0 %732
    %v735 = vmul.f32 %v725, %v733
    %737 = vrot.lane.b32.xlu0 %v735, 64
    %v738 = vpop.permute.xlu0 %737
    %v740 = vadd.f32 %v729, %v738
    %741 = vst.msk [vmem:[#allocation2 + $0x6] sm:$0x3] %vm397, %v740
    %742 = vst.msk [vmem:[#allocation2 + $0x8] sm:$0x3] %vm399, %v740
    %v743 = vmul.f32 %v637, %v241
    %v744 = vmul.f32 %v637, %v245
    %v745 = vmul.f32 %v631, %v253
    %v746 = vmul.f32 %v631, %v257
    %v747 = vadd.f32 %v743, %v745
    %v748 = vadd.f32 %v744, %v746
    %v749 = vadd.f32 %v747, %v234
    %v750 = vadd.f32 %v748, %v235
    %v752 = vsel %vm300, %v740, 0
    %754 = vmatprep.subr.mxu0 %v261
    %755 = vmatpush1.msra.mxu0 %v260
    %756 = vmatprep.subr.mxu0 %v263
    %757 = vmatpush1.msra.mxu0 %v262
    %758 = vmatprep.subr.mxu0 %v265
    %759 = vmatpush1.msra.mxu0 %v264
    %760 = vmatprep.subr.mxu0 %v267
    %761 = vmatpush1.msra.mxu0 %v266
    %762 = vmatprep.subr.mxu0 %v269
    %763 = vmatpush1.msra.mxu0 %v268
    %764 = vmatprep.subr.mxu0 %v271
    %765 = vmatpush1.msra.mxu0 %v270
    %766 = vmatprep.subr.mxu0 %v273
    %767 = vmatpush1.msra.mxu0 %v272
    %768 = vmatprep.subr.mxu0 %v275
    %769 = vmatpush1.msra.mxu0 %v274
    %770 = vmatprep.subr.mxu0 0.0
    %771 = vmatpush1.msra.mxu0 0.0
    %772 = vmatprep.subr.mxu0 0.0
    %773 = vmatpush1.msra.mxu0 0.0
    %774 = vmatprep.subr.mxu0 0.0
    %775 = vmatpush1.msra.mxu0 0.0
    %776 = vmatprep.subr.mxu0 0.0
    %777 = vmatpush1.msra.mxu0 0.0
    %778 = vmatprep.subr.mxu0 0.0
    %779 = vmatpush1.msra.mxu0 0.0
    %780 = vmatprep.subr.mxu0 0.0
    %781 = vmatpush1.msra.mxu0 0.0
    %782 = vmatprep.subr.mxu0 0.0
    %783 = vmatpush1.msra.mxu0 0.0
    %784 = vmatprep.subr.mxu0 0.0
    %785 = vmatpush1.msra.mxu0 0.0
    %786 = vmatprep.subr.mxu0 0.0
    %787 = vmatpush1.msra.mxu0 0.0
    %788 = vmatprep.subr.mxu0 0.0
    %789 = vmatpush1.msra.mxu0 0.0
    %790 = vmatprep.subr.mxu0 0.0
    %791 = vmatpush1.msra.mxu0 0.0
    %792 = vmatprep.subr.mxu0 0.0
    %793 = vmatpush1.msra.mxu0 0.0
    %794 = vmatprep.subr.mxu0 0.0
    %795 = vmatpush1.msra.mxu0 0.0
    %796 = vmatprep.subr.mxu0 0.0
    %797 = vmatpush1.msra.mxu0 0.0
    %798 = vmatprep.subr.mxu0 0.0
    %799 = vmatpush1.msra.mxu0 0.0
    %800 = vmatprep.subr.mxu0 0.0
    %801 = vmatpush1.msra.mxu0 0.0
    %802 = vmatprep.subr.mxu0 0.0
    %803 = vmatpush1.msra.mxu0 0.0
    %804 = vmatprep.subr.mxu0 0.0
    %805 = vmatpush1.msra.mxu0 0.0
    %806 = vmatprep.subr.mxu0 0.0
    %807 = vmatpush1.msra.mxu0 0.0
    %808 = vmatprep.subr.mxu0 0.0
    %809 = vmatpush1.msra.mxu0 0.0
    %810 = vmatprep.subr.mxu0 0.0
    %811 = vmatpush1.msra.mxu0 0.0
    %812 = vmatprep.subr.mxu0 0.0
    %813 = vmatpush1.msra.mxu0 0.0
    %814 = vmatprep.subr.mxu0 0.0
    %815 = vmatpush1.msra.mxu0 0.0
    %816 = vmatprep.subr.mxu0 0.0
    %817 = vmatpush1.msra.mxu0 0.0
    %818 = vmatprep.mubr.f32.mxu0 0.0
    %819 = vmatmul.mubr.f32.gmra.mrb[0].mxu0 %v752
    %v820 = vpop.f32.mrb[0].mxu0
    %v821 = vadd.f32 0.0, %v820
    %v822 = vpop.f32.mrb[0].mxu0
    %v823 = vadd.f32 0.0, %v822
    %824 = vdwg.mxu0
    %v825 = vadd.f32 %v749, %v821
    %v826 = vxor.u32 %v825, 2147483648
    %v827 = vmul.f32 %v826, 1.442695
    %v828 = vpow.pop %v827
    %v829 = vadd.f32 %v828, 1.0
    %v830 = vrcp.pop %v829
    %v831 = vmul.f32 1.0, %v830
    %v832 = vadd.f32 %v823, %v281
    %v833 = vmul.f32 %v831, %v832
    %v834 = vadd.f32 %v750, %v833
    %v835 = vtanh.pop %v834
    %v836 = vsub.f32 %v740, %v835
    %838 = vrot.lane.b32.xlu0 %v836, 64
    %v839 = vpop.permute.xlu0 %838
    %v841 = vmul.f32 %v831, %v839
    %843 = vrot.lane.b32.xlu0 %v841, 64
    %v844 = vpop.permute.xlu0 %843
    %v846 = vadd.f32 %v835, %v844
    %847 = vst.msk [vmem:[#allocation2 + $0x8] sm:$0x3] %vm397, %v846
    %848 = vst.msk [vmem:[#allocation2 + $0x6] sm:$0x3] %vm399, %v846
    %v849 = vmul.f32 %v523, %v241
    %v850 = vmul.f32 %v523, %v245
    %v851 = vmul.f32 %v517, %v253
    %v852 = vmul.f32 %v517, %v257
    %v853 = vadd.f32 %v849, %v851
    %v854 = vadd.f32 %v850, %v852
    %v855 = vadd.f32 %v853, %v234
    %v856 = vadd.f32 %v854, %v235
    %v858 = vsel %vm300, %v846, 0
    %860 = vmatprep.subr.mxu0 %v261
    %861 = vmatpush1.msra.mxu0 %v260
    %862 = vmatprep.subr.mxu0 %v263
    %863 = vmatpush1.msra.mxu0 %v262
    %864 = vmatprep.subr.mxu0 %v265
    %865 = vmatpush1.msra.mxu0 %v264
    %866 = vmatprep.subr.mxu0 %v267
    %867 = vmatpush1.msra.mxu0 %v266
    %868 = vmatprep.subr.mxu0 %v269
    %869 = vmatpush1.msra.mxu0 %v268
    %870 = vmatprep.subr.mxu0 %v271
    %871 = vmatpush1.msra.mxu0 %v270
    %872 = vmatprep.subr.mxu0 %v273
    %873 = vmatpush1.msra.mxu0 %v272
    %874 = vmatprep.subr.mxu0 %v275
    %875 = vmatpush1.msra.mxu0 %v274
    %876 = vmatprep.subr.mxu0 0.0
    %877 = vmatpush1.msra.mxu0 0.0
    %878 = vmatprep.subr.mxu0 0.0
    %879 = vmatpush1.msra.mxu0 0.0
    %880 = vmatprep.subr.mxu0 0.0
    %881 = vmatpush1.msra.mxu0 0.0
    %882 = vmatprep.subr.mxu0 0.0
    %883 = vmatpush1.msra.mxu0 0.0
    %884 = vmatprep.subr.mxu0 0.0
    %885 = vmatpush1.msra.mxu0 0.0
    %886 = vmatprep.subr.mxu0 0.0
    %887 = vmatpush1.msra.mxu0 0.0
    %888 = vmatprep.subr.mxu0 0.0
    %889 = vmatpush1.msra.mxu0 0.0
    %890 = vmatprep.subr.mxu0 0.0
    %891 = vmatpush1.msra.mxu0 0.0
    %892 = vmatprep.subr.mxu0 0.0
    %893 = vmatpush1.msra.mxu0 0.0
    %894 = vmatprep.subr.mxu0 0.0
    %895 = vmatpush1.msra.mxu0 0.0
    %896 = vmatprep.subr.mxu0 0.0
    %897 = vmatpush1.msra.mxu0 0.0
    %898 = vmatprep.subr.mxu0 0.0
    %899 = vmatpush1.msra.mxu0 0.0
    %900 = vmatprep.subr.mxu0 0.0
    %901 = vmatpush1.msra.mxu0 0.0
    %902 = vmatprep.subr.mxu0 0.0
    %903 = vmatpush1.msra.mxu0 0.0
    %904 = vmatprep.subr.mxu0 0.0
    %905 = vmatpush1.msra.mxu0 0.0
    %906 = vmatprep.subr.mxu0 0.0
    %907 = vmatpush1.msra.mxu0 0.0
    %908 = vmatprep.subr.mxu0 0.0
    %909 = vmatpush1.msra.mxu0 0.0
    %910 = vmatprep.subr.mxu0 0.0
    %911 = vmatpush1.msra.mxu0 0.0
    %912 = vmatprep.subr.mxu0 0.0
    %913 = vmatpush1.msra.mxu0 0.0
    %914 = vmatprep.subr.mxu0 0.0
    %915 = vmatpush1.msra.mxu0 0.0
    %916 = vmatprep.subr.mxu0 0.0
    %917 = vmatpush1.msra.mxu0 0.0
    %918 = vmatprep.subr.mxu0 0.0
    %919 = vmatpush1.msra.mxu0 0.0
    %920 = vmatprep.subr.mxu0 0.0
    %921 = vmatpush1.msra.mxu0 0.0
    %922 = vmatprep.subr.mxu0 0.0
    %923 = vmatpush1.msra.mxu0 0.0
    %924 = vmatprep.mubr.f32.mxu0 0.0
    %925 = vmatmul.mubr.f32.gmra.mrb[0].mxu0 %v858
    %v926 = vpop.f32.mrb[0].mxu0
    %v927 = vadd.f32 0.0, %v926
    %v928 = vpop.f32.mrb[0].mxu0
    %v929 = vadd.f32 0.0, %v928
    %930 = vdwg.mxu0
    %v931 = vadd.f32 %v855, %v927
    %v932 = vxor.u32 %v931, 2147483648
    %v933 = vmul.f32 %v932, 1.442695
    %v934 = vpow.pop %v933
    %v935 = vadd.f32 %v934, 1.0
    %v936 = vrcp.pop %v935
    %v937 = vmul.f32 1.0, %v936
    %v938 = vadd.f32 %v929, %v281
    %v939 = vmul.f32 %v937, %v938
    %v940 = vadd.f32 %v856, %v939
    %v941 = vtanh.pop %v940
    %v942 = vsub.f32 %v846, %v941
    %944 = vrot.lane.b32.xlu0 %v942, 64
    %v945 = vpop.permute.xlu0 %944
    %v947 = vmul.f32 %v937, %v945
    %949 = vrot.lane.b32.xlu0 %v947, 64
    %v950 = vpop.permute.xlu0 %949
    %v952 = vadd.f32 %v941, %v950
    %953 = vst.msk [vmem:[#allocation2 + $0xa] sm:$0x3] %vm397, %v952
    %954 = vst.msk [vmem:[#allocation2 + $0x4] sm:$0x3] %vm399, %v952
    %v955 = vmul.f32 %v409, %v241
    %v956 = vmul.f32 %v409, %v245
    %v957 = vmul.f32 %v403, %v253
    %v958 = vmul.f32 %v403, %v257
    %v959 = vadd.f32 %v955, %v957
    %v960 = vadd.f32 %v956, %v958
    %v961 = vadd.f32 %v959, %v234
    %v962 = vadd.f32 %v960, %v235
    %v964 = vsel %vm300, %v952, 0
    %966 = vmatprep.subr.mxu0 %v261
    %967 = vmatpush1.msra.mxu0 %v260
    %968 = vmatprep.subr.mxu0 %v263
    %969 = vmatpush1.msra.mxu0 %v262
    %970 = vmatprep.subr.mxu0 %v265
    %971 = vmatpush1.msra.mxu0 %v264
    %972 = vmatprep.subr.mxu0 %v267
    %973 = vmatpush1.msra.mxu0 %v266
    %974 = vmatprep.subr.mxu0 %v269
    %975 = vmatpush1.msra.mxu0 %v268
    %976 = vmatprep.subr.mxu0 %v271
    %977 = vmatpush1.msra.mxu0 %v270
    %978 = vmatprep.subr.mxu0 %v273
    %979 = vmatpush1.msra.mxu0 %v272
    %980 = vmatprep.subr.mxu0 %v275
    %981 = vmatpush1.msra.mxu0 %v274
    %982 = vmatprep.subr.mxu0 0.0
    %983 = vmatpush1.msra.mxu0 0.0
    %984 = vmatprep.subr.mxu0 0.0
    %985 = vmatpush1.msra.mxu0 0.0
    %986 = vmatprep.subr.mxu0 0.0
    %987 = vmatpush1.msra.mxu0 0.0
    %988 = vmatprep.subr.mxu0 0.0
    %989 = vmatpush1.msra.mxu0 0.0
    %990 = vmatprep.subr.mxu0 0.0
    %991 = vmatpush1.msra.mxu0 0.0
    %992 = vmatprep.subr.mxu0 0.0
    %993 = vmatpush1.msra.mxu0 0.0
    %994 = vmatprep.subr.mxu0 0.0
    %995 = vmatpush1.msra.mxu0 0.0
    %996 = vmatprep.subr.mxu0 0.0
    %997 = vmatpush1.msra.mxu0 0.0
    %998 = vmatprep.subr.mxu0 0.0
    %999 = vmatpush1.msra.mxu0 0.0
    %1000 = vmatprep.subr.mxu0 0.0
    %1001 = vmatpush1.msra.mxu0 0.0
    %1002 = vmatprep.subr.mxu0 0.0
    %1003 = vmatpush1.msra.mxu0 0.0
    %1004 = vmatprep.subr.mxu0 0.0
    %1005 = vmatpush1.msra.mxu0 0.0
    %1006 = vmatprep.subr.mxu0 0.0
    %1007 = vmatpush1.msra.mxu0 0.0
    %1008 = vmatprep.subr.mxu0 0.0
    %1009 = vmatpush1.msra.mxu0 0.0
    %1010 = vmatprep.subr.mxu0 0.0
    %1011 = vmatpush1.msra.mxu0 0.0
    %1012 = vmatprep.subr.mxu0 0.0
    %1013 = vmatpush1.msra.mxu0 0.0
    %1014 = vmatprep.subr.mxu0 0.0
    %1015 = vmatpush1.msra.mxu0 0.0
    %1016 = vmatprep.subr.mxu0 0.0
    %1017 = vmatpush1.msra.mxu0 0.0
    %1018 = vmatprep.subr.mxu0 0.0
    %1019 = vmatpush1.msra.mxu0 0.0
    %1020 = vmatprep.subr.mxu0 0.0
    %1021 = vmatpush1.msra.mxu0 0.0
    %1022 = vmatprep.subr.mxu0 0.0
    %1023 = vmatpush1.msra.mxu0 0.0
    %1024 = vmatprep.subr.mxu0 0.0
    %1025 = vmatpush1.msra.mxu0 0.0
    %1026 = vmatprep.subr.mxu0 0.0
    %1027 = vmatpush1.msra.mxu0 0.0
    %1028 = vmatprep.subr.mxu0 0.0
    %1029 = vmatpush1.msra.mxu0 0.0
    %1030 = vmatprep.mubr.f32.mxu0 0.0
    %1031 = vmatmul.mubr.f32.gmra.mrb[0].mxu0 %v964
    %v1032 = vpop.f32.mrb[0].mxu0
    %v1033 = vadd.f32 0.0, %v1032
    %v1034 = vpop.f32.mrb[0].mxu0
    %v1035 = vadd.f32 0.0, %v1034
    %1036 = vdwg.mxu0
    %v1037 = vadd.f32 %v961, %v1033
    %v1038 = vxor.u32 %v1037, 2147483648
    %v1039 = vmul.f32 %v1038, 1.442695
    %v1040 = vpow.pop %v1039
    %v1041 = vadd.f32 %v1040, 1.0
    %v1042 = vrcp.pop %v1041
    %v1043 = vmul.f32 1.0, %v1042
    %v1044 = vadd.f32 %v1035, %v281
    %v1045 = vmul.f32 %v1043, %v1044
    %v1046 = vadd.f32 %v962, %v1045
    %v1047 = vtanh.pop %v1046
    %v1048 = vsub.f32 %v952, %v1047
    %1050 = vrot.lane.b32.xlu0 %v1048, 64
    %v1051 = vpop.permute.xlu0 %1050
    %v1053 = vmul.f32 %v1043, %v1051
    %1055 = vrot.lane.b32.xlu0 %v1053, 64
    %v1056 = vpop.permute.xlu0 %1055
    %v1058 = vadd.f32 %v1047, %v1056
    %1059 = vst.msk [vmem:[#allocation2 + $0xc] sm:$0x3] %vm397, %v1058
    %1060 = vst.msk [vmem:[#allocation2 + $0x2] sm:$0x3] %vm399, %v1058
    %v1061 = vmul.f32 %v292, %v241
    %v1062 = vmul.f32 %v292, %v245
    %v1063 = vmul.f32 %v286, %v253
    %v1064 = vmul.f32 %v286, %v257
    %v1065 = vadd.f32 %v1061, %v1063
    %v1066 = vadd.f32 %v1062, %v1064
    %v1067 = vadd.f32 %v1065, %v234
    %v1068 = vadd.f32 %v1066, %v235
    %v1070 = vsel %vm300, %v1058, 0
    %1072 = vmatprep.subr.mxu0 %v261
    %1073 = vmatpush1.msra.mxu0 %v260
    %1074 = vmatprep.subr.mxu0 %v263
    %1075 = vmatpush1.msra.mxu0 %v262
    %1076 = vmatprep.subr.mxu0 %v265
    %1077 = vmatpush1.msra.mxu0 %v264
    %1078 = vmatprep.subr.mxu0 %v267
    %1079 = vmatpush1.msra.mxu0 %v266
    %1080 = vmatprep.subr.mxu0 %v269
    %1081 = vmatpush1.msra.mxu0 %v268
    %1082 = vmatprep.subr.mxu0 %v271
    %1083 = vmatpush1.msra.mxu0 %v270
    %1084 = vmatprep.subr.mxu0 %v273
    %1085 = vmatpush1.msra.mxu0 %v272
    %1086 = vmatprep.subr.mxu0 %v275
    %1087 = vmatpush1.msra.mxu0 %v274
    %1088 = vmatprep.subr.mxu0 0.0
    %1089 = vmatpush1.msra.mxu0 0.0
    %1090 = vmatprep.subr.mxu0 0.0
    %1091 = vmatpush1.msra.mxu0 0.0
    %1092 = vmatprep.subr.mxu0 0.0
    %1093 = vmatpush1.msra.mxu0 0.0
    %1094 = vmatprep.subr.mxu0 0.0
    %1095 = vmatpush1.msra.mxu0 0.0
    %1096 = vmatprep.subr.mxu0 0.0
    %1097 = vmatpush1.msra.mxu0 0.0
    %1098 = vmatprep.subr.mxu0 0.0
    %1099 = vmatpush1.msra.mxu0 0.0
    %1100 = vmatprep.subr.mxu0 0.0
    %1101 = vmatpush1.msra.mxu0 0.0
    %1102 = vmatprep.subr.mxu0 0.0
    %1103 = vmatpush1.msra.mxu0 0.0
    %1104 = vmatprep.subr.mxu0 0.0
    %1105 = vmatpush1.msra.mxu0 0.0
    %1106 = vmatprep.subr.mxu0 0.0
    %1107 = vmatpush1.msra.mxu0 0.0
    %1108 = vmatprep.subr.mxu0 0.0
    %1109 = vmatpush1.msra.mxu0 0.0
    %1110 = vmatprep.subr.mxu0 0.0
    %1111 = vmatpush1.msra.mxu0 0.0
    %1112 = vmatprep.subr.mxu0 0.0
    %1113 = vmatpush1.msra.mxu0 0.0
    %1114 = vmatprep.subr.mxu0 0.0
    %1115 = vmatpush1.msra.mxu0 0.0
    %1116 = vmatprep.subr.mxu0 0.0
    %1117 = vmatpush1.msra.mxu0 0.0
    %1118 = vmatprep.subr.mxu0 0.0
    %1119 = vmatpush1.msra.mxu0 0.0
    %1120 = vmatprep.subr.mxu0 0.0
    %1121 = vmatpush1.msra.mxu0 0.0
    %1122 = vmatprep.subr.mxu0 0.0
    %1123 = vmatpush1.msra.mxu0 0.0
    %1124 = vmatprep.subr.mxu0 0.0
    %1125 = vmatpush1.msra.mxu0 0.0
    %1126 = vmatprep.subr.mxu0 0.0
    %1127 = vmatpush1.msra.mxu0 0.0
    %1128 = vmatprep.subr.mxu0 0.0
    %1129 = vmatpush1.msra.mxu0 0.0
    %1130 = vmatprep.subr.mxu0 0.0
    %1131 = vmatpush1.msra.mxu0 0.0
    %1132 = vmatprep.subr.mxu0 0.0
    %1133 = vmatpush1.msra.mxu0 0.0
    %1134 = vmatprep.subr.mxu0 0.0
    %1135 = vmatpush1.msra.mxu0 0.0
    %1136 = vmatprep.mubr.f32.mxu0 0.0
    %1137 = vmatmul.mubr.f32.gmra.mrb[0].mxu0 %v1070
    %v1138 = vpop.f32.mrb[0].mxu0
    %v1139 = vadd.f32 0.0, %v1138
    %v1140 = vpop.f32.mrb[0].mxu0
    %v1141 = vadd.f32 0.0, %v1140
    %1142 = vdwg.mxu0
    %v1143 = vadd.f32 %v1067, %v1139
    %v1144 = vxor.u32 %v1143, 2147483648
    %v1145 = vmul.f32 %v1144, 1.442695
    %v1146 = vpow.pop %v1145
    %v1147 = vadd.f32 %v1146, 1.0
    %v1148 = vrcp.pop %v1147
    %v1149 = vmul.f32 1.0, %v1148
    %v1150 = vadd.f32 %v1141, %v281
    %v1151 = vmul.f32 %v1149, %v1150
    %v1152 = vadd.f32 %v1068, %v1151
    %v1153 = vtanh.pop %v1152
    %v1154 = vsub.f32 %v1058, %v1153
    %1156 = vrot.lane.b32.xlu0 %v1154, 64
    %v1157 = vpop.permute.xlu0 %1156
    %v1159 = vmul.f32 %v1149, %v1157
    %1161 = vrot.lane.b32.xlu0 %v1159, 64
    %v1162 = vpop.permute.xlu0 %1161
    %v1164 = vadd.f32 %v1153, %v1162
    %1165 = vst.msk [vmem:[#allocation2 + $0xe] sm:$0x3] %vm397, %v1164
    %1166 = vst.msk [vmem:[#allocation2] sm:$0x3] %vm399, %v1164
    %v1167 = vld [vmem:[#allocation2] sm:$0xff]
    %v1168 = vld [vmem:[#allocation2 + $0x8] sm:$0xff]
    %v1169 = vld [vmem:[#allocation12] sm:$0xff]
    %v1170 = vld [vmem:[#allocation12 + $0x8] sm:$0xff]
    %v1171 = vld [vmem:[#allocation12 + $0x10] sm:$0xff]
    %v1172 = vld [vmem:[#allocation12 + $0x18] sm:$0xff]
    %v1173 = vld [vmem:[#allocation12 + $0x20] sm:$0xff]
    %v1174 = vld [vmem:[#allocation12 + $0x28] sm:$0xff]
    %v1175 = vld [vmem:[#allocation12 + $0x30] sm:$0xff]
    %v1176 = vld [vmem:[#allocation12 + $0x38] sm:$0xff]
    %v1177 = vld [vmem:[#allocation12 + $0x40] sm:$0xff]
    %v1178 = vld [vmem:[#allocation12 + $0x48] sm:$0xff]
    %v1179 = vld [vmem:[#allocation12 + $0x50] sm:$0xff]
    %v1180 = vld [vmem:[#allocation12 + $0x58] sm:$0xff]
    %v1181 = vld [vmem:[#allocation12 + $0x60] sm:$0xff]
    %v1182 = vld [vmem:[#allocation12 + $0x68] sm:$0xff]
    %v1183 = vld [vmem:[#allocation12 + $0x70] sm:$0xff]
    %v1184 = vld [vmem:[#allocation12 + $0x78] sm:$0xff]
    %v1185 = vld [vmem:[%s10] sm:$0x3]
    %v1187 = vlaneseq
    %v1188 = vshrl.u32 %v1187, 7
    %v1189 = vsub.s32 0, %v1188
    %v1190 = vrot.slane %v1185, %v1189
    %v1191 = vlaneseq
    %v1192 = vshrl.u32 %v1191, 7
    %v1193 = vsub.s32 1, %v1192
    %v1194 = vrot.slane %v1185, %v1193
    %v1198 = vsel %vm300, %v1167, 0
    %v1201 = vsel %vm300, %v1168, 0
    %1203 = vmatprep.subr.mxu0 %v1170
    %1204 = vmatpush1.msra.mxu0 %v1169
    %1205 = vmatprep.subr.mxu0 %v1172
    %1206 = vmatpush1.msra.mxu0 %v1171
    %1207 = vmatprep.subr.mxu0 %v1174
    %1208 = vmatpush1.msra.mxu0 %v1173
    %1209 = vmatprep.subr.mxu0 %v1176
    %1210 = vmatpush1.msra.mxu0 %v1175
    %1211 = vmatprep.subr.mxu0 %v1178
    %1212 = vmatpush1.msra.mxu0 %v1177
    %1213 = vmatprep.subr.mxu0 %v1180
    %1214 = vmatpush1.msra.mxu0 %v1179
    %1215 = vmatprep.subr.mxu0 %v1182
    %1216 = vmatpush1.msra.mxu0 %v1181
    %1217 = vmatprep.subr.mxu0 %v1184
    %1218 = vmatpush1.msra.mxu0 %v1183
    %1219 = vmatprep.subr.mxu0 0.0
    %1220 = vmatpush1.msra.mxu0 0.0
    %1221 = vmatprep.subr.mxu0 0.0
    %1222 = vmatpush1.msra.mxu0 0.0
    %1223 = vmatprep.subr.mxu0 0.0
    %1224 = vmatpush1.msra.mxu0 0.0
    %1225 = vmatprep.subr.mxu0 0.0
    %1226 = vmatpush1.msra.mxu0 0.0
    %1227 = vmatprep.subr.mxu0 0.0
    %1228 = vmatpush1.msra.mxu0 0.0
    %1229 = vmatprep.subr.mxu0 0.0
    %1230 = vmatpush1.msra.mxu0 0.0
    %1231 = vmatprep.subr.mxu0 0.0
    %1232 = vmatpush1.msra.mxu0 0.0
    %1233 = vmatprep.subr.mxu0 0.0
    %1234 = vmatpush1.msra.mxu0 0.0
    %1235 = vmatprep.subr.mxu0 0.0
    %1236 = vmatpush1.msra.mxu0 0.0
    %1237 = vmatprep.subr.mxu0 0.0
    %1238 = vmatpush1.msra.mxu0 0.0
    %1239 = vmatprep.subr.mxu0 0.0
    %1240 = vmatpush1.msra.mxu0 0.0
    %1241 = vmatprep.subr.mxu0 0.0
    %1242 = vmatpush1.msra.mxu0 0.0
    %1243 = vmatprep.subr.mxu0 0.0
    %1244 = vmatpush1.msra.mxu0 0.0
    %1245 = vmatprep.subr.mxu0 0.0
    %1246 = vmatpush1.msra.mxu0 0.0
    %1247 = vmatprep.subr.mxu0 0.0
    %1248 = vmatpush1.msra.mxu0 0.0
    %1249 = vmatprep.subr.mxu0 0.0
    %1250 = vmatpush1.msra.mxu0 0.0
    %1251 = vmatprep.subr.mxu0 0.0
    %1252 = vmatpush1.msra.mxu0 0.0
    %1253 = vmatprep.subr.mxu0 0.0
    %1254 = vmatpush1.msra.mxu0 0.0
    %1255 = vmatprep.subr.mxu0 0.0
    %1256 = vmatpush1.msra.mxu0 0.0
    %1257 = vmatprep.subr.mxu0 0.0
    %1258 = vmatpush1.msra.mxu0 0.0
    %1259 = vmatprep.subr.mxu0 0.0
    %1260 = vmatpush1.msra.mxu0 0.0
    %1261 = vmatprep.subr.mxu0 0.0
    %1262 = vmatpush1.msra.mxu0 0.0
    %1263 = vmatprep.subr.mxu0 0.0
    %1264 = vmatpush1.msra.mxu0 0.0
    %1265 = vmatprep.subr.mxu0 0.0
    %1266 = vmatpush1.msra.mxu0 0.0
    %1267 = vmatprep.mubr.f32.mxu0 0.0
    %1268 = vmatmul.mubr.f32.gmra.mrb[0].mxu0 %v1198
    %v1269 = vpop.f32.mrb[0].mxu0
    %v1270 = vadd.f32 %v1190, %v1269
    %v1271 = vpop.f32.mrb[0].mxu0
    %v1272 = vadd.f32 %v1194, %v1271
    %1273 = vmatprep.mubr.f32.mxu0 0.0
    %1274 = vmatmul.mubr.f32.gmra.mrb[0].mxu0 %v1201
    %v1275 = vpop.f32.mrb[0].mxu0
    %v1276 = vadd.f32 %v1190, %v1275
    %v1277 = vpop.f32.mrb[0].mxu0
    %v1278 = vadd.f32 %v1194, %v1277
    %1279 = vdwg.mxu0
    %v1280 = vld [vmem:[#allocation14] sm:$0xff]
    %v1281 = vld [vmem:[#allocation14 + $0x8] sm:$0xff]
    %v1282 = vld [vmem:[#allocation14 + $0x10] sm:$0xff]
    %v1283 = vld [vmem:[#allocation14 + $0x18] sm:$0xff]
    %v1284 = vld [vmem:[#allocation14 + $0x20] sm:$0xff]
    %v1285 = vld [vmem:[#allocation14 + $0x28] sm:$0xff]
    %v1286 = vld [vmem:[#allocation14 + $0x30] sm:$0xff]
    %v1287 = vld [vmem:[#allocation14 + $0x38] sm:$0xff]
    %v1288 = vld [vmem:[#allocation14 + $0x40] sm:$0xff]
    %v1289 = vld [vmem:[#allocation14 + $0x48] sm:$0xff]
    %v1290 = vld [vmem:[#allocation14 + $0x50] sm:$0xff]
    %v1291 = vld [vmem:[#allocation14 + $0x58] sm:$0xff]
    %v1292 = vld [vmem:[#allocation14 + $0x60] sm:$0xff]
    %v1293 = vld [vmem:[#allocation14 + $0x68] sm:$0xff]
    %v1294 = vld [vmem:[#allocation14 + $0x70] sm:$0xff]
    %v1295 = vld [vmem:[#allocation14 + $0x78] sm:$0xff]
    %1296 = vmatprep.subr.mxu0 %v1281
    %1297 = vmatpush1.msra.mxu0 %v1280
    %1298 = vmatprep.subr.mxu0 %v1283
    %1299 = vmatpush1.msra.mxu0 %v1282
    %1300 = vmatprep.subr.mxu0 %v1285
    %1301 = vmatpush1.msra.mxu0 %v1284
    %1302 = vmatprep.subr.mxu0 %v1287
    %1303 = vmatpush1.msra.mxu0 %v1286
    %1304 = vmatprep.subr.mxu0 %v1289
    %1305 = vmatpush1.msra.mxu0 %v1288
    %1306 = vmatprep.subr.mxu0 %v1291
    %1307 = vmatpush1.msra.mxu0 %v1290
    %1308 = vmatprep.subr.mxu0 %v1293
    %1309 = vmatpush1.msra.mxu0 %v1292
    %1310 = vmatprep.subr.mxu0 %v1295
    %1311 = vmatpush1.msra.mxu0 %v1294
    %1312 = vmatprep.subr.mxu0 0.0
    %1313 = vmatpush1.msra.mxu0 0.0
    %1314 = vmatprep.subr.mxu0 0.0
    %1315 = vmatpush1.msra.mxu0 0.0
    %1316 = vmatprep.subr.mxu0 0.0
    %1317 = vmatpush1.msra.mxu0 0.0
    %1318 = vmatprep.subr.mxu0 0.0
    %1319 = vmatpush1.msra.mxu0 0.0
    %1320 = vmatprep.subr.mxu0 0.0
    %1321 = vmatpush1.msra.mxu0 0.0
    %1322 = vmatprep.subr.mxu0 0.0
    %1323 = vmatpush1.msra.mxu0 0.0
    %1324 = vmatprep.subr.mxu0 0.0
    %1325 = vmatpush1.msra.mxu0 0.0
    %1326 = vmatprep.subr.mxu0 0.0
    %1327 = vmatpush1.msra.mxu0 0.0
    %1328 = vmatprep.subr.mxu0 0.0
    %1329 = vmatpush1.msra.mxu0 0.0
    %1330 = vmatprep.subr.mxu0 0.0
    %1331 = vmatpush1.msra.mxu0 0.0
    %1332 = vmatprep.subr.mxu0 0.0
    %1333 = vmatpush1.msra.mxu0 0.0
    %1334 = vmatprep.subr.mxu0 0.0
    %1335 = vmatpush1.msra.mxu0 0.0
    %1336 = vmatprep.subr.mxu0 0.0
    %1337 = vmatpush1.msra.mxu0 0.0
    %1338 = vmatprep.subr.mxu0 0.0
    %1339 = vmatpush1.msra.mxu0 0.0
    %1340 = vmatprep.subr.mxu0 0.0
    %1341 = vmatpush1.msra.mxu0 0.0
    %1342 = vmatprep.subr.mxu0 0.0
    %1343 = vmatpush1.msra.mxu0 0.0
    %1344 = vmatprep.subr.mxu0 0.0
    %1345 = vmatpush1.msra.mxu0 0.0
    %1346 = vmatprep.subr.mxu0 0.0
    %1347 = vmatpush1.msra.mxu0 0.0
    %1348 = vmatprep.subr.mxu0 0.0
    %1349 = vmatpush1.msra.mxu0 0.0
    %1350 = vmatprep.subr.mxu0 0.0
    %1351 = vmatpush1.msra.mxu0 0.0
    %1352 = vmatprep.subr.mxu0 0.0
    %1353 = vmatpush1.msra.mxu0 0.0
    %1354 = vmatprep.subr.mxu0 0.0
    %1355 = vmatpush1.msra.mxu0 0.0
    %1356 = vmatprep.subr.mxu0 0.0
    %1357 = vmatpush1.msra.mxu0 0.0
    %1358 = vmatprep.subr.mxu0 0.0
    %1359 = vmatpush1.msra.mxu0 0.0
    %1360 = vmatprep.mubr.f32.mxu0 0.0
    %1361 = vmatmul.mubr.f32.gmra.mrb[0].mxu0 %v1198
    %v1362 = vpop.f32.mrb[0].mxu0
    %v1363 = vadd.f32 0.0, %v1362
    %v1364 = vpop.f32.mrb[0].mxu0
    %v1365 = vadd.f32 0.0, %v1364
    %1366 = vmatprep.mubr.f32.mxu0 0.0
    %1367 = vmatmul.mubr.f32.gmra.mrb[0].mxu0 %v1201
    %v1368 = vpop.f32.mrb[0].mxu0
    %v1369 = vadd.f32 0.0, %v1368
    %v1370 = vpop.f32.mrb[0].mxu0
    %v1371 = vadd.f32 0.0, %v1370
    %1372 = vdwg.mxu0
    %v1373 = vld [vmem:[#allocation15] sm:$0xff]
    %v1374 = vld [vmem:[#allocation15 + $0x8] sm:$0xff]
    %v1375 = vld [vmem:[#allocation15 + $0x10] sm:$0xff]
    %v1376 = vld [vmem:[#allocation15 + $0x18] sm:$0xff]
    %v1377 = vld [vmem:[#allocation15 + $0x20] sm:$0xff]
    %v1378 = vld [vmem:[#allocation15 + $0x28] sm:$0xff]
    %v1379 = vld [vmem:[#allocation15 + $0x30] sm:$0xff]
    %v1380 = vld [vmem:[#allocation15 + $0x38] sm:$0xff]
    %v1381 = vld [vmem:[#allocation15 + $0x40] sm:$0xff]
    %v1382 = vld [vmem:[#allocation15 + $0x48] sm:$0xff]
    %v1383 = vld [vmem:[#allocation15 + $0x50] sm:$0xff]
    %v1384 = vld [vmem:[#allocation15 + $0x58] sm:$0xff]
    %v1385 = vld [vmem:[#allocation15 + $0x60] sm:$0xff]
    %v1386 = vld [vmem:[#allocation15 + $0x68] sm:$0xff]
    %v1387 = vld [vmem:[#allocation15 + $0x70] sm:$0xff]
    %v1388 = vld [vmem:[#allocation15 + $0x78] sm:$0xff]
    %v1389 = vld [vmem:[%s12] sm:$0x1]
    %v1391 = vlaneseq
    %v1392 = vshrl.u32 %v1391, 7
    %v1393 = vsub.s32 0, %v1392
    %v1394 = vrot.slane %v1389, %v1393
    %v1398 = vrot.slane %v1369, 6
    %v1399 = vrot.slane %v1371, 6
    %v1402 = vadd.f32 %v1270, %v1398
    %v1403 = vadd.f32 %v1272, %v1399
    %1404 = vmatprep.subr.mxu0 %v1374
    %1405 = vmatpush1.msra.mxu0 %v1373
    %1406 = vmatprep.subr.mxu0 %v1376
    %1407 = vmatpush1.msra.mxu0 %v1375
    %1408 = vmatprep.subr.mxu0 %v1378
    %1409 = vmatpush1.msra.mxu0 %v1377
    %1410 = vmatprep.subr.mxu0 %v1380
    %1411 = vmatpush1.msra.mxu0 %v1379
    %1412 = vmatprep.subr.mxu0 %v1382
    %1413 = vmatpush1.msra.mxu0 %v1381
    %1414 = vmatprep.subr.mxu0 %v1384
    %1415 = vmatpush1.msra.mxu0 %v1383
    %1416 = vmatprep.subr.mxu0 %v1386
    %1417 = vmatpush1.msra.mxu0 %v1385
    %1418 = vmatprep.subr.mxu0 %v1388
    %1419 = vmatpush1.msra.mxu0 %v1387
    %1420 = vmatprep.subr.mxu0 0.0
    %1421 = vmatpush1.msra.mxu0 0.0
    %1422 = vmatprep.subr.mxu0 0.0
    %1423 = vmatpush1.msra.mxu0 0.0
    %1424 = vmatprep.subr.mxu0 0.0
    %1425 = vmatpush1.msra.mxu0 0.0
    %1426 = vmatprep.subr.mxu0 0.0
    %1427 = vmatpush1.msra.mxu0 0.0
    %1428 = vmatprep.subr.mxu0 0.0
    %1429 = vmatpush1.msra.mxu0 0.0
    %1430 = vmatprep.subr.mxu0 0.0
    %1431 = vmatpush1.msra.mxu0 0.0
    %1432 = vmatprep.subr.mxu0 0.0
    %1433 = vmatpush1.msra.mxu0 0.0
    %1434 = vmatprep.subr.mxu0 0.0
    %1435 = vmatpush1.msra.mxu0 0.0
    %1436 = vmatprep.subr.mxu0 0.0
    %1437 = vmatpush1.msra.mxu0 0.0
    %1438 = vmatprep.subr.mxu0 0.0
    %1439 = vmatpush1.msra.mxu0 0.0
    %1440 = vmatprep.subr.mxu0 0.0
    %1441 = vmatpush1.msra.mxu0 0.0
    %1442 = vmatprep.subr.mxu0 0.0
    %1443 = vmatpush1.msra.mxu0 0.0
    %1444 = vmatprep.subr.mxu0 0.0
    %1445 = vmatpush1.msra.mxu0 0.0
    %1446 = vmatprep.subr.mxu0 0.0
    %1447 = vmatpush1.msra.mxu0 0.0
    %1448 = vmatprep.subr.mxu0 0.0
    %1449 = vmatpush1.msra.mxu0 0.0
    %1450 = vmatprep.subr.mxu0 0.0
    %1451 = vmatpush1.msra.mxu0 0.0
    %1452 = vmatprep.subr.mxu0 0.0
    %1453 = vmatpush1.msra.mxu0 0.0
    %1454 = vmatprep.subr.mxu0 0.0
    %1455 = vmatpush1.msra.mxu0 0.0
    %1456 = vmatprep.subr.mxu0 0.0
    %1457 = vmatpush1.msra.mxu0 0.0
    %1458 = vmatprep.subr.mxu0 0.0
    %1459 = vmatpush1.msra.mxu0 0.0
    %1460 = vmatprep.subr.mxu0 0.0
    %1461 = vmatpush1.msra.mxu0 0.0
    %1462 = vmatprep.subr.mxu0 0.0
    %1463 = vmatpush1.msra.mxu0 0.0
    %1464 = vmatprep.subr.mxu0 0.0
    %1465 = vmatpush1.msra.mxu0 0.0
    %1466 = vmatprep.subr.mxu0 0.0
    %1467 = vmatpush1.msra.mxu0 0.0
    %1468 = vmatprep.mubr.f32.mxu0 0.0
    %1469 = vmatmul.mubr.f32.gmra.mrb[0].mxu0 %v302
    %v1470 = vpop.f32.mrb[0].mxu0
    %v1471 = vadd.f32 0.0, %v1470
    %v1472 = vpop.f32.mrb[0].mxu0
    %v1473 = vadd.f32 0.0, %v1472
    %1474 = vdwg.mxu0
    %v1475 = vadd.f32 %v1402, %v1471
    %v1476 = vxor.u32 %v1475, 2147483648
    %v1477 = vmul.f32 %v1476, 1.442695
    %v1478 = vpow.pop %v1477
    %v1479 = vadd.f32 %v1478, 1.0
    %v1480 = vrcp.pop %v1479
    %v1481 = vmul.f32 1.0, %v1480
    %v1482 = vadd.f32 %v1473, %v1394
    %v1483 = vmul.f32 %v1481, %v1482
    %v1484 = vadd.f32 %v1403, %v1483
    %v1485 = vtanh.pop %v1484
    %v1486 = vsub.f32 0.0, %v1485
    %1488 = vrot.lane.b32.xlu0 %v1486, 64
    %v1489 = vpop.permute.xlu0 %1488
    %v1491 = vmul.f32 %v1481, %v1489
    %1493 = vrot.lane.b32.xlu0 %v1491, 64
    %v1494 = vpop.permute.xlu0 %1493
    %v1496 = vadd.f32 %v1485, %v1494
    %v1497 = vmul.f32 %v1496, %v153
    %v1498 = vsel %vm397, %v1497, 0.0
    %1499 = vadd.xlane.f32.xlu0 %v1498
    %v1500 = vpop.xlane.xlu0 %1499
    %1501 = vrot.lane.b32.xlu0 %v160, 32
    %v1502 = vpop.permute.xlu0 %1501
    %v1504 = vmul.f32 %v1496, %v1502
    %1506 = vrot.lane.b32.xlu0 %v1504, 96
    %v1507 = vpop.permute.xlu0 %1506
    %v1509 = vsel %vm397, %v1507, 0.0
    %1510 = vadd.xlane.f32.xlu0 %v1509
    %v1511 = vpop.xlane.xlu0 %1510
    %v1512 = vrot.slane %v1369, 2
    %v1513 = vrot.slane %v1371, 2
    %v1516 = vadd.f32 %v1270, %v1512
    %v1517 = vadd.f32 %v1272, %v1513
    %v1519 = vsel %vm300, %v1496, 0
    %1521 = vmatprep.subr.mxu0 %v1374
    %1522 = vmatpush1.msra.mxu0 %v1373
    %1523 = vmatprep.subr.mxu0 %v1376
    %1524 = vmatpush1.msra.mxu0 %v1375
    %1525 = vmatprep.subr.mxu0 %v1378
    %1526 = vmatpush1.msra.mxu0 %v1377
    %1527 = vmatprep.subr.mxu0 %v1380
    %1528 = vmatpush1.msra.mxu0 %v1379
    %1529 = vmatprep.subr.mxu0 %v1382
    %1530 = vmatpush1.msra.mxu0 %v1381
    %1531 = vmatprep.subr.mxu0 %v1384
    %1532 = vmatpush1.msra.mxu0 %v1383
    %1533 = vmatprep.subr.mxu0 %v1386
    %1534 = vmatpush1.msra.mxu0 %v1385
    %1535 = vmatprep.subr.mxu0 %v1388
    %1536 = vmatpush1.msra.mxu0 %v1387
    %1537 = vmatprep.subr.mxu0 0.0
    %1538 = vmatpush1.msra.mxu0 0.0
    %1539 = vmatprep.subr.mxu0 0.0
    %1540 = vmatpush1.msra.mxu0 0.0
    %1541 = vmatprep.subr.mxu0 0.0
    %1542 = vmatpush1.msra.mxu0 0.0
    %1543 = vmatprep.subr.mxu0 0.0
    %1544 = vmatpush1.msra.mxu0 0.0
    %1545 = vmatprep.subr.mxu0 0.0
    %1546 = vmatpush1.msra.mxu0 0.0
    %1547 = vmatprep.subr.mxu0 0.0
    %1548 = vmatpush1.msra.mxu0 0.0
    %1549 = vmatprep.subr.mxu0 0.0
    %1550 = vmatpush1.msra.mxu0 0.0
    %1551 = vmatprep.subr.mxu0 0.0
    %1552 = vmatpush1.msra.mxu0 0.0
    %1553 = vmatprep.subr.mxu0 0.0
    %1554 = vmatpush1.msra.mxu0 0.0
    %1555 = vmatprep.subr.mxu0 0.0
    %1556 = vmatpush1.msra.mxu0 0.0
    %1557 = vmatprep.subr.mxu0 0.0
    %1558 = vmatpush1.msra.mxu0 0.0
    %1559 = vmatprep.subr.mxu0 0.0
    %1560 = vmatpush1.msra.mxu0 0.0
    %1561 = vmatprep.subr.mxu0 0.0
    %1562 = vmatpush1.msra.mxu0 0.0
    %1563 = vmatprep.subr.mxu0 0.0
    %1564 = vmatpush1.msra.mxu0 0.0
    %1565 = vmatprep.subr.mxu0 0.0
    %1566 = vmatpush1.msra.mxu0 0.0
    %1567 = vmatprep.subr.mxu0 0.0
    %1568 = vmatpush1.msra.mxu0 0.0
    %1569 = vmatprep.subr.mxu0 0.0
    %1570 = vmatpush1.msra.mxu0 0.0
    %1571 = vmatprep.subr.mxu0 0.0
    %1572 = vmatpush1.msra.mxu0 0.0
    %1573 = vmatprep.subr.mxu0 0.0
    %1574 = vmatpush1.msra.mxu0 0.0
    %1575 = vmatprep.subr.mxu0 0.0
    %1576 = vmatpush1.msra.mxu0 0.0
    %1577 = vmatprep.subr.mxu0 0.0
    %1578 = vmatpush1.msra.mxu0 0.0
    %1579 = vmatprep.subr.mxu0 0.0
    %1580 = vmatpush1.msra.mxu0 0.0
    %1581 = vmatprep.subr.mxu0 0.0
    %1582 = vmatpush1.msra.mxu0 0.0
    %1583 = vmatprep.subr.mxu0 0.0
    %1584 = vmatpush1.msra.mxu0 0.0
    %1585 = vmatprep.mubr.f32.mxu0 0.0
    %1586 = vmatmul.mubr.f32.gmra.mrb[0].mxu0 %v1519
    %v1587 = vpop.f32.mrb[0].mxu0
    %v1588 = vadd.f32 0.0, %v1587
    %v1589 = vpop.f32.mrb[0].mxu0
    %v1590 = vadd.f32 0.0, %v1589
    %1591 = vdwg.mxu0
    %v1593 = vrot.slane %v1588, 6
    %v1595 = vadd.f32 %v1516, %v1593
    %v1596 = vxor.u32 %v1595, 2147483648
    %v1597 = vmul.f32 %v1596, 1.442695
    %v1598 = vpow.pop %v1597
    %v1599 = vadd.f32 %v1598, 1.0
    %v1600 = vrcp.pop %v1599
    %v1601 = vmul.f32 1.0, %v1600
    %v1602 = vadd.f32 %v1590, %v1394
    %v1604 = vrot.slane %v1602, 6
    %v1606 = vmul.f32 %v1601, %v1604
    %v1607 = vadd.f32 %v1517, %v1606
    %v1608 = vtanh.pop %v1607
    %v1610 = vrot.slane %v1608, 2
    %v1612 = vsub.f32 %v1496, %v1610
    %v1614 = vrot.slane %v1612, 6
    %1615 = vrot.lane.b32.xlu0 %v1614, 64
    %v1616 = vpop.permute.xlu0 %1615
    %v1618 = vmul.f32 %v1601, %v1616
    %1620 = vrot.lane.b32.xlu0 %v1618, 64
    %v1621 = vpop.permute.xlu0 %1620
    %v1623 = vadd.f32 %v1608, %v1621
    %v1624 = vmul.f32 %v1623, %v153
    %vm1625 = vcmask 257026
    %v1626 = vsel %vm1625, %v1624, 0.0
    %1627 = vadd.xlane.f32.xlu0 %v1626
    %v1628 = vpop.xlane.xlu0 %1627
    %v1629 = vmul.f32 %v1623, %v1502
    %1631 = vrot.lane.b32.xlu0 %v1629, 96
    %v1632 = vpop.permute.xlu0 %1631
    %v1634 = vsel %vm1625, %v1632, 0.0
    %1635 = vadd.xlane.f32.xlu0 %v1634
    %v1636 = vpop.xlane.xlu0 %1635
    %v1638 = vrot.slane %v1623, 2
    %v1639 = vsel %vm300, %v1638, 0
    %1641 = vmatprep.subr.mxu0 %v1374
    %1642 = vmatpush1.msra.mxu0 %v1373
    %1643 = vmatprep.subr.mxu0 %v1376
    %1644 = vmatpush1.msra.mxu0 %v1375
    %1645 = vmatprep.subr.mxu0 %v1378
    %1646 = vmatpush1.msra.mxu0 %v1377
    %1647 = vmatprep.subr.mxu0 %v1380
    %1648 = vmatpush1.msra.mxu0 %v1379
    %1649 = vmatprep.subr.mxu0 %v1382
    %1650 = vmatpush1.msra.mxu0 %v1381
    %1651 = vmatprep.subr.mxu0 %v1384
    %1652 = vmatpush1.msra.mxu0 %v1383
    %1653 = vmatprep.subr.mxu0 %v1386
    %1654 = vmatpush1.msra.mxu0 %v1385
    %1655 = vmatprep.subr.mxu0 %v1388
    %1656 = vmatpush1.msra.mxu0 %v1387
    %1657 = vmatprep.subr.mxu0 0.0
    %1658 = vmatpush1.msra.mxu0 0.0
    %1659 = vmatprep.subr.mxu0 0.0
    %1660 = vmatpush1.msra.mxu0 0.0
    %1661 = vmatprep.subr.mxu0 0.0
    %1662 = vmatpush1.msra.mxu0 0.0
    %1663 = vmatprep.subr.mxu0 0.0
    %1664 = vmatpush1.msra.mxu0 0.0
    %1665 = vmatprep.subr.mxu0 0.0
    %1666 = vmatpush1.msra.mxu0 0.0
    %1667 = vmatprep.subr.mxu0 0.0
    %1668 = vmatpush1.msra.mxu0 0.0
    %1669 = vmatprep.subr.mxu0 0.0
    %1670 = vmatpush1.msra.mxu0 0.0
    %1671 = vmatprep.subr.mxu0 0.0
    %1672 = vmatpush1.msra.mxu0 0.0
    %1673 = vmatprep.subr.mxu0 0.0
    %1674 = vmatpush1.msra.mxu0 0.0
    %1675 = vmatprep.subr.mxu0 0.0
    %1676 = vmatpush1.msra.mxu0 0.0
    %1677 = vmatprep.subr.mxu0 0.0
    %1678 = vmatpush1.msra.mxu0 0.0
    %1679 = vmatprep.subr.mxu0 0.0
    %1680 = vmatpush1.msra.mxu0 0.0
    %1681 = vmatprep.subr.mxu0 0.0
    %1682 = vmatpush1.msra.mxu0 0.0
    %1683 = vmatprep.subr.mxu0 0.0
    %1684 = vmatpush1.msra.mxu0 0.0
    %1685 = vmatprep.subr.mxu0 0.0
    %1686 = vmatpush1.msra.mxu0 0.0
    %1687 = vmatprep.subr.mxu0 0.0
    %1688 = vmatpush1.msra.mxu0 0.0
    %1689 = vmatprep.subr.mxu0 0.0
    %1690 = vmatpush1.msra.mxu0 0.0
    %1691 = vmatprep.subr.mxu0 0.0
    %1692 = vmatpush1.msra.mxu0 0.0
    %1693 = vmatprep.subr.mxu0 0.0
    %1694 = vmatpush1.msra.mxu0 0.0
    %1695 = vmatprep.subr.mxu0 0.0
    %1696 = vmatpush1.msra.mxu0 0.0
    %1697 = vmatprep.subr.mxu0 0.0
    %1698 = vmatpush1.msra.mxu0 0.0
    %1699 = vmatprep.subr.mxu0 0.0
    %1700 = vmatpush1.msra.mxu0 0.0
    %1701 = vmatprep.subr.mxu0 0.0
    %1702 = vmatpush1.msra.mxu0 0.0
    %1703 = vmatprep.subr.mxu0 0.0
    %1704 = vmatpush1.msra.mxu0 0.0
    %1705 = vmatprep.mubr.f32.mxu0 0.0
    %1706 = vmatmul.mubr.f32.gmra.mrb[0].mxu0 %v1639
    %v1707 = vpop.f32.mrb[0].mxu0
    %v1708 = vadd.f32 0.0, %v1707
    %v1709 = vpop.f32.mrb[0].mxu0
    %v1710 = vadd.f32 0.0, %v1709
    %1711 = vdwg.mxu0
    %v1713 = vrot.slane %v1708, 4
    %v1715 = vadd.f32 %v1402, %v1713
    %v1716 = vxor.u32 %v1715, 2147483648
    %v1717 = vmul.f32 %v1716, 1.442695
    %v1718 = vpow.pop %v1717
    %v1719 = vadd.f32 %v1718, 1.0
    %v1720 = vrcp.pop %v1719
    %v1721 = vmul.f32 1.0, %v1720
    %v1722 = vadd.f32 %v1710, %v1394
    %v1724 = vrot.slane %v1722, 4
    %v1726 = vmul.f32 %v1721, %v1724
    %v1727 = vadd.f32 %v1403, %v1726
    %v1728 = vtanh.pop %v1727
    %v1730 = vrot.slane %v1728, 2
    %v1732 = vsub.f32 %v1623, %v1730
    %v1734 = vrot.slane %v1732, 6
    %1735 = vrot.lane.b32.xlu0 %v1734, 64
    %v1736 = vpop.permute.xlu0 %1735
    %v1738 = vmul.f32 %v1721, %v1736
    %1740 = vrot.lane.b32.xlu0 %v1738, 64
    %v1741 = vpop.permute.xlu0 %1740
    %v1743 = vadd.f32 %v1728, %v1741
    %v1744 = vmul.f32 %v1743, %v153
    %vm1745 = vcmask 259076
    %v1746 = vsel %vm1745, %v1744, 0.0
    %1747 = vadd.xlane.f32.xlu0 %v1746
    %v1748 = vpop.xlane.xlu0 %1747
    %v1749 = vmul.f32 %v1743, %v1502
    %1751 = vrot.lane.b32.xlu0 %v1749, 96
    %v1752 = vpop.permute.xlu0 %1751
    %v1754 = vsel %vm1745, %v1752, 0.0
    %1755 = vadd.xlane.f32.xlu0 %v1754
    %v1756 = vpop.xlane.xlu0 %1755
    %v1758 = vrot.slane %v1743, 4
    %v1759 = vsel %vm300, %v1758, 0
    %1761 = vmatprep.subr.mxu0 %v1374
    %1762 = vmatpush1.msra.mxu0 %v1373
    %1763 = vmatprep.subr.mxu0 %v1376
    %1764 = vmatpush1.msra.mxu0 %v1375
    %1765 = vmatprep.subr.mxu0 %v1378
    %1766 = vmatpush1.msra.mxu0 %v1377
    %1767 = vmatprep.subr.mxu0 %v1380
    %1768 = vmatpush1.msra.mxu0 %v1379
    %1769 = vmatprep.subr.mxu0 %v1382
    %1770 = vmatpush1.msra.mxu0 %v1381
    %1771 = vmatprep.subr.mxu0 %v1384
    %1772 = vmatpush1.msra.mxu0 %v1383
    %1773 = vmatprep.subr.mxu0 %v1386
    %1774 = vmatpush1.msra.mxu0 %v1385
    %1775 = vmatprep.subr.mxu0 %v1388
    %1776 = vmatpush1.msra.mxu0 %v1387
    %1777 = vmatprep.subr.mxu0 0.0
    %1778 = vmatpush1.msra.mxu0 0.0
    %1779 = vmatprep.subr.mxu0 0.0
    %1780 = vmatpush1.msra.mxu0 0.0
    %1781 = vmatprep.subr.mxu0 0.0
    %1782 = vmatpush1.msra.mxu0 0.0
    %1783 = vmatprep.subr.mxu0 0.0
    %1784 = vmatpush1.msra.mxu0 0.0
    %1785 = vmatprep.subr.mxu0 0.0
    %1786 = vmatpush1.msra.mxu0 0.0
    %1787 = vmatprep.subr.mxu0 0.0
    %1788 = vmatpush1.msra.mxu0 0.0
    %1789 = vmatprep.subr.mxu0 0.0
    %1790 = vmatpush1.msra.mxu0 0.0
    %1791 = vmatprep.subr.mxu0 0.0
    %1792 = vmatpush1.msra.mxu0 0.0
    %1793 = vmatprep.subr.mxu0 0.0
    %1794 = vmatpush1.msra.mxu0 0.0
    %1795 = vmatprep.subr.mxu0 0.0
    %1796 = vmatpush1.msra.mxu0 0.0
    %1797 = vmatprep.subr.mxu0 0.0
    %1798 = vmatpush1.msra.mxu0 0.0
    %1799 = vmatprep.subr.mxu0 0.0
    %1800 = vmatpush1.msra.mxu0 0.0
    %1801 = vmatprep.subr.mxu0 0.0
    %1802 = vmatpush1.msra.mxu0 0.0
    %1803 = vmatprep.subr.mxu0 0.0
    %1804 = vmatpush1.msra.mxu0 0.0
    %1805 = vmatprep.subr.mxu0 0.0
    %1806 = vmatpush1.msra.mxu0 0.0
    %1807 = vmatprep.subr.mxu0 0.0
    %1808 = vmatpush1.msra.mxu0 0.0
    %1809 = vmatprep.subr.mxu0 0.0
    %1810 = vmatpush1.msra.mxu0 0.0
    %1811 = vmatprep.subr.mxu0 0.0
    %1812 = vmatpush1.msra.mxu0 0.0
    %1813 = vmatprep.subr.mxu0 0.0
    %1814 = vmatpush1.msra.mxu0 0.0
    %1815 = vmatprep.subr.mxu0 0.0
    %1816 = vmatpush1.msra.mxu0 0.0
    %1817 = vmatprep.subr.mxu0 0.0
    %1818 = vmatpush1.msra.mxu0 0.0
    %1819 = vmatprep.subr.mxu0 0.0
    %1820 = vmatpush1.msra.mxu0 0.0
    %1821 = vmatprep.subr.mxu0 0.0
    %1822 = vmatpush1.msra.mxu0 0.0
    %1823 = vmatprep.subr.mxu0 0.0
    %1824 = vmatpush1.msra.mxu0 0.0
    %1825 = vmatprep.mubr.f32.mxu0 0.0
    %1826 = vmatmul.mubr.f32.gmra.mrb[0].mxu0 %v1759
    %v1827 = vpop.f32.mrb[0].mxu0
    %v1828 = vadd.f32 0.0, %v1827
    %v1829 = vpop.f32.mrb[0].mxu0
    %v1830 = vadd.f32 0.0, %v1829
    %1831 = vdwg.mxu0
    %v1833 = vrot.slane %v1828, 2
    %v1835 = vadd.f32 %v1516, %v1833
    %v1836 = vxor.u32 %v1835, 2147483648
    %v1837 = vmul.f32 %v1836, 1.442695
    %v1838 = vpow.pop %v1837
    %v1839 = vadd.f32 %v1838, 1.0
    %v1840 = vrcp.pop %v1839
    %v1841 = vmul.f32 1.0, %v1840
    %v1842 = vadd.f32 %v1830, %v1394
    %v1844 = vrot.slane %v1842, 2
    %v1846 = vmul.f32 %v1841, %v1844
    %v1847 = vadd.f32 %v1517, %v1846
    %v1848 = vtanh.pop %v1847
    %v1850 = vrot.slane %v1848, 2
    %v1852 = vsub.f32 %v1743, %v1850
    %v1854 = vrot.slane %v1852, 6
    %1855 = vrot.lane.b32.xlu0 %v1854, 64
    %v1856 = vpop.permute.xlu0 %1855
    %v1858 = vmul.f32 %v1841, %v1856
    %1860 = vrot.lane.b32.xlu0 %v1858, 64
    %v1861 = vpop.permute.xlu0 %1860
    %v1863 = vadd.f32 %v1848, %v1861
    %v1864 = vmul.f32 %v1863, %v153
    %vm1865 = vcmask 261126
    %v1866 = vsel %vm1865, %v1864, 0.0
    %1867 = vadd.xlane.f32.xlu0 %v1866
    %v1868 = vpop.xlane.xlu0 %1867
    %v1869 = vmul.f32 %v1863, %v1502
    %1871 = vrot.lane.b32.xlu0 %v1869, 96
    %v1872 = vpop.permute.xlu0 %1871
    %v1874 = vsel %vm1865, %v1872, 0.0
    %1875 = vadd.xlane.f32.xlu0 %v1874
    %v1876 = vpop.xlane.xlu0 %1875
    %v1879 = vrot.slane %v1363, 6
    %v1880 = vrot.slane %v1365, 6
    %v1883 = vadd.f32 %v1276, %v1879
    %v1884 = vadd.f32 %v1278, %v1880
    %v1886 = vrot.slane %v1863, 6
    %v1887 = vsel %vm300, %v1886, 0
    %1889 = vmatprep.subr.mxu0 %v1374
    %1890 = vmatpush1.msra.mxu0 %v1373
    %1891 = vmatprep.subr.mxu0 %v1376
    %1892 = vmatpush1.msra.mxu0 %v1375
    %1893 = vmatprep.subr.mxu0 %v1378
    %1894 = vmatpush1.msra.mxu0 %v1377
    %1895 = vmatprep.subr.mxu0 %v1380
    %1896 = vmatpush1.msra.mxu0 %v1379
    %1897 = vmatprep.subr.mxu0 %v1382
    %1898 = vmatpush1.msra.mxu0 %v1381
    %1899 = vmatprep.subr.mxu0 %v1384
    %1900 = vmatpush1.msra.mxu0 %v1383
    %1901 = vmatprep.subr.mxu0 %v1386
    %1902 = vmatpush1.msra.mxu0 %v1385
    %1903 = vmatprep.subr.mxu0 %v1388
    %1904 = vmatpush1.msra.mxu0 %v1387
    %1905 = vmatprep.subr.mxu0 0.0
    %1906 = vmatpush1.msra.mxu0 0.0
    %1907 = vmatprep.subr.mxu0 0.0
    %1908 = vmatpush1.msra.mxu0 0.0
    %1909 = vmatprep.subr.mxu0 0.0
    %1910 = vmatpush1.msra.mxu0 0.0
    %1911 = vmatprep.subr.mxu0 0.0
    %1912 = vmatpush1.msra.mxu0 0.0
    %1913 = vmatprep.subr.mxu0 0.0
    %1914 = vmatpush1.msra.mxu0 0.0
    %1915 = vmatprep.subr.mxu0 0.0
    %1916 = vmatpush1.msra.mxu0 0.0
    %1917 = vmatprep.subr.mxu0 0.0
    %1918 = vmatpush1.msra.mxu0 0.0
    %1919 = vmatprep.subr.mxu0 0.0
    %1920 = vmatpush1.msra.mxu0 0.0
    %1921 = vmatprep.subr.mxu0 0.0
    %1922 = vmatpush1.msra.mxu0 0.0
    %1923 = vmatprep.subr.mxu0 0.0
    %1924 = vmatpush1.msra.mxu0 0.0
    %1925 = vmatprep.subr.mxu0 0.0
    %1926 = vmatpush1.msra.mxu0 0.0
    %1927 = vmatprep.subr.mxu0 0.0
    %1928 = vmatpush1.msra.mxu0 0.0
    %1929 = vmatprep.subr.mxu0 0.0
    %1930 = vmatpush1.msra.mxu0 0.0
    %1931 = vmatprep.subr.mxu0 0.0
    %1932 = vmatpush1.msra.mxu0 0.0
    %1933 = vmatprep.subr.mxu0 0.0
    %1934 = vmatpush1.msra.mxu0 0.0
    %1935 = vmatprep.subr.mxu0 0.0
    %1936 = vmatpush1.msra.mxu0 0.0
    %1937 = vmatprep.subr.mxu0 0.0
    %1938 = vmatpush1.msra.mxu0 0.0
    %1939 = vmatprep.subr.mxu0 0.0
    %1940 = vmatpush1.msra.mxu0 0.0
    %1941 = vmatprep.subr.mxu0 0.0
    %1942 = vmatpush1.msra.mxu0 0.0
    %1943 = vmatprep.subr.mxu0 0.0
    %1944 = vmatpush1.msra.mxu0 0.0
    %1945 = vmatprep.subr.mxu0 0.0
    %1946 = vmatpush1.msra.mxu0 0.0
    %1947 = vmatprep.subr.mxu0 0.0
    %1948 = vmatpush1.msra.mxu0 0.0
    %1949 = vmatprep.subr.mxu0 0.0
    %1950 = vmatpush1.msra.mxu0 0.0
    %1951 = vmatprep.subr.mxu0 0.0
    %1952 = vmatpush1.msra.mxu0 0.0
    %1953 = vmatprep.mubr.f32.mxu0 0.0
    %1954 = vmatmul.mubr.f32.gmra.mrb[0].mxu0 %v1887
    %v1955 = vpop.f32.mrb[0].mxu0
    %v1956 = vadd.f32 0.0, %v1955
    %v1957 = vpop.f32.mrb[0].mxu0
    %v1958 = vadd.f32 0.0, %v1957
    %1959 = vdwg.mxu0
    %v1960 = vadd.f32 %v1883, %v1956
    %v1961 = vxor.u32 %v1960, 2147483648
    %v1962 = vmul.f32 %v1961, 1.442695
    %v1963 = vpow.pop %v1962
    %v1964 = vadd.f32 %v1963, 1.0
    %v1965 = vrcp.pop %v1964
    %v1966 = vmul.f32 1.0, %v1965
    %v1967 = vadd.f32 %v1958, %v1394
    %v1968 = vmul.f32 %v1966, %v1967
    %v1969 = vadd.f32 %v1884, %v1968
    %v1970 = vtanh.pop %v1969
    %v1972 = vrot.slane %v1970, 2
    %v1974 = vsub.f32 %v1863, %v1972
    %v1976 = vrot.slane %v1974, 6
    %1977 = vrot.lane.b32.xlu0 %v1976, 64
    %v1978 = vpop.permute.xlu0 %1977
    %v1980 = vmul.f32 %v1966, %v1978
    %1982 = vrot.lane.b32.xlu0 %v1980, 64
    %v1983 = vpop.permute.xlu0 %1982
    %v1985 = vadd.f32 %v1970, %v1983
    %v1986 = vmul.f32 %v1985, %v153
    %v1987 = vsel %vm397, %v1986, 0.0
    %1988 = vadd.xlane.f32.xlu0 %v1987
    %v1989 = vpop.xlane.xlu0 %1988
    %v1990 = vmul.f32 %v1985, %v1502
    %1992 = vrot.lane.b32.xlu0 %v1990, 96
    %v1993 = vpop.permute.xlu0 %1992
    %v1995 = vsel %vm397, %v1993, 0.0
    %1996 = vadd.xlane.f32.xlu0 %v1995
    %v1997 = vpop.xlane.xlu0 %1996
    %v1998 = vrot.slane %v1363, 2
    %v1999 = vrot.slane %v1365, 2
    %v2002 = vadd.f32 %v1276, %v1998
    %v2003 = vadd.f32 %v1278, %v1999
    %v2005 = vsel %vm300, %v1985, 0
    %2007 = vmatprep.subr.mxu0 %v1374
    %2008 = vmatpush1.msra.mxu0 %v1373
    %2009 = vmatprep.subr.mxu0 %v1376
    %2010 = vmatpush1.msra.mxu0 %v1375
    %2011 = vmatprep.subr.mxu0 %v1378
    %2012 = vmatpush1.msra.mxu0 %v1377
    %2013 = vmatprep.subr.mxu0 %v1380
    %2014 = vmatpush1.msra.mxu0 %v1379
    %2015 = vmatprep.subr.mxu0 %v1382
    %2016 = vmatpush1.msra.mxu0 %v1381
    %2017 = vmatprep.subr.mxu0 %v1384
    %2018 = vmatpush1.msra.mxu0 %v1383
    %2019 = vmatprep.subr.mxu0 %v1386
    %2020 = vmatpush1.msra.mxu0 %v1385
    %2021 = vmatprep.subr.mxu0 %v1388
    %2022 = vmatpush1.msra.mxu0 %v1387
    %2023 = vmatprep.subr.mxu0 0.0
    %2024 = vmatpush1.msra.mxu0 0.0
    %2025 = vmatprep.subr.mxu0 0.0
    %2026 = vmatpush1.msra.mxu0 0.0
    %2027 = vmatprep.subr.mxu0 0.0
    %2028 = vmatpush1.msra.mxu0 0.0
    %2029 = vmatprep.subr.mxu0 0.0
    %2030 = vmatpush1.msra.mxu0 0.0
    %2031 = vmatprep.subr.mxu0 0.0
    %2032 = vmatpush1.msra.mxu0 0.0
    %2033 = vmatprep.subr.mxu0 0.0
    %2034 = vmatpush1.msra.mxu0 0.0
    %2035 = vmatprep.subr.mxu0 0.0
    %2036 = vmatpush1.msra.mxu0 0.0
    %2037 = vmatprep.subr.mxu0 0.0
    %2038 = vmatpush1.msra.mxu0 0.0
    %2039 = vmatprep.subr.mxu0 0.0
    %2040 = vmatpush1.msra.mxu0 0.0
    %2041 = vmatprep.subr.mxu0 0.0
    %2042 = vmatpush1.msra.mxu0 0.0
    %2043 = vmatprep.subr.mxu0 0.0
    %2044 = vmatpush1.msra.mxu0 0.0
    %2045 = vmatprep.subr.mxu0 0.0
    %2046 = vmatpush1.msra.mxu0 0.0
    %2047 = vmatprep.subr.mxu0 0.0
    %2048 = vmatpush1.msra.mxu0 0.0
    %2049 = vmatprep.subr.mxu0 0.0
    %2050 = vmatpush1.msra.mxu0 0.0
    %2051 = vmatprep.subr.mxu0 0.0
    %2052 = vmatpush1.msra.mxu0 0.0
    %2053 = vmatprep.subr.mxu0 0.0
    %2054 = vmatpush1.msra.mxu0 0.0
    %2055 = vmatprep.subr.mxu0 0.0
    %2056 = vmatpush1.msra.mxu0 0.0
    %2057 = vmatprep.subr.mxu0 0.0
    %2058 = vmatpush1.msra.mxu0 0.0
    %2059 = vmatprep.subr.mxu0 0.0
    %2060 = vmatpush1.msra.mxu0 0.0
    %2061 = vmatprep.subr.mxu0 0.0
    %2062 = vmatpush1.msra.mxu0 0.0
    %2063 = vmatprep.subr.mxu0 0.0
    %2064 = vmatpush1.msra.mxu0 0.0
    %2065 = vmatprep.subr.mxu0 0.0
    %2066 = vmatpush1.msra.mxu0 0.0
    %2067 = vmatprep.subr.mxu0 0.0
    %2068 = vmatpush1.msra.mxu0 0.0
    %2069 = vmatprep.subr.mxu0 0.0
    %2070 = vmatpush1.msra.mxu0 0.0
    %2071 = vmatprep.mubr.f32.mxu0 0.0
    %2072 = vmatmul.mubr.f32.gmra.mrb[0].mxu0 %v2005
    %v2073 = vpop.f32.mrb[0].mxu0
    %v2074 = vadd.f32 0.0, %v2073
    %v2075 = vpop.f32.mrb[0].mxu0
    %v2076 = vadd.f32 0.0, %v2075
    %2077 = vdwg.mxu0
    %v2079 = vrot.slane %v2074, 6
    %v2081 = vadd.f32 %v2002, %v2079
    %v2082 = vxor.u32 %v2081, 2147483648
    %v2083 = vmul.f32 %v2082, 1.442695
    %v2084 = vpow.pop %v2083
    %v2085 = vadd.f32 %v2084, 1.0
    %v2086 = vrcp.pop %v2085
    %v2087 = vmul.f32 1.0, %v2086
    %v2088 = vadd.f32 %v2076, %v1394
    %v2090 = vrot.slane %v2088, 6
    %v2092 = vmul.f32 %v2087, %v2090
    %v2093 = vadd.f32 %v2003, %v2092
    %v2094 = vtanh.pop %v2093
    %v2096 = vrot.slane %v2094, 2
    %v2098 = vsub.f32 %v1985, %v2096
    %v2100 = vrot.slane %v2098, 6
    %2101 = vrot.lane.b32.xlu0 %v2100, 64
    %v2102 = vpop.permute.xlu0 %2101
    %v2104 = vmul.f32 %v2087, %v2102
    %2106 = vrot.lane.b32.xlu0 %v2104, 64
    %v2107 = vpop.permute.xlu0 %2106
    %v2109 = vadd.f32 %v2094, %v2107
    %v2110 = vmul.f32 %v2109, %v153
    %v2111 = vsel %vm1625, %v2110, 0.0
    %2112 = vadd.xlane.f32.xlu0 %v2111
    %v2113 = vpop.xlane.xlu0 %2112
    %v2114 = vmul.f32 %v2109, %v1502
    %2116 = vrot.lane.b32.xlu0 %v2114, 96
    %v2117 = vpop.permute.xlu0 %2116
    %v2119 = vsel %vm1625, %v2117, 0.0
    %2120 = vadd.xlane.f32.xlu0 %v2119
    %v2121 = vpop.xlane.xlu0 %2120
    %v2123 = vrot.slane %v2109, 2
    %v2124 = vsel %vm300, %v2123, 0
    %2126 = vmatprep.subr.mxu0 %v1374
    %2127 = vmatpush1.msra.mxu0 %v1373
    %2128 = vmatprep.subr.mxu0 %v1376
    %2129 = vmatpush1.msra.mxu0 %v1375
    %2130 = vmatprep.subr.mxu0 %v1378
    %2131 = vmatpush1.msra.mxu0 %v1377
    %2132 = vmatprep.subr.mxu0 %v1380
    %2133 = vmatpush1.msra.mxu0 %v1379
    %2134 = vmatprep.subr.mxu0 %v1382
    %2135 = vmatpush1.msra.mxu0 %v1381
    %2136 = vmatprep.subr.mxu0 %v1384
    %2137 = vmatpush1.msra.mxu0 %v1383
    %2138 = vmatprep.subr.mxu0 %v1386
    %2139 = vmatpush1.msra.mxu0 %v1385
    %2140 = vmatprep.subr.mxu0 %v1388
    %2141 = vmatpush1.msra.mxu0 %v1387
    %2142 = vmatprep.subr.mxu0 0.0
    %2143 = vmatpush1.msra.mxu0 0.0
    %2144 = vmatprep.subr.mxu0 0.0
    %2145 = vmatpush1.msra.mxu0 0.0
    %2146 = vmatprep.subr.mxu0 0.0
    %2147 = vmatpush1.msra.mxu0 0.0
    %2148 = vmatprep.subr.mxu0 0.0
    %2149 = vmatpush1.msra.mxu0 0.0
    %2150 = vmatprep.subr.mxu0 0.0
    %2151 = vmatpush1.msra.mxu0 0.0
    %2152 = vmatprep.subr.mxu0 0.0
    %2153 = vmatpush1.msra.mxu0 0.0
    %2154 = vmatprep.subr.mxu0 0.0
    %2155 = vmatpush1.msra.mxu0 0.0
    %2156 = vmatprep.subr.mxu0 0.0
    %2157 = vmatpush1.msra.mxu0 0.0
    %2158 = vmatprep.subr.mxu0 0.0
    %2159 = vmatpush1.msra.mxu0 0.0
    %2160 = vmatprep.subr.mxu0 0.0
    %2161 = vmatpush1.msra.mxu0 0.0
    %2162 = vmatprep.subr.mxu0 0.0
    %2163 = vmatpush1.msra.mxu0 0.0
    %2164 = vmatprep.subr.mxu0 0.0
    %2165 = vmatpush1.msra.mxu0 0.0
    %2166 = vmatprep.subr.mxu0 0.0
    %2167 = vmatpush1.msra.mxu0 0.0
    %2168 = vmatprep.subr.mxu0 0.0
    %2169 = vmatpush1.msra.mxu0 0.0
    %2170 = vmatprep.subr.mxu0 0.0
    %2171 = vmatpush1.msra.mxu0 0.0
    %2172 = vmatprep.subr.mxu0 0.0
    %2173 = vmatpush1.msra.mxu0 0.0
    %2174 = vmatprep.subr.mxu0 0.0
    %2175 = vmatpush1.msra.mxu0 0.0
    %2176 = vmatprep.subr.mxu0 0.0
    %2177 = vmatpush1.msra.mxu0 0.0
    %2178 = vmatprep.subr.mxu0 0.0
    %2179 = vmatpush1.msra.mxu0 0.0
    %2180 = vmatprep.subr.mxu0 0.0
    %2181 = vmatpush1.msra.mxu0 0.0
    %2182 = vmatprep.subr.mxu0 0.0
    %2183 = vmatpush1.msra.mxu0 0.0
    %2184 = vmatprep.subr.mxu0 0.0
    %2185 = vmatpush1.msra.mxu0 0.0
    %2186 = vmatprep.subr.mxu0 0.0
    %2187 = vmatpush1.msra.mxu0 0.0
    %2188 = vmatprep.subr.mxu0 0.0
    %2189 = vmatpush1.msra.mxu0 0.0
    %2190 = vmatprep.mubr.f32.mxu0 0.0
    %2191 = vmatmul.mubr.f32.gmra.mrb[0].mxu0 %v2124
    %v2192 = vpop.f32.mrb[0].mxu0
    %v2193 = vadd.f32 0.0, %v2192
    %v2194 = vpop.f32.mrb[0].mxu0
    %v2195 = vadd.f32 0.0, %v2194
    %2196 = vdwg.mxu0
    %v2198 = vrot.slane %v2193, 4
    %v2200 = vadd.f32 %v1883, %v2198
    %v2201 = vxor.u32 %v2200, 2147483648
    %v2202 = vmul.f32 %v2201, 1.442695
    %v2203 = vpow.pop %v2202
    %v2204 = vadd.f32 %v2203, 1.0
    %v2205 = vrcp.pop %v2204
    %v2206 = vmul.f32 1.0, %v2205
    %v2207 = vadd.f32 %v2195, %v1394
    %v2209 = vrot.slane %v2207, 4
    %v2211 = vmul.f32 %v2206, %v2209
    %v2212 = vadd.f32 %v1884, %v2211
    %v2213 = vtanh.pop %v2212
    %v2215 = vrot.slane %v2213, 2
    %v2217 = vsub.f32 %v2109, %v2215
    %v2219 = vrot.slane %v2217, 6
    %2220 = vrot.lane.b32.xlu0 %v2219, 64
    %v2221 = vpop.permute.xlu0 %2220
    %v2223 = vmul.f32 %v2206, %v2221
    %2225 = vrot.lane.b32.xlu0 %v2223, 64
    %v2226 = vpop.permute.xlu0 %2225
    %v2228 = vadd.f32 %v2213, %v2226
    %v2229 = vmul.f32 %v2228, %v153
    %v2230 = vsel %vm1745, %v2229, 0.0
    %2231 = vadd.xlane.f32.xlu0 %v2230
    %v2232 = vpop.xlane.xlu0 %2231
    %v2233 = vmul.f32 %v2228, %v1502
    %2235 = vrot.lane.b32.xlu0 %v2233, 96
    %v2236 = vpop.permute.xlu0 %2235
    %v2238 = vsel %vm1745, %v2236, 0.0
    %2239 = vadd.xlane.f32.xlu0 %v2238
    %v2240 = vpop.xlane.xlu0 %2239
    %v2242 = vrot.slane %v2228, 4
    %v2243 = vsel %vm300, %v2242, 0
    %2245 = vmatprep.subr.mxu0 %v1374
    %2246 = vmatpush1.msra.mxu0 %v1373
    %2247 = vmatprep.subr.mxu0 %v1376
    %2248 = vmatpush1.msra.mxu0 %v1375
    %2249 = vmatprep.subr.mxu0 %v1378
    %2250 = vmatpush1.msra.mxu0 %v1377
    %2251 = vmatprep.subr.mxu0 %v1380
    %2252 = vmatpush1.msra.mxu0 %v1379
    %2253 = vmatprep.subr.mxu0 %v1382
    %2254 = vmatpush1.msra.mxu0 %v1381
    %2255 = vmatprep.subr.mxu0 %v1384
    %2256 = vmatpush1.msra.mxu0 %v1383
    %2257 = vmatprep.subr.mxu0 %v1386
    %2258 = vmatpush1.msra.mxu0 %v1385
    %2259 = vmatprep.subr.mxu0 %v1388
    %2260 = vmatpush1.msra.mxu0 %v1387
    %2261 = vmatprep.subr.mxu0 0.0
    %2262 = vmatpush1.msra.mxu0 0.0
    %2263 = vmatprep.subr.mxu0 0.0
    %2264 = vmatpush1.msra.mxu0 0.0
    %2265 = vmatprep.subr.mxu0 0.0
    %2266 = vmatpush1.msra.mxu0 0.0
    %2267 = vmatprep.subr.mxu0 0.0
    %2268 = vmatpush1.msra.mxu0 0.0
    %2269 = vmatprep.subr.mxu0 0.0
    %2270 = vmatpush1.msra.mxu0 0.0
    %2271 = vmatprep.subr.mxu0 0.0
    %2272 = vmatpush1.msra.mxu0 0.0
    %2273 = vmatprep.subr.mxu0 0.0
    %2274 = vmatpush1.msra.mxu0 0.0
    %2275 = vmatprep.subr.mxu0 0.0
    %2276 = vmatpush1.msra.mxu0 0.0
    %2277 = vmatprep.subr.mxu0 0.0
    %2278 = vmatpush1.msra.mxu0 0.0
    %2279 = vmatprep.subr.mxu0 0.0
    %2280 = vmatpush1.msra.mxu0 0.0
    %2281 = vmatprep.subr.mxu0 0.0
    %2282 = vmatpush1.msra.mxu0 0.0
    %2283 = vmatprep.subr.mxu0 0.0
    %2284 = vmatpush1.msra.mxu0 0.0
    %2285 = vmatprep.subr.mxu0 0.0
    %2286 = vmatpush1.msra.mxu0 0.0
    %2287 = vmatprep.subr.mxu0 0.0
    %2288 = vmatpush1.msra.mxu0 0.0
    %2289 = vmatprep.subr.mxu0 0.0
    %2290 = vmatpush1.msra.mxu0 0.0
    %2291 = vmatprep.subr.mxu0 0.0
    %2292 = vmatpush1.msra.mxu0 0.0
    %2293 = vmatprep.subr.mxu0 0.0
    %2294 = vmatpush1.msra.mxu0 0.0
    %2295 = vmatprep.subr.mxu0 0.0
    %2296 = vmatpush1.msra.mxu0 0.0
    %2297 = vmatprep.subr.mxu0 0.0
    %2298 = vmatpush1.msra.mxu0 0.0
    %2299 = vmatprep.subr.mxu0 0.0
    %2300 = vmatpush1.msra.mxu0 0.0
    %2301 = vmatprep.subr.mxu0 0.0
    %2302 = vmatpush1.msra.mxu0 0.0
    %2303 = vmatprep.subr.mxu0 0.0
    %2304 = vmatpush1.msra.mxu0 0.0
    %2305 = vmatprep.subr.mxu0 0.0
    %2306 = vmatpush1.msra.mxu0 0.0
    %2307 = vmatprep.subr.mxu0 0.0
    %2308 = vmatpush1.msra.mxu0 0.0
    %2309 = vmatprep.mubr.f32.mxu0 0.0
    %2310 = vmatmul.mubr.f32.gmra.mrb[0].mxu0 %v2243
    %v2311 = vpop.f32.mrb[0].mxu0
    %v2312 = vadd.f32 0.0, %v2311
    %v2313 = vpop.f32.mrb[0].mxu0
    %v2314 = vadd.f32 0.0, %v2313
    %2315 = vdwg.mxu0
    %v2317 = vrot.slane %v2312, 2
    %v2319 = vadd.f32 %v2002, %v2317
    %v2320 = vxor.u32 %v2319, 2147483648
    %v2321 = vmul.f32 %v2320, 1.442695
    %v2322 = vpow.pop %v2321
    %v2323 = vadd.f32 %v2322, 1.0
    %v2324 = vrcp.pop %v2323
    %v2325 = vmul.f32 1.0, %v2324
    %v2326 = vadd.f32 %v2314, %v1394
    %v2328 = vrot.slane %v2326, 2
    %v2330 = vmul.f32 %v2325, %v2328
    %v2331 = vadd.f32 %v2003, %v2330
    %v2332 = vtanh.pop %v2331
    %v2334 = vrot.slane %v2332, 2
    %v2336 = vsub.f32 %v2228, %v2334
    %v2338 = vrot.slane %v2336, 6
    %2339 = vrot.lane.b32.xlu0 %v2338, 64
    %v2340 = vpop.permute.xlu0 %2339
    %v2342 = vmul.f32 %v2325, %v2340
    %2344 = vrot.lane.b32.xlu0 %v2342, 64
    %v2345 = vpop.permute.xlu0 %2344
    %v2347 = vadd.f32 %v2332, %v2345
    %v2348 = vmul.f32 %v2347, %v153
    %v2349 = vsel %vm1865, %v2348, 0.0
    %2350 = vadd.xlane.f32.xlu0 %v2349
    %v2351 = vpop.xlane.xlu0 %2350
    %v2352 = vmul.f32 %v2347, %v1502
    %2354 = vrot.lane.b32.xlu0 %v2352, 96
    %v2355 = vpop.permute.xlu0 %2354
    %v2357 = vsel %vm1865, %v2355, 0.0
    %2358 = vadd.xlane.f32.xlu0 %v2357
    %v2359 = vpop.xlane.xlu0 %2358
    %v2361 = vrot.slane %v2359, 6
    %v2363 = vadd.f32 %v1500, %v2361
    %v2365 = vrot.slane %v2240, 2
    %v2367 = vadd.f32 %v1628, %v2365
    %v2369 = vrot.slane %v2121, 6
    %v2371 = vadd.f32 %v1748, %v2369
    %v2373 = vrot.slane %v1997, 2
    %v2375 = vadd.f32 %v1868, %v2373
    %v2377 = vrot.slane %v1876, 6
    %v2379 = vadd.f32 %v1989, %v2377
    %v2381 = vrot.slane %v1756, 2
    %v2383 = vadd.f32 %v2113, %v2381
    %v2385 = vrot.slane %v1636, 6
    %v2387 = vadd.f32 %v2232, %v2385
    %v2389 = vrot.slane %v1511, 2
    %v2391 = vadd.f32 %v2351, %v2389
    %v2393 = vrot.slane %v2367, 2
    %2394 = vrot.lane.b32.xlu0 %v2393, 1
    %v2395 = vpop.permute.xlu0 %2394
    %v2398 = vrot.slane %v2371, 4
    %2399 = vrot.lane.b32.xlu0 %v2398, 2
    %v2400 = vpop.permute.xlu0 %2399
    %v2403 = vrot.slane %v2375, 6
    %2404 = vrot.lane.b32.xlu0 %v2403, 3
    %v2405 = vpop.permute.xlu0 %2404
    %2408 = vrot.lane.b32.xlu0 %v2379, 4
    %v2409 = vpop.permute.xlu0 %2408
    %v2412 = vrot.slane %v2383, 2
    %2413 = vrot.lane.b32.xlu0 %v2412, 5
    %v2414 = vpop.permute.xlu0 %2413
    %v2417 = vrot.slane %v2387, 4
    %2418 = vrot.lane.b32.xlu0 %v2417, 6
    %v2419 = vpop.permute.xlu0 %2418
    %v2422 = vrot.slane %v2391, 6
    %2423 = vrot.lane.b32.xlu0 %v2422, 7
    %v2424 = vpop.permute.xlu0 %2423
    %vm2426 = vcmask 7168
    %v2427 = vsel %vm2426, %v2363, %v2395
    %vm2428 = vcmask 15360
    %v2429 = vsel %vm2428, %v2427, %v2400
    %vm2430 = vcmask 23552
    %v2431 = vsel %vm2430, %v2429, %v2405
    %vm2432 = vcmask 31744
    %v2433 = vsel %vm2432, %v2431, %v2409
    %vm2434 = vcmask 39936
    %v2435 = vsel %vm2434, %v2433, %v2414
    %vm2436 = vcmask 48128
    %v2437 = vsel %vm2436, %v2435, %v2419
    %vm2438 = vcmask 56320
    %v2439 = vsel %vm2438, %v2437, %v2424
    %v2440 = vld [vmem:[#allocation3] sm:$0x1]
    %v2442 = vlaneseq
    %v2443 = vshrl.u32 %v2442, 7
    %v2444 = vsub.s32 0, %v2443
    %v2445 = vrot.slane %v2440, %v2444
    %2446 = vset.pattern.permute.xlu0 0
    %2447 = vperm.xlu0 %2446, %v2445
    %v2448 = vpop.permute.xlu0 %2447
    %v2450 = vadd.f32 %v2439, %v2448
    %vm2451 = vcmask 58368
    %2452 = vst.msk [vmem:[#allocation17] sm:$0x3] %vm2451, %v2450
    // Predicated region
    $region94: #{toy_duration_predictor.1} parent=1 // pred_check
      _
    $region95: #{toy_duration_predictor.1} parent=1 // pred_check_branch
      %2454 = sbr.rel (0) target = $region97
    $region96: #{toy_duration_predictor.1} parent=1 // pred_region
      %s2456 = ssub.s32 32, 32
      %2457 = vsyncadd [#allocation6], %s2456
      %s2459 = sshll.u32 [#allocation17], 4
      %s2460 = int_to_ptr.vmem [resolvable:$true] %s2459
      %2462 = dma.vmem_to_hbm [thread:$0]  %s2460, 32, %s16, [#allocation6]
    $region97: #{toy_duration_predictor.1} parent=1 // pred_fallthru
      _
    // Predicated region
    $region98: #{toy_duration_predictor.1} parent=1 // pred_check
      _
    $region99: #{toy_duration_predictor.1} parent=1 // pred_check_branch
      %2464 = sbr.rel (0) target = $region101
    $region100: #{toy_duration_predictor.1} parent=1 // pred_region
      %2465 = dma.done [#allocation6], 32
    $region101: #{toy_duration_predictor.1} parent=1 // pred_fallthru
      _
    %2466 = vsyncpa [#allocation5], 1
    %2467 = vsyncpa [#allocation10], 1
    %2468 = vsyncpa [#allocation13], 1
    %2469 = vsyncpa [#allocation16], 1
    %2470 = vsyncpa [#allocation6], 1
    %2471 = vsyncpa [#allocation7], 1

</llo_original>
